<compile_context>
chip_gen: v7x
topology: tpu7x:2x2x1
jax: 0.10.0
libtpu: 0.0.40
codegen_flags: <defaults>
</compile_context>

<pallas_src>
import functools
import math

import jax
import jax.numpy as jnp
from jax import lax
from jax.experimental import pallas as pl
from jax.experimental.pallas import tpu as pltpu


_LANE = 128
_SEQ_CHUNK_CAP = 32          # chunk length cap; partially unrolled above 16


def _round_up(x, m):
    return (x + m - 1) // m * m


# ----------------------------------------------------------------------------
# VMEM sizing (generation-aware)
# ----------------------------------------------------------------------------
def _vmem_budget_bytes():
    # ~100 MiB on v5e/v6e (128 MiB physical VMEM), ~50 MiB on v7x (64 MiB).
    try:
        cap = int(pltpu.get_tpu_info().vmem_capacity_bytes)
    except Exception:
        cap = 128 << 20
    return int(cap * 0.78)


def _fused_vmem_bytes(T, Bp, Hp, Ip0, Op, num_layers, itemsize):
    blk = T * Bp
    x_bufs = 2 * blk * Ip0 * itemsize                    # double-buffered x chunk
    out_bufs = 2 * Bp * Op * 4
    w = Ip0 * 3 * Hp * itemsize + Hp * 3 * Hp * itemsize + Hp * 4            # layer 0
    w += (num_layers - 1) * (2 * Hp * 3 * Hp * itemsize + 3 * Hp * 4 + Hp * 4)
    w += Hp * Op * 4 + Op * 4                                                # fc head
    w_bufs = 2 * w                                       # resident blocks still get 2 bufs
    scratch = (num_layers * Bp * Hp * 4 + blk * 3 * Hp * 4
               + (blk * Hp * 4 if num_layers > 1 else 0))
    return x_bufs + out_bufs + w_bufs + scratch


def _choose_chunk(seq, Bp, Hp, Ip0, Op, num_layers, itemsize, budget):
    # T kept even so T*Bp is a multiple of 16 (bf16 sublane packing of the x block).
    T = min(_round_up(max(seq, 2), 2), _SEQ_CHUNK_CAP)
    while T > 2 and _fused_vmem_bytes(T, Bp, Hp, Ip0, Op, num_layers, itemsize) > budget:
        T = max(2, _round_up(T // 2, 2))
    return T


def _vmem_limit(est, budget):
    return int(min(budget, max(int(est * 1.5) + (2 << 20), 16 << 20)))


# ----------------------------------------------------------------------------
# Fused multi-layer GRU + FC kernel
# ----------------------------------------------------------------------------
def _make_fused_kernel(num_layers, T, Bp, Hp, seq_len, needs_mask, mxu_dtype, unroll):
    last = num_layers - 1
    n_w = 3 + 4 * (num_layers - 1)        # layer 0: wih, whh, bhn | layer l>0: + bx

    def kernel(*refs):
        x_ref = refs[0]
        w_refs = refs[1:1 + n_w]
        wfc_ref = refs[1 + n_w]
        bfc_ref = refs[2 + n_w]
        out_ref = refs[3 + n_w]
        if num_layers > 1:
            h_scr, gx_scr, act_scr = refs[4 + n_w:]
        else:
            h_scr, gx_scr = refs[4 + n_w:]
            act_scr = None

        c = pl.program_id(0)
        last_chunk = pl.num_programs(0) - 1

        @pl.when(c == 0)
        def _init():
            h_scr[...] = jnp.zeros_like(h_scr)

        def layer_refs(l):
            if l == 0:
                return w_refs[0], w_refs[1], None, w_refs[2]
            off = 3 + 4 * (l - 1)
            return w_refs[off], w_refs[off + 1], w_refs[off + 2], w_refs[off + 3]

        def layer_gemm(l, wih_ref, bx_ref):
            # Input-side gate pre-activations for the whole chunk: one dense MXU GEMM.
            if l == 0:
                a = x_ref[...]                           # bias folded via ones column
            else:
                a = act_scr[...].astype(mxu_dtype)       # previous layer's chunk output
            gx = jnp.dot(a, wih_ref[...], preferred_element_type=jnp.float32)
            if bx_ref is not None:
                gx = gx + bx_ref[...]
            gx_scr[...] = gx

        def layer_recur(l, whh_ref, bhn_ref, mask):
            bhn = jnp.broadcast_to(bhn_ref[...], (Bp, Hp))   # one vreg, hoisted
            base = c * T

            def step(t, h):
                row = pl.multiple_of(t * Bp, 8)
                gx_t = gx_scr[pl.ds(row, Bp), :]                       # (Bp, 3*Hp)
                # W_hh streamed from VMEM every step (no big hoisted value -> no
                # spills on the serial chain); bf16 MXU inputs, f32 accumulate.
                gh = jnp.dot(h.astype(mxu_dtype), whh_ref[...],
                             preferred_element_type=jnp.float32)       # (Bp, 3*Hp)
                r = jax.nn.sigmoid(gx_t[:, 0:Hp] + gh[:, 0:Hp])
                z = jax.nn.sigmoid(gx_t[:, Hp:2 * Hp] + gh[:, Hp:2 * Hp])
                n = jnp.tanh(gx_t[:, 2 * Hp:] + r * (gh[:, 2 * Hp:] + bhn))
                h_new = (1.0 - z) * n + z * h
                if mask:   # freeze h on padded timesteps (padding is at the END only)
                    h_new = jnp.where(base + t < seq_len, h_new, h)
                if l < last:
                    act_scr[pl.ds(row, Bp), :] = h_new     # feed the next layer (VMEM only)
                return h_new

            h_scr[l] = lax.fori_loop(0, T, step, h_scr[l], unroll=unroll)

        for l in range(num_layers):
            wih_ref, whh_ref, bx_ref, bhn_ref = layer_refs(l)
            layer_gemm(l, wih_ref, bx_ref)
            if needs_mask and l == last:
                # Only the last layer on the padded (last) chunk needs the freeze-select.
                @pl.when(c != last_chunk)
                def _full(l=l, whh_ref=whh_ref, bhn_ref=bhn_ref):
                    layer_recur(l, whh_ref, bhn_ref, False)

                @pl.when(c == last_chunk)
                def _tail(l=l, whh_ref=whh_ref, bhn_ref=bhn_ref):
                    layer_recur(l, whh_ref, bhn_ref, True)
            else:
                layer_recur(l, whh_ref, bhn_ref, False)

        @pl.when(c == last_chunk)
        def _fc():
            out_ref[...] = (jnp.dot(h_scr[last], wfc_ref[...],
                                    preferred_element_type=jnp.float32)
                            + bfc_ref[...]).astype(out_ref.dtype)

    return kernel


# ----------------------------------------------------------------------------
# One-time parameter re-layout (pad + transpose + fuse biases)
# ----------------------------------------------------------------------------
def prepare_params(params, *, mxu_dtype=jnp.bfloat16):
    """PyTorch-layout params -> padded, transposed, bias-fused kernel layout.

    mxu_dtype controls the MXU operand dtype (x, W_ih, W_hh, inter-layer acts at the
    GEMM input).  bf16 is the default on all generations; gate math / carried h /
    biases / FC stay float32.  Layer-0 x-side biases ride in W_ih row `in_dim`
    (picked up by a ones-column in x).
    """
    gru = params['gru']
    wfc, bfc = params['fc']
    H = gru[0][1].shape[1]
    Hp = _round_up(H, _LANE)
    out_size = wfc.shape[0]
    Op = _round_up(out_size, _LANE)

    layers = []
    for li, (wih, whh, bih, bhh) in enumerate(gru):
        in_dim = wih.shape[1]
        Ip = _round_up(in_dim + 1, _LANE) if li == 0 else Hp   # +1: ones (bias) column
        wih_t = jnp.zeros((Ip, 3 * Hp), jnp.float32)
        whh_t = jnp.zeros((Hp, 3 * Hp), jnp.float32)
        bx = jnp.zeros((1, 3 * Hp), jnp.float32)
        for g in range(3):                                     # gate order: r | z | n
            wih_t = wih_t.at[:in_dim, g * Hp:g * Hp + H].set(wih[g * H:(g + 1) * H, :].T)
            whh_t = whh_t.at[:H, g * Hp:g * Hp + H].set(whh[g * H:(g + 1) * H, :].T)
            b_g = bih[g * H:(g + 1) * H]
            if g < 2:                                          # fold b_hh for r, z gates
                b_g = b_g + bhh[g * H:(g + 1) * H]
            if li == 0:                                        # bias -> ones-column row
                wih_t = wih_t.at[in_dim, g * Hp:g * Hp + H].set(b_g)
            else:
                bx = bx.at[0, g * Hp:g * Hp + H].set(b_g)
        bhn = jnp.zeros((1, Hp), jnp.float32).at[0, :H].set(bhh[2 * H:3 * H])
        lp = dict(wih=wih_t.astype(mxu_dtype), whh=whh_t.astype(mxu_dtype), bhn=bhn)
        if li > 0:
            lp['bx'] = bx
        layers.append(lp)

    wfc_t = jnp.zeros((Hp, Op), jnp.float32).at[:H, :out_size].set(wfc.T)
    bfc_p = jnp.zeros((1, Op), jnp.float32).at[0, :out_size].set(bfc)
    return dict(layers=layers, fc=dict(w=wfc_t, b=bfc_p))


# ----------------------------------------------------------------------------
# Forward pass (matches GRUMotionClassifier.forward)
# ----------------------------------------------------------------------------
@functools.partial(jax.jit, static_argnames=("output_size",))
def gru_motion_classifier_forward(prepared, x, *, output_size):
    """x: (batch, seq, input_size) -> (batch, output_size)."""
    batch, seq, in_dim = x.shape
    layers = prepared['layers']
    num_layers = len(layers)
    mxu_dtype = layers[0]['wih'].dtype
    itemsize = jnp.dtype(mxu_dtype).itemsize
    Hp = layers[0]['whh'].shape[0]
    Ip0 = layers[0]['wih'].shape[0]
    Op = prepared['fc']['w'].shape[1]

    Bp = _round_up(batch, 8)                 # NOT inflated to 16 on the bf16 path
    budget = _vmem_budget_bytes()
    T = _choose_chunk(seq, Bp, Hp, Ip0, Op, num_layers, itemsize, budget)
    Sp = _round_up(seq, T)
    nchunks = Sp // T
    blk = T * Bp
    needs_mask = (Sp != seq)                 # padding is strictly at the END of the seq
    unroll = T if T <= 16 else 8             # partial unroll for long chunks

    # batch_first -> time-major, pad (seq-end, batch, feature), add the bias
    # ones-column at index in_dim, flatten to lane-dense 2-D (time*batch, feature).
    x_tm = jnp.transpose(x, (1, 0, 2)).astype(jnp.float32)
    x_tm = jnp.pad(x_tm, ((0, Sp - seq), (0, Bp - batch), (0, Ip0 - in_dim)))
    x_tm = x_tm.at[:, :, in_dim].set(1.0)
    x2d = x_tm.reshape(Sp * Bp, Ip0).astype(mxu_dtype)

    in_specs = [pl.BlockSpec((blk, Ip0), lambda c: (c, 0))]        # pipelined x chunk
    args = [x2d]
    for li, lp in enumerate(layers):
        Ip_l = lp['wih'].shape[0]
        in_specs.append(pl.BlockSpec((Ip_l, 3 * Hp), lambda c: (0, 0)))  # W_ih resident
        args.append(lp['wih'])
        in_specs.append(pl.BlockSpec((Hp, 3 * Hp), lambda c: (0, 0)))    # W_hh resident
        args.append(lp['whh'])
        if li > 0:
            in_specs.append(pl.BlockSpec((1, 3 * Hp), lambda c: (0, 0)))  # fused r/z/n bias
            args.append(lp['bx'])
        in_specs.append(pl.BlockSpec((1, Hp), lambda c: (0, 0)))          # b_hn
        args.append(lp['bhn'])
    in_specs.append(pl.BlockSpec((Hp, Op), lambda c: (0, 0)))             # W_fc
    args.append(prepared['fc']['w'])
    in_specs.append(pl.BlockSpec((1, Op), lambda c: (0, 0)))              # b_fc
    args.append(prepared['fc']['b'])

    scratch = [pltpu.VMEM((num_layers, Bp, Hp), jnp.float32),   # carried h, per layer
               pltpu.VMEM((blk, 3 * Hp), jnp.float32)]          # chunk gate pre-acts
    if num_layers > 1:
        scratch.append(pltpu.VMEM((blk, Hp), jnp.float32))      # inter-layer chunk acts

    est = _fused_vmem_bytes(T, Bp, Hp, Ip0, Op, num_layers, itemsize)
    kernel = _make_fused_kernel(num_layers, T, Bp, Hp, seq, needs_mask, mxu_dtype, unroll)

    out = pl.pallas_call(
        kernel,
        out_shape=jax.ShapeDtypeStruct((Bp, Op), jnp.float32),
        grid_spec=pltpu.PrefetchScalarGridSpec(
            num_scalar_prefetch=0,
            grid=(nchunks,),
            in_specs=in_specs,
            out_specs=pl.BlockSpec((Bp, Op), lambda c: (0, 0)),  # resident; written last
            scratch_shapes=scratch),
        compiler_params=pltpu.CompilerParams(
            dimension_semantics=("arbitrary",),
            vmem_limit_bytes=_vmem_limit(est, budget)),
    )(*args)
    return out[:batch, :output_size]


# ----------------------------------------------------------------------------
# Deterministic PyTorch-style init (uniform(-1/sqrt(H), 1/sqrt(H)))
# ----------------------------------------------------------------------------
def init_params(key, input_size, hidden_size, num_layers, output_size):
    k = 1.0 / math.sqrt(hidden_size)
    gru_params = []
    for layer in range(num_layers):
        in_dim = input_size if layer == 0 else hidden_size
        key, k1, k2, k3, k4 = jax.random.split(key, 5)
        wih = jax.random.uniform(k1, (3 * hidden_size, in_dim), jnp.float32, -k, k)
        whh = jax.random.uniform(k2, (3 * hidden_size, hidden_size), jnp.float32, -k, k)
        bih = jax.random.uniform(k3, (3 * hidden_size,), jnp.float32, -k, k)
        bhh = jax.random.uniform(k4, (3 * hidden_size,), jnp.float32, -k, k)
        gru_params.append((wih, whh, bih, bhh))
    key, k5, k6 = jax.random.split(key, 3)
    wfc = jax.random.uniform(k5, (output_size, hidden_size), jnp.float32, -k, k)
    bfc = jax.random.uniform(k6, (output_size,), jnp.float32, -k, k)
    return {'gru': gru_params, 'fc': (wfc, bfc)}


# ----------------------------------------------------------------------------
# Pure-JAX reference (same math as torch.nn.GRU + Linear) for correctness checks
# ----------------------------------------------------------------------------
def reference_forward(params, x):
    h_in = jnp.transpose(x, (1, 0, 2)).astype(jnp.float32)
    h_last = None
    for (wih, whh, bih, bhh) in params['gru']:
        H = whh.shape[1]

        def step(h, xt, wih=wih, whh=whh, bih=bih, bhh=bhh, H=H):
            gx = xt @ wih.T + bih
            gh = h @ whh.T + bhh
            r = jax.nn.sigmoid(gx[:, :H] + gh[:, :H])
            z = jax.nn.sigmoid(gx[:, H:2 * H] + gh[:, H:2 * H])
            n = jnp.tanh(gx[:, 2 * H:] + r * gh[:, 2 * H:])
            h_new = (1.0 - z) * n + z * h
            return h_new, h_new

        h0 = jnp.zeros((x.shape[0], H), jnp.float32)
        h_last, seq_out = lax.scan(step, h0, h_in)
        h_in = seq_out
    wfc, bfc = params['fc']
    return h_last @ wfc.T + bfc


# ----------------------------------------------------------------------------
if __name__ == "__main__":
    batch, seq = 2, 8
    input_size, hidden_size, num_layers, output_size = 16, 32, 2, 4

    key = jax.random.PRNGKey(0)
    kx, kx2, kp = jax.random.split(key, 3)
    x = jax.random.normal(kx, (batch, seq, input_size), jnp.float32)
    params = init_params(kp, input_size, hidden_size, num_layers, output_size)
    ref = reference_forward(params, x)

    # All-f32 path, tight check.
    prep_f32 = prepare_params(params, mxu_dtype=jnp.float32)
    out = jax.block_until_ready(
        gru_motion_classifier_forward(prep_f32, x, output_size=output_size))
    assert out.shape == (batch, output_size), out.shape
    assert jnp.allclose(out, ref, atol=1e-2, rtol=1e-2), (out, ref)

    # Default bf16 MXU path (all generations), loose sanity check.
    prep_bf16 = prepare_params(params)
    out_bf = jax.block_until_ready(
        gru_motion_classifier_forward(prep_bf16, x, output_size=output_size))
    assert jnp.allclose(out_bf, ref, atol=1e-1, rtol=1e-1), (out_bf, ref)

    # Padded / masked path (seq not a multiple of the chunk, odd batch).
    x2 = jax.random.normal(kx2, (3, 7, input_size), jnp.float32)
    ref2 = reference_forward(params, x2)
    out2 = jax.block_until_ready(
        gru_motion_classifier_forward(prep_f32, x2, output_size=output_size))
    assert jnp.allclose(out2, ref2, atol=1e-2, rtol=1e-2), (out2, ref2)

    print("KERNEL_OK")
</pallas_src>

<mosaic_0001>
module attributes {stable_mosaic.version = 11 : i64} {
  func.func @kernel(%arg0: i32, %arg1: memref<64x128xf32, #tpu.memory_space<vmem>>, %arg2: memref<128x384xf32, #tpu.memory_space<vmem>>, %arg3: memref<128x384xf32, #tpu.memory_space<vmem>>, %arg4: memref<1x128xf32, #tpu.memory_space<vmem>>, %arg5: memref<128x384xf32, #tpu.memory_space<vmem>>, %arg6: memref<128x384xf32, #tpu.memory_space<vmem>>, %arg7: memref<1x384xf32, #tpu.memory_space<vmem>>, %arg8: memref<1x128xf32, #tpu.memory_space<vmem>>, %arg9: memref<128x128xf32, #tpu.memory_space<vmem>>, %arg10: memref<1x128xf32, #tpu.memory_space<vmem>>, %arg11: memref<8x128xf32, #tpu.memory_space<vmem>>, %arg12: memref<2x8x128xf32, #tpu.memory_space<vmem>>, %arg13: memref<64x384xf32, #tpu.memory_space<vmem>>, %arg14: memref<64x128xf32, #tpu.memory_space<vmem>>) attributes {dimension_semantics = [#tpu.dimension_semantics<arbitrary>], iteration_bounds = array<i64: 1>, scalar_prefetch = 0 : i64, scratch_operands = 3 : i64, tpu.core_type = #tpu.core_type<tc>, window_params = [{transform_indices = @transform_0, window_bounds = array<i64: 64, 128>}, {pipeline_mode = #tpu.pipeline_mode<synchronous>, transform_indices = @transform_1, window_bounds = array<i64: 128, 384>}, {pipeline_mode = #tpu.pipeline_mode<synchronous>, transform_indices = @transform_2, window_bounds = array<i64: 128, 384>}, {pipeline_mode = #tpu.pipeline_mode<synchronous>, transform_indices = @transform_3, window_bounds = array<i64: 1, 128>}, {pipeline_mode = #tpu.pipeline_mode<synchronous>, transform_indices = @transform_4, window_bounds = array<i64: 128, 384>}, {pipeline_mode = #tpu.pipeline_mode<synchronous>, transform_indices = @transform_5, window_bounds = array<i64: 128, 384>}, {pipeline_mode = #tpu.pipeline_mode<synchronous>, transform_indices = @transform_6, window_bounds = array<i64: 1, 384>}, {pipeline_mode = #tpu.pipeline_mode<synchronous>, transform_indices = @transform_7, window_bounds = array<i64: 1, 128>}, {pipeline_mode = #tpu.pipeline_mode<synchronous>, transform_indices = @transform_8, window_bounds = array<i64: 128, 128>}, {pipeline_mode = #tpu.pipeline_mode<synchronous>, transform_indices = @transform_9, window_bounds = array<i64: 1, 128>}, {pipeline_mode = #tpu.pipeline_mode<synchronous>, transform_indices = @transform_10, window_bounds = array<i64: 8, 128>}]} {
    %c0_i32 = arith.constant 0 : i32
    %0 = arith.cmpi eq, %arg0, %c0_i32 : i32
    %1 = arith.extui %0 : i1 to i32
    %c0_i32_0 = arith.constant 0 : i32
    %2 = arith.cmpi ne, %1, %c0_i32_0 : i32
    scf.if %2 {
      %cst_178 = arith.constant 0.000000e+00 : f32
      %577 = vector.broadcast %cst_178 : f32 to vector<2x8x128xf32>
      %c0_179 = arith.constant 0 : index
      %c0_180 = arith.constant 0 : index
      %c0_181 = arith.constant 0 : index
      %578 = vector.load %arg12[%c0_179, %c0_180, %c0_181] : memref<2x8x128xf32, #tpu.memory_space<vmem>>, vector<2x8x128xf32>
      tpu.vector_store %arg12[%c0_179, %c0_180, %c0_181], %577 {strides = array<i32>} : memref<2x8x128xf32, #tpu.memory_space<vmem>>, vector<2x8x128xf32>,
    } else {
    }
    %c0 = arith.constant 0 : index
    %c0_1 = arith.constant 0 : index
    %3 = vector.load %arg1[%c0, %c0_1] : memref<64x128xf32, #tpu.memory_space<vmem>>, vector<64x128xf32>
    %c0_2 = arith.constant 0 : index
    %c0_3 = arith.constant 0 : index
    %4 = vector.load %arg2[%c0_2, %c0_3] : memref<128x384xf32, #tpu.memory_space<vmem>>, vector<128x384xf32>
    %cst = arith.constant dense<0.000000e+00> : vector<64x384xf32>
    %5 = tpu.matmul %3, %4, %cst {dimension_numbers = #tpu.dot_dimension_numbers<[1], [0], [0], [1], [0, 0, 1, 1], [], []>} : vector<64x128xf32>, vector<128x384xf32>, vector<64x384xf32> -> vector<64x384xf32>
    %c0_4 = arith.constant 0 : index
    %c0_5 = arith.constant 0 : index
    %6 = vector.load %arg13[%c0_4, %c0_5] : memref<64x384xf32, #tpu.memory_space<vmem>>, vector<64x384xf32>
    tpu.vector_store %arg13[%c0_4, %c0_5], %5 {strides = array<i32>} : memref<64x384xf32, #tpu.memory_space<vmem>>, vector<64x384xf32>,
    %c0_6 = arith.constant 0 : index
    %c0_7 = arith.constant 0 : index
    %7 = vector.load %arg4[%c0_6, %c0_7] : memref<1x128xf32, #tpu.memory_space<vmem>>, vector<1x128xf32>
    %8 = vector.shape_cast %7 : vector<1x128xf32> to vector<1x128xf32>
    %9 = vector.broadcast %8 : vector<1x128xf32> to vector<8x128xf32>
    %c0_8 = arith.constant 0 : index
    %c0_9 = arith.constant 0 : index
    %c0_10 = arith.constant 0 : index
    %10 = vector.load %arg12[%c0_8, %c0_9, %c0_10] : memref<2x8x128xf32, #tpu.memory_space<vmem>>, vector<1x8x128xf32>
    %11 = vector.shape_cast %10 : vector<1x8x128xf32> to vector<8x128xf32>
    %c0_i32_11 = arith.constant 0 : i32
    %c8_i32 = arith.constant 8 : i32
    %12 = arith.muli %c0_i32_11, %c8_i32 : i32
    %13 = tpu.assume_multiple %12, 8 : i32
    %14 = arith.index_cast %13 : i32 to index
    %c0_12 = arith.constant 0 : index
    %15 = vector.load %arg13[%14, %c0_12] : memref<64x384xf32, #tpu.memory_space<vmem>>, vector<8x384xf32>
    %c0_13 = arith.constant 0 : index
    %c0_14 = arith.constant 0 : index
    %16 = vector.load %arg3[%c0_13, %c0_14] : memref<128x384xf32, #tpu.memory_space<vmem>>, vector<128x384xf32>
    %cst_15 = arith.constant dense<0.000000e+00> : vector<8x384xf32>
    %17 = tpu.matmul %11, %16, %cst_15 {dimension_numbers = #tpu.dot_dimension_numbers<[1], [0], [0], [1], [0, 0, 1, 1], [], []>} : vector<8x128xf32>, vector<128x384xf32>, vector<8x384xf32> -> vector<8x384xf32>
    %18 = vector.extract_strided_slice %15 {offsets = [0, 0], sizes = [8, 128], strides = [1, 1]} : vector<8x384xf32> to vector<8x128xf32>
    %19 = vector.extract_strided_slice %17 {offsets = [0, 0], sizes = [8, 128], strides = [1, 1]} : vector<8x384xf32> to vector<8x128xf32>
    %20 = arith.addf %18, %19 : vector<8x128xf32>
    %21 = arith.negf %20 : vector<8x128xf32>
    %22 = math.exp %21 : vector<8x128xf32>
    %cst_16 = arith.constant 1.000000e+00 : f32
    %23 = vector.broadcast %cst_16 : f32 to vector<8x128xf32>
    %24 = arith.addf %23, %22 : vector<8x128xf32>
    %25 = arith.divf %23, %24 : vector<8x128xf32>
    %26 = vector.extract_strided_slice %15 {offsets = [0, 128], sizes = [8, 128], strides = [1, 1]} : vector<8x384xf32> to vector<8x128xf32>
    %27 = vector.extract_strided_slice %17 {offsets = [0, 128], sizes = [8, 128], strides = [1, 1]} : vector<8x384xf32> to vector<8x128xf32>
    %28 = arith.addf %26, %27 : vector<8x128xf32>
    %29 = arith.negf %28 : vector<8x128xf32>
    %30 = math.exp %29 : vector<8x128xf32>
    %cst_17 = arith.constant 1.000000e+00 : f32
    %31 = vector.broadcast %cst_17 : f32 to vector<8x128xf32>
    %32 = arith.addf %31, %30 : vector<8x128xf32>
    %33 = arith.divf %31, %32 : vector<8x128xf32>
    %34 = vector.extract_strided_slice %15 {offsets = [0, 256], sizes = [8, 128], strides = [1, 1]} : vector<8x384xf32> to vector<8x128xf32>
    %35 = vector.extract_strided_slice %17 {offsets = [0, 256], sizes = [8, 128], strides = [1, 1]} : vector<8x384xf32> to vector<8x128xf32>
    %36 = arith.addf %35, %9 : vector<8x128xf32>
    %37 = arith.mulf %25, %36 : vector<8x128xf32>
    %38 = arith.addf %34, %37 : vector<8x128xf32>
    %39 = math.tanh %38 : vector<8x128xf32>
    %cst_18 = arith.constant 1.000000e+00 : f32
    %40 = vector.broadcast %cst_18 : f32 to vector<8x128xf32>
    %41 = arith.subf %40, %33 : vector<8x128xf32>
    %42 = arith.mulf %41, %39 : vector<8x128xf32>
    %43 = arith.mulf %33, %11 : vector<8x128xf32>
    %44 = arith.addf %42, %43 : vector<8x128xf32>
    %45 = arith.index_cast %13 : i32 to index
    %c0_19 = arith.constant 0 : index
    %46 = vector.load %arg14[%45, %c0_19] : memref<64x128xf32, #tpu.memory_space<vmem>>, vector<8x128xf32>
    tpu.vector_store %arg14[%45, %c0_19], %44 {strides = array<i32>} : memref<64x128xf32, #tpu.memory_space<vmem>>, vector<8x128xf32>,
    %c1_i32 = arith.constant 1 : i32
    %c8_i32_20 = arith.constant 8 : i32
    %47 = arith.muli %c1_i32, %c8_i32_20 : i32
    %48 = tpu.assume_multiple %47, 8 : i32
    %49 = arith.index_cast %48 : i32 to index
    %c0_21 = arith.constant 0 : index
    %50 = vector.load %arg13[%49, %c0_21] : memref<64x384xf32, #tpu.memory_space<vmem>>, vector<8x384xf32>
    %c0_22 = arith.constant 0 : index
    %c0_23 = arith.constant 0 : index
    %51 = vector.load %arg3[%c0_22, %c0_23] : memref<128x384xf32, #tpu.memory_space<vmem>>, vector<128x384xf32>
    %cst_24 = arith.constant dense<0.000000e+00> : vector<8x384xf32>
    %52 = tpu.matmul %44, %51, %cst_24 {dimension_numbers = #tpu.dot_dimension_numbers<[1], [0], [0], [1], [0, 0, 1, 1], [], []>} : vector<8x128xf32>, vector<128x384xf32>, vector<8x384xf32> -> vector<8x384xf32>
    %53 = vector.extract_strided_slice %50 {offsets = [0, 0], sizes = [8, 128], strides = [1, 1]} : vector<8x384xf32> to vector<8x128xf32>
    %54 = vector.extract_strided_slice %52 {offsets = [0, 0], sizes = [8, 128], strides = [1, 1]} : vector<8x384xf32> to vector<8x128xf32>
    %55 = arith.addf %53, %54 : vector<8x128xf32>
    %56 = arith.negf %55 : vector<8x128xf32>
    %57 = math.exp %56 : vector<8x128xf32>
    %cst_25 = arith.constant 1.000000e+00 : f32
    %58 = vector.broadcast %cst_25 : f32 to vector<8x128xf32>
    %59 = arith.addf %58, %57 : vector<8x128xf32>
    %60 = arith.divf %58, %59 : vector<8x128xf32>
    %61 = vector.extract_strided_slice %50 {offsets = [0, 128], sizes = [8, 128], strides = [1, 1]} : vector<8x384xf32> to vector<8x128xf32>
    %62 = vector.extract_strided_slice %52 {offsets = [0, 128], sizes = [8, 128], strides = [1, 1]} : vector<8x384xf32> to vector<8x128xf32>
    %63 = arith.addf %61, %62 : vector<8x128xf32>
    %64 = arith.negf %63 : vector<8x128xf32>
    %65 = math.exp %64 : vector<8x128xf32>
    %cst_26 = arith.constant 1.000000e+00 : f32
    %66 = vector.broadcast %cst_26 : f32 to vector<8x128xf32>
    %67 = arith.addf %66, %65 : vector<8x128xf32>
    %68 = arith.divf %66, %67 : vector<8x128xf32>
    %69 = vector.extract_strided_slice %50 {offsets = [0, 256], sizes = [8, 128], strides = [1, 1]} : vector<8x384xf32> to vector<8x128xf32>
    %70 = vector.extract_strided_slice %52 {offsets = [0, 256], sizes = [8, 128], strides = [1, 1]} : vector<8x384xf32> to vector<8x128xf32>
    %71 = arith.addf %70, %9 : vector<8x128xf32>
    %72 = arith.mulf %60, %71 : vector<8x128xf32>
    %73 = arith.addf %69, %72 : vector<8x128xf32>
    %74 = math.tanh %73 : vector<8x128xf32>
    %cst_27 = arith.constant 1.000000e+00 : f32
    %75 = vector.broadcast %cst_27 : f32 to vector<8x128xf32>
    %76 = arith.subf %75, %68 : vector<8x128xf32>
    %77 = arith.mulf %76, %74 : vector<8x128xf32>
    %78 = arith.mulf %68, %44 : vector<8x128xf32>
    %79 = arith.addf %77, %78 : vector<8x128xf32>
    %80 = arith.index_cast %48 : i32 to index
    %c0_28 = arith.constant 0 : index
    %81 = vector.load %arg14[%80, %c0_28] : memref<64x128xf32, #tpu.memory_space<vmem>>, vector<8x128xf32>
    tpu.vector_store %arg14[%80, %c0_28], %79 {strides = array<i32>} : memref<64x128xf32, #tpu.memory_space<vmem>>, vector<8x128xf32>,
    %c2_i32 = arith.constant 2 : i32
    %c8_i32_29 = arith.constant 8 : i32
    %82 = arith.muli %c2_i32, %c8_i32_29 : i32
    %83 = tpu.assume_multiple %82, 8 : i32
    %84 = arith.index_cast %83 : i32 to index
    %c0_30 = arith.constant 0 : index
    %85 = vector.load %arg13[%84, %c0_30] : memref<64x384xf32, #tpu.memory_space<vmem>>, vector<8x384xf32>
    %c0_31 = arith.constant 0 : index
    %c0_32 = arith.constant 0 : index
    %86 = vector.load %arg3[%c0_31, %c0_32] : memref<128x384xf32, #tpu.memory_space<vmem>>, vector<128x384xf32>
    %cst_33 = arith.constant dense<0.000000e+00> : vector<8x384xf32>
    %87 = tpu.matmul %79, %86, %cst_33 {dimension_numbers = #tpu.dot_dimension_numbers<[1], [0], [0], [1], [0, 0, 1, 1], [], []>} : vector<8x128xf32>, vector<128x384xf32>, vector<8x384xf32> -> vector<8x384xf32>
    %88 = vector.extract_strided_slice %85 {offsets = [0, 0], sizes = [8, 128], strides = [1, 1]} : vector<8x384xf32> to vector<8x128xf32>
    %89 = vector.extract_strided_slice %87 {offsets = [0, 0], sizes = [8, 128], strides = [1, 1]} : vector<8x384xf32> to vector<8x128xf32>
    %90 = arith.addf %88, %89 : vector<8x128xf32>
    %91 = arith.negf %90 : vector<8x128xf32>
    %92 = math.exp %91 : vector<8x128xf32>
    %cst_34 = arith.constant 1.000000e+00 : f32
    %93 = vector.broadcast %cst_34 : f32 to vector<8x128xf32>
    %94 = arith.addf %93, %92 : vector<8x128xf32>
    %95 = arith.divf %93, %94 : vector<8x128xf32>
    %96 = vector.extract_strided_slice %85 {offsets = [0, 128], sizes = [8, 128], strides = [1, 1]} : vector<8x384xf32> to vector<8x128xf32>
    %97 = vector.extract_strided_slice %87 {offsets = [0, 128], sizes = [8, 128], strides = [1, 1]} : vector<8x384xf32> to vector<8x128xf32>
    %98 = arith.addf %96, %97 : vector<8x128xf32>
    %99 = arith.negf %98 : vector<8x128xf32>
    %100 = math.exp %99 : vector<8x128xf32>
    %cst_35 = arith.constant 1.000000e+00 : f32
    %101 = vector.broadcast %cst_35 : f32 to vector<8x128xf32>
    %102 = arith.addf %101, %100 : vector<8x128xf32>
    %103 = arith.divf %101, %102 : vector<8x128xf32>
    %104 = vector.extract_strided_slice %85 {offsets = [0, 256], sizes = [8, 128], strides = [1, 1]} : vector<8x384xf32> to vector<8x128xf32>
    %105 = vector.extract_strided_slice %87 {offsets = [0, 256], sizes = [8, 128], strides = [1, 1]} : vector<8x384xf32> to vector<8x128xf32>
    %106 = arith.addf %105, %9 : vector<8x128xf32>
    %107 = arith.mulf %95, %106 : vector<8x128xf32>
    %108 = arith.addf %104, %107 : vector<8x128xf32>
    %109 = math.tanh %108 : vector<8x128xf32>
    %cst_36 = arith.constant 1.000000e+00 : f32
    %110 = vector.broadcast %cst_36 : f32 to vector<8x128xf32>
    %111 = arith.subf %110, %103 : vector<8x128xf32>
    %112 = arith.mulf %111, %109 : vector<8x128xf32>
    %113 = arith.mulf %103, %79 : vector<8x128xf32>
    %114 = arith.addf %112, %113 : vector<8x128xf32>
    %115 = arith.index_cast %83 : i32 to index
    %c0_37 = arith.constant 0 : index
    %116 = vector.load %arg14[%115, %c0_37] : memref<64x128xf32, #tpu.memory_space<vmem>>, vector<8x128xf32>
    tpu.vector_store %arg14[%115, %c0_37], %114 {strides = array<i32>} : memref<64x128xf32, #tpu.memory_space<vmem>>, vector<8x128xf32>,
    %c3_i32 = arith.constant 3 : i32
    %c8_i32_38 = arith.constant 8 : i32
    %117 = arith.muli %c3_i32, %c8_i32_38 : i32
    %118 = tpu.assume_multiple %117, 8 : i32
    %119 = arith.index_cast %118 : i32 to index
    %c0_39 = arith.constant 0 : index
    %120 = vector.load %arg13[%119, %c0_39] : memref<64x384xf32, #tpu.memory_space<vmem>>, vector<8x384xf32>
    %c0_40 = arith.constant 0 : index
    %c0_41 = arith.constant 0 : index
    %121 = vector.load %arg3[%c0_40, %c0_41] : memref<128x384xf32, #tpu.memory_space<vmem>>, vector<128x384xf32>
    %cst_42 = arith.constant dense<0.000000e+00> : vector<8x384xf32>
    %122 = tpu.matmul %114, %121, %cst_42 {dimension_numbers = #tpu.dot_dimension_numbers<[1], [0], [0], [1], [0, 0, 1, 1], [], []>} : vector<8x128xf32>, vector<128x384xf32>, vector<8x384xf32> -> vector<8x384xf32>
    %123 = vector.extract_strided_slice %120 {offsets = [0, 0], sizes = [8, 128], strides = [1, 1]} : vector<8x384xf32> to vector<8x128xf32>
    %124 = vector.extract_strided_slice %122 {offsets = [0, 0], sizes = [8, 128], strides = [1, 1]} : vector<8x384xf32> to vector<8x128xf32>
    %125 = arith.addf %123, %124 : vector<8x128xf32>
    %126 = arith.negf %125 : vector<8x128xf32>
    %127 = math.exp %126 : vector<8x128xf32>
    %cst_43 = arith.constant 1.000000e+00 : f32
    %128 = vector.broadcast %cst_43 : f32 to vector<8x128xf32>
    %129 = arith.addf %128, %127 : vector<8x128xf32>
    %130 = arith.divf %128, %129 : vector<8x128xf32>
    %131 = vector.extract_strided_slice %120 {offsets = [0, 128], sizes = [8, 128], strides = [1, 1]} : vector<8x384xf32> to vector<8x128xf32>
    %132 = vector.extract_strided_slice %122 {offsets = [0, 128], sizes = [8, 128], strides = [1, 1]} : vector<8x384xf32> to vector<8x128xf32>
    %133 = arith.addf %131, %132 : vector<8x128xf32>
    %134 = arith.negf %133 : vector<8x128xf32>
    %135 = math.exp %134 : vector<8x128xf32>
    %cst_44 = arith.constant 1.000000e+00 : f32
    %136 = vector.broadcast %cst_44 : f32 to vector<8x128xf32>
    %137 = arith.addf %136, %135 : vector<8x128xf32>
    %138 = arith.divf %136, %137 : vector<8x128xf32>
    %139 = vector.extract_strided_slice %120 {offsets = [0, 256], sizes = [8, 128], strides = [1, 1]} : vector<8x384xf32> to vector<8x128xf32>
    %140 = vector.extract_strided_slice %122 {offsets = [0, 256], sizes = [8, 128], strides = [1, 1]} : vector<8x384xf32> to vector<8x128xf32>
    %141 = arith.addf %140, %9 : vector<8x128xf32>
    %142 = arith.mulf %130, %141 : vector<8x128xf32>
    %143 = arith.addf %139, %142 : vector<8x128xf32>
    %144 = math.tanh %143 : vector<8x128xf32>
    %cst_45 = arith.constant 1.000000e+00 : f32
    %145 = vector.broadcast %cst_45 : f32 to vector<8x128xf32>
    %146 = arith.subf %145, %138 : vector<8x128xf32>
    %147 = arith.mulf %146, %144 : vector<8x128xf32>
    %148 = arith.mulf %138, %114 : vector<8x128xf32>
    %149 = arith.addf %147, %148 : vector<8x128xf32>
    %150 = arith.index_cast %118 : i32 to index
    %c0_46 = arith.constant 0 : index
    %151 = vector.load %arg14[%150, %c0_46] : memref<64x128xf32, #tpu.memory_space<vmem>>, vector<8x128xf32>
    tpu.vector_store %arg14[%150, %c0_46], %149 {strides = array<i32>} : memref<64x128xf32, #tpu.memory_space<vmem>>, vector<8x128xf32>,
    %c4_i32 = arith.constant 4 : i32
    %c8_i32_47 = arith.constant 8 : i32
    %152 = arith.muli %c4_i32, %c8_i32_47 : i32
    %153 = tpu.assume_multiple %152, 8 : i32
    %154 = arith.index_cast %153 : i32 to index
    %c0_48 = arith.constant 0 : index
    %155 = vector.load %arg13[%154, %c0_48] : memref<64x384xf32, #tpu.memory_space<vmem>>, vector<8x384xf32>
    %c0_49 = arith.constant 0 : index
    %c0_50 = arith.constant 0 : index
    %156 = vector.load %arg3[%c0_49, %c0_50] : memref<128x384xf32, #tpu.memory_space<vmem>>, vector<128x384xf32>
    %cst_51 = arith.constant dense<0.000000e+00> : vector<8x384xf32>
    %157 = tpu.matmul %149, %156, %cst_51 {dimension_numbers = #tpu.dot_dimension_numbers<[1], [0], [0], [1], [0, 0, 1, 1], [], []>} : vector<8x128xf32>, vector<128x384xf32>, vector<8x384xf32> -> vector<8x384xf32>
    %158 = vector.extract_strided_slice %155 {offsets = [0, 0], sizes = [8, 128], strides = [1, 1]} : vector<8x384xf32> to vector<8x128xf32>
    %159 = vector.extract_strided_slice %157 {offsets = [0, 0], sizes = [8, 128], strides = [1, 1]} : vector<8x384xf32> to vector<8x128xf32>
    %160 = arith.addf %158, %159 : vector<8x128xf32>
    %161 = arith.negf %160 : vector<8x128xf32>
    %162 = math.exp %161 : vector<8x128xf32>
    %cst_52 = arith.constant 1.000000e+00 : f32
    %163 = vector.broadcast %cst_52 : f32 to vector<8x128xf32>
    %164 = arith.addf %163, %162 : vector<8x128xf32>
    %165 = arith.divf %163, %164 : vector<8x128xf32>
    %166 = vector.extract_strided_slice %155 {offsets = [0, 128], sizes = [8, 128], strides = [1, 1]} : vector<8x384xf32> to vector<8x128xf32>
    %167 = vector.extract_strided_slice %157 {offsets = [0, 128], sizes = [8, 128], strides = [1, 1]} : vector<8x384xf32> to vector<8x128xf32>
    %168 = arith.addf %166, %167 : vector<8x128xf32>
    %169 = arith.negf %168 : vector<8x128xf32>
    %170 = math.exp %169 : vector<8x128xf32>
    %cst_53 = arith.constant 1.000000e+00 : f32
    %171 = vector.broadcast %cst_53 : f32 to vector<8x128xf32>
    %172 = arith.addf %171, %170 : vector<8x128xf32>
    %173 = arith.divf %171, %172 : vector<8x128xf32>
    %174 = vector.extract_strided_slice %155 {offsets = [0, 256], sizes = [8, 128], strides = [1, 1]} : vector<8x384xf32> to vector<8x128xf32>
    %175 = vector.extract_strided_slice %157 {offsets = [0, 256], sizes = [8, 128], strides = [1, 1]} : vector<8x384xf32> to vector<8x128xf32>
    %176 = arith.addf %175, %9 : vector<8x128xf32>
    %177 = arith.mulf %165, %176 : vector<8x128xf32>
    %178 = arith.addf %174, %177 : vector<8x128xf32>
    %179 = math.tanh %178 : vector<8x128xf32>
    %cst_54 = arith.constant 1.000000e+00 : f32
    %180 = vector.broadcast %cst_54 : f32 to vector<8x128xf32>
    %181 = arith.subf %180, %173 : vector<8x128xf32>
    %182 = arith.mulf %181, %179 : vector<8x128xf32>
    %183 = arith.mulf %173, %149 : vector<8x128xf32>
    %184 = arith.addf %182, %183 : vector<8x128xf32>
    %185 = arith.index_cast %153 : i32 to index
    %c0_55 = arith.constant 0 : index
    %186 = vector.load %arg14[%185, %c0_55] : memref<64x128xf32, #tpu.memory_space<vmem>>, vector<8x128xf32>
    tpu.vector_store %arg14[%185, %c0_55], %184 {strides = array<i32>} : memref<64x128xf32, #tpu.memory_space<vmem>>, vector<8x128xf32>,
    %c5_i32 = arith.constant 5 : i32
    %c8_i32_56 = arith.constant 8 : i32
    %187 = arith.muli %c5_i32, %c8_i32_56 : i32
    %188 = tpu.assume_multiple %187, 8 : i32
    %189 = arith.index_cast %188 : i32 to index
    %c0_57 = arith.constant 0 : index
    %190 = vector.load %arg13[%189, %c0_57] : memref<64x384xf32, #tpu.memory_space<vmem>>, vector<8x384xf32>
    %c0_58 = arith.constant 0 : index
    %c0_59 = arith.constant 0 : index
    %191 = vector.load %arg3[%c0_58, %c0_59] : memref<128x384xf32, #tpu.memory_space<vmem>>, vector<128x384xf32>
    %cst_60 = arith.constant dense<0.000000e+00> : vector<8x384xf32>
    %192 = tpu.matmul %184, %191, %cst_60 {dimension_numbers = #tpu.dot_dimension_numbers<[1], [0], [0], [1], [0, 0, 1, 1], [], []>} : vector<8x128xf32>, vector<128x384xf32>, vector<8x384xf32> -> vector<8x384xf32>
    %193 = vector.extract_strided_slice %190 {offsets = [0, 0], sizes = [8, 128], strides = [1, 1]} : vector<8x384xf32> to vector<8x128xf32>
    %194 = vector.extract_strided_slice %192 {offsets = [0, 0], sizes = [8, 128], strides = [1, 1]} : vector<8x384xf32> to vector<8x128xf32>
    %195 = arith.addf %193, %194 : vector<8x128xf32>
    %196 = arith.negf %195 : vector<8x128xf32>
    %197 = math.exp %196 : vector<8x128xf32>
    %cst_61 = arith.constant 1.000000e+00 : f32
    %198 = vector.broadcast %cst_61 : f32 to vector<8x128xf32>
    %199 = arith.addf %198, %197 : vector<8x128xf32>
    %200 = arith.divf %198, %199 : vector<8x128xf32>
    %201 = vector.extract_strided_slice %190 {offsets = [0, 128], sizes = [8, 128], strides = [1, 1]} : vector<8x384xf32> to vector<8x128xf32>
    %202 = vector.extract_strided_slice %192 {offsets = [0, 128], sizes = [8, 128], strides = [1, 1]} : vector<8x384xf32> to vector<8x128xf32>
    %203 = arith.addf %201, %202 : vector<8x128xf32>
    %204 = arith.negf %203 : vector<8x128xf32>
    %205 = math.exp %204 : vector<8x128xf32>
    %cst_62 = arith.constant 1.000000e+00 : f32
    %206 = vector.broadcast %cst_62 : f32 to vector<8x128xf32>
    %207 = arith.addf %206, %205 : vector<8x128xf32>
    %208 = arith.divf %206, %207 : vector<8x128xf32>
    %209 = vector.extract_strided_slice %190 {offsets = [0, 256], sizes = [8, 128], strides = [1, 1]} : vector<8x384xf32> to vector<8x128xf32>
    %210 = vector.extract_strided_slice %192 {offsets = [0, 256], sizes = [8, 128], strides = [1, 1]} : vector<8x384xf32> to vector<8x128xf32>
    %211 = arith.addf %210, %9 : vector<8x128xf32>
    %212 = arith.mulf %200, %211 : vector<8x128xf32>
    %213 = arith.addf %209, %212 : vector<8x128xf32>
    %214 = math.tanh %213 : vector<8x128xf32>
    %cst_63 = arith.constant 1.000000e+00 : f32
    %215 = vector.broadcast %cst_63 : f32 to vector<8x128xf32>
    %216 = arith.subf %215, %208 : vector<8x128xf32>
    %217 = arith.mulf %216, %214 : vector<8x128xf32>
    %218 = arith.mulf %208, %184 : vector<8x128xf32>
    %219 = arith.addf %217, %218 : vector<8x128xf32>
    %220 = arith.index_cast %188 : i32 to index
    %c0_64 = arith.constant 0 : index
    %221 = vector.load %arg14[%220, %c0_64] : memref<64x128xf32, #tpu.memory_space<vmem>>, vector<8x128xf32>
    tpu.vector_store %arg14[%220, %c0_64], %219 {strides = array<i32>} : memref<64x128xf32, #tpu.memory_space<vmem>>, vector<8x128xf32>,
    %c6_i32 = arith.constant 6 : i32
    %c8_i32_65 = arith.constant 8 : i32
    %222 = arith.muli %c6_i32, %c8_i32_65 : i32
    %223 = tpu.assume_multiple %222, 8 : i32
    %224 = arith.index_cast %223 : i32 to index
    %c0_66 = arith.constant 0 : index
    %225 = vector.load %arg13[%224, %c0_66] : memref<64x384xf32, #tpu.memory_space<vmem>>, vector<8x384xf32>
    %c0_67 = arith.constant 0 : index
    %c0_68 = arith.constant 0 : index
    %226 = vector.load %arg3[%c0_67, %c0_68] : memref<128x384xf32, #tpu.memory_space<vmem>>, vector<128x384xf32>
    %cst_69 = arith.constant dense<0.000000e+00> : vector<8x384xf32>
    %227 = tpu.matmul %219, %226, %cst_69 {dimension_numbers = #tpu.dot_dimension_numbers<[1], [0], [0], [1], [0, 0, 1, 1], [], []>} : vector<8x128xf32>, vector<128x384xf32>, vector<8x384xf32> -> vector<8x384xf32>
    %228 = vector.extract_strided_slice %225 {offsets = [0, 0], sizes = [8, 128], strides = [1, 1]} : vector<8x384xf32> to vector<8x128xf32>
    %229 = vector.extract_strided_slice %227 {offsets = [0, 0], sizes = [8, 128], strides = [1, 1]} : vector<8x384xf32> to vector<8x128xf32>
    %230 = arith.addf %228, %229 : vector<8x128xf32>
    %231 = arith.negf %230 : vector<8x128xf32>
    %232 = math.exp %231 : vector<8x128xf32>
    %cst_70 = arith.constant 1.000000e+00 : f32
    %233 = vector.broadcast %cst_70 : f32 to vector<8x128xf32>
    %234 = arith.addf %233, %232 : vector<8x128xf32>
    %235 = arith.divf %233, %234 : vector<8x128xf32>
    %236 = vector.extract_strided_slice %225 {offsets = [0, 128], sizes = [8, 128], strides = [1, 1]} : vector<8x384xf32> to vector<8x128xf32>
    %237 = vector.extract_strided_slice %227 {offsets = [0, 128], sizes = [8, 128], strides = [1, 1]} : vector<8x384xf32> to vector<8x128xf32>
    %238 = arith.addf %236, %237 : vector<8x128xf32>
    %239 = arith.negf %238 : vector<8x128xf32>
    %240 = math.exp %239 : vector<8x128xf32>
    %cst_71 = arith.constant 1.000000e+00 : f32
    %241 = vector.broadcast %cst_71 : f32 to vector<8x128xf32>
    %242 = arith.addf %241, %240 : vector<8x128xf32>
    %243 = arith.divf %241, %242 : vector<8x128xf32>
    %244 = vector.extract_strided_slice %225 {offsets = [0, 256], sizes = [8, 128], strides = [1, 1]} : vector<8x384xf32> to vector<8x128xf32>
    %245 = vector.extract_strided_slice %227 {offsets = [0, 256], sizes = [8, 128], strides = [1, 1]} : vector<8x384xf32> to vector<8x128xf32>
    %246 = arith.addf %245, %9 : vector<8x128xf32>
    %247 = arith.mulf %235, %246 : vector<8x128xf32>
    %248 = arith.addf %244, %247 : vector<8x128xf32>
    %249 = math.tanh %248 : vector<8x128xf32>
    %cst_72 = arith.constant 1.000000e+00 : f32
    %250 = vector.broadcast %cst_72 : f32 to vector<8x128xf32>
    %251 = arith.subf %250, %243 : vector<8x128xf32>
    %252 = arith.mulf %251, %249 : vector<8x128xf32>
    %253 = arith.mulf %243, %219 : vector<8x128xf32>
    %254 = arith.addf %252, %253 : vector<8x128xf32>
    %255 = arith.index_cast %223 : i32 to index
    %c0_73 = arith.constant 0 : index
    %256 = vector.load %arg14[%255, %c0_73] : memref<64x128xf32, #tpu.memory_space<vmem>>, vector<8x128xf32>
    tpu.vector_store %arg14[%255, %c0_73], %254 {strides = array<i32>} : memref<64x128xf32, #tpu.memory_space<vmem>>, vector<8x128xf32>,
    %c7_i32 = arith.constant 7 : i32
    %c8_i32_74 = arith.constant 8 : i32
    %257 = arith.muli %c7_i32, %c8_i32_74 : i32
    %258 = tpu.assume_multiple %257, 8 : i32
    %259 = arith.index_cast %258 : i32 to index
    %c0_75 = arith.constant 0 : index
    %260 = vector.load %arg13[%259, %c0_75] : memref<64x384xf32, #tpu.memory_space<vmem>>, vector<8x384xf32>
    %c0_76 = arith.constant 0 : index
    %c0_77 = arith.constant 0 : index
    %261 = vector.load %arg3[%c0_76, %c0_77] : memref<128x384xf32, #tpu.memory_space<vmem>>, vector<128x384xf32>
    %cst_78 = arith.constant dense<0.000000e+00> : vector<8x384xf32>
    %262 = tpu.matmul %254, %261, %cst_78 {dimension_numbers = #tpu.dot_dimension_numbers<[1], [0], [0], [1], [0, 0, 1, 1], [], []>} : vector<8x128xf32>, vector<128x384xf32>, vector<8x384xf32> -> vector<8x384xf32>
    %263 = vector.extract_strided_slice %260 {offsets = [0, 0], sizes = [8, 128], strides = [1, 1]} : vector<8x384xf32> to vector<8x128xf32>
    %264 = vector.extract_strided_slice %262 {offsets = [0, 0], sizes = [8, 128], strides = [1, 1]} : vector<8x384xf32> to vector<8x128xf32>
    %265 = arith.addf %263, %264 : vector<8x128xf32>
    %266 = arith.negf %265 : vector<8x128xf32>
    %267 = math.exp %266 : vector<8x128xf32>
    %cst_79 = arith.constant 1.000000e+00 : f32
    %268 = vector.broadcast %cst_79 : f32 to vector<8x128xf32>
    %269 = arith.addf %268, %267 : vector<8x128xf32>
    %270 = arith.divf %268, %269 : vector<8x128xf32>
    %271 = vector.extract_strided_slice %260 {offsets = [0, 128], sizes = [8, 128], strides = [1, 1]} : vector<8x384xf32> to vector<8x128xf32>
    %272 = vector.extract_strided_slice %262 {offsets = [0, 128], sizes = [8, 128], strides = [1, 1]} : vector<8x384xf32> to vector<8x128xf32>
    %273 = arith.addf %271, %272 : vector<8x128xf32>
    %274 = arith.negf %273 : vector<8x128xf32>
    %275 = math.exp %274 : vector<8x128xf32>
    %cst_80 = arith.constant 1.000000e+00 : f32
    %276 = vector.broadcast %cst_80 : f32 to vector<8x128xf32>
    %277 = arith.addf %276, %275 : vector<8x128xf32>
    %278 = arith.divf %276, %277 : vector<8x128xf32>
    %279 = vector.extract_strided_slice %260 {offsets = [0, 256], sizes = [8, 128], strides = [1, 1]} : vector<8x384xf32> to vector<8x128xf32>
    %280 = vector.extract_strided_slice %262 {offsets = [0, 256], sizes = [8, 128], strides = [1, 1]} : vector<8x384xf32> to vector<8x128xf32>
    %281 = arith.addf %280, %9 : vector<8x128xf32>
    %282 = arith.mulf %270, %281 : vector<8x128xf32>
    %283 = arith.addf %279, %282 : vector<8x128xf32>
    %284 = math.tanh %283 : vector<8x128xf32>
    %cst_81 = arith.constant 1.000000e+00 : f32
    %285 = vector.broadcast %cst_81 : f32 to vector<8x128xf32>
    %286 = arith.subf %285, %278 : vector<8x128xf32>
    %287 = arith.mulf %286, %284 : vector<8x128xf32>
    %288 = arith.mulf %278, %254 : vector<8x128xf32>
    %289 = arith.addf %287, %288 : vector<8x128xf32>
    %290 = arith.index_cast %258 : i32 to index
    %c0_82 = arith.constant 0 : index
    %291 = vector.load %arg14[%290, %c0_82] : memref<64x128xf32, #tpu.memory_space<vmem>>, vector<8x128xf32>
    tpu.vector_store %arg14[%290, %c0_82], %289 {strides = array<i32>} : memref<64x128xf32, #tpu.memory_space<vmem>>, vector<8x128xf32>,
    %c8_i32_83 = arith.constant 8 : i32
    %c0_84 = arith.constant 0 : index
    %c0_85 = arith.constant 0 : index
    %c0_86 = arith.constant 0 : index
    %292 = vector.load %arg12[%c0_84, %c0_85, %c0_86] : memref<2x8x128xf32, #tpu.memory_space<vmem>>, vector<1x8x128xf32>
    %293 = vector.shape_cast %292 : vector<1x8x128xf32> to vector<8x128xf32>
    %294 = vector.shape_cast %289 : vector<8x128xf32> to vector<1x8x128xf32>
    tpu.vector_store %arg12[%c0_84, %c0_85, %c0_86], %294 {strides = array<i32>} : memref<2x8x128xf32, #tpu.memory_space<vmem>>, vector<1x8x128xf32>,
    %c0_87 = arith.constant 0 : index
    %c0_88 = arith.constant 0 : index
    %295 = vector.load %arg14[%c0_87, %c0_88] : memref<64x128xf32, #tpu.memory_space<vmem>>, vector<64x128xf32>
    %c0_89 = arith.constant 0 : index
    %c0_90 = arith.constant 0 : index
    %296 = vector.load %arg5[%c0_89, %c0_90] : memref<128x384xf32, #tpu.memory_space<vmem>>, vector<128x384xf32>
    %cst_91 = arith.constant dense<0.000000e+00> : vector<64x384xf32>
    %297 = tpu.matmul %295, %296, %cst_91 {dimension_numbers = #tpu.dot_dimension_numbers<[1], [0], [0], [1], [0, 0, 1, 1], [], []>} : vector<64x128xf32>, vector<128x384xf32>, vector<64x384xf32> -> vector<64x384xf32>
    %c0_92 = arith.constant 0 : index
    %c0_93 = arith.constant 0 : index
    %298 = vector.load %arg7[%c0_92, %c0_93] : memref<1x384xf32, #tpu.memory_space<vmem>>, vector<1x384xf32>
    %299 = vector.broadcast %298 : vector<1x384xf32> to vector<64x384xf32>
    %300 = arith.addf %297, %299 : vector<64x384xf32>
    %c0_94 = arith.constant 0 : index
    %c0_95 = arith.constant 0 : index
    %301 = vector.load %arg13[%c0_94, %c0_95] : memref<64x384xf32, #tpu.memory_space<vmem>>, vector<64x384xf32>
    tpu.vector_store %arg13[%c0_94, %c0_95], %300 {strides = array<i32>} : memref<64x384xf32, #tpu.memory_space<vmem>>, vector<64x384xf32>,
    %c0_96 = arith.constant 0 : index
    %c0_97 = arith.constant 0 : index
    %302 = vector.load %arg8[%c0_96, %c0_97] : memref<1x128xf32, #tpu.memory_space<vmem>>, vector<1x128xf32>
    %303 = vector.shape_cast %302 : vector<1x128xf32> to vector<1x128xf32>
    %304 = vector.broadcast %303 : vector<1x128xf32> to vector<8x128xf32>
    %c1 = arith.constant 1 : index
    %c0_98 = arith.constant 0 : index
    %c0_99 = arith.constant 0 : index
    %305 = vector.load %arg12[%c1, %c0_98, %c0_99] : memref<2x8x128xf32, #tpu.memory_space<vmem>>, vector<1x8x128xf32>
    %306 = vector.shape_cast %305 : vector<1x8x128xf32> to vector<8x128xf32>
    %c0_i32_100 = arith.constant 0 : i32
    %c8_i32_101 = arith.constant 8 : i32
    %307 = arith.muli %c0_i32_100, %c8_i32_101 : i32
    %308 = tpu.assume_multiple %307, 8 : i32
    %309 = arith.index_cast %308 : i32 to index
    %c0_102 = arith.constant 0 : index
    %310 = vector.load %arg13[%309, %c0_102] : memref<64x384xf32, #tpu.memory_space<vmem>>, vector<8x384xf32>
    %c0_103 = arith.constant 0 : index
    %c0_104 = arith.constant 0 : index
    %311 = vector.load %arg6[%c0_103, %c0_104] : memref<128x384xf32, #tpu.memory_space<vmem>>, vector<128x384xf32>
    %cst_105 = arith.constant dense<0.000000e+00> : vector<8x384xf32>
    %312 = tpu.matmul %306, %311, %cst_105 {dimension_numbers = #tpu.dot_dimension_numbers<[1], [0], [0], [1], [0, 0, 1, 1], [], []>} : vector<8x128xf32>, vector<128x384xf32>, vector<8x384xf32> -> vector<8x384xf32>
    %313 = vector.extract_strided_slice %310 {offsets = [0, 0], sizes = [8, 128], strides = [1, 1]} : vector<8x384xf32> to vector<8x128xf32>
    %314 = vector.extract_strided_slice %312 {offsets = [0, 0], sizes = [8, 128], strides = [1, 1]} : vector<8x384xf32> to vector<8x128xf32>
    %315 = arith.addf %313, %314 : vector<8x128xf32>
    %316 = arith.negf %315 : vector<8x128xf32>
    %317 = math.exp %316 : vector<8x128xf32>
    %cst_106 = arith.constant 1.000000e+00 : f32
    %318 = vector.broadcast %cst_106 : f32 to vector<8x128xf32>
    %319 = arith.addf %318, %317 : vector<8x128xf32>
    %320 = arith.divf %318, %319 : vector<8x128xf32>
    %321 = vector.extract_strided_slice %310 {offsets = [0, 128], sizes = [8, 128], strides = [1, 1]} : vector<8x384xf32> to vector<8x128xf32>
    %322 = vector.extract_strided_slice %312 {offsets = [0, 128], sizes = [8, 128], strides = [1, 1]} : vector<8x384xf32> to vector<8x128xf32>
    %323 = arith.addf %321, %322 : vector<8x128xf32>
    %324 = arith.negf %323 : vector<8x128xf32>
    %325 = math.exp %324 : vector<8x128xf32>
    %cst_107 = arith.constant 1.000000e+00 : f32
    %326 = vector.broadcast %cst_107 : f32 to vector<8x128xf32>
    %327 = arith.addf %326, %325 : vector<8x128xf32>
    %328 = arith.divf %326, %327 : vector<8x128xf32>
    %329 = vector.extract_strided_slice %310 {offsets = [0, 256], sizes = [8, 128], strides = [1, 1]} : vector<8x384xf32> to vector<8x128xf32>
    %330 = vector.extract_strided_slice %312 {offsets = [0, 256], sizes = [8, 128], strides = [1, 1]} : vector<8x384xf32> to vector<8x128xf32>
    %331 = arith.addf %330, %304 : vector<8x128xf32>
    %332 = arith.mulf %320, %331 : vector<8x128xf32>
    %333 = arith.addf %329, %332 : vector<8x128xf32>
    %334 = math.tanh %333 : vector<8x128xf32>
    %cst_108 = arith.constant 1.000000e+00 : f32
    %335 = vector.broadcast %cst_108 : f32 to vector<8x128xf32>
    %336 = arith.subf %335, %328 : vector<8x128xf32>
    %337 = arith.mulf %336, %334 : vector<8x128xf32>
    %338 = arith.mulf %328, %306 : vector<8x128xf32>
    %339 = arith.addf %337, %338 : vector<8x128xf32>
    %c1_i32_109 = arith.constant 1 : i32
    %c8_i32_110 = arith.constant 8 : i32
    %340 = arith.muli %c1_i32_109, %c8_i32_110 : i32
    %341 = tpu.assume_multiple %340, 8 : i32
    %342 = arith.index_cast %341 : i32 to index
    %c0_111 = arith.constant 0 : index
    %343 = vector.load %arg13[%342, %c0_111] : memref<64x384xf32, #tpu.memory_space<vmem>>, vector<8x384xf32>
    %c0_112 = arith.constant 0 : index
    %c0_113 = arith.constant 0 : index
    %344 = vector.load %arg6[%c0_112, %c0_113] : memref<128x384xf32, #tpu.memory_space<vmem>>, vector<128x384xf32>
    %cst_114 = arith.constant dense<0.000000e+00> : vector<8x384xf32>
    %345 = tpu.matmul %339, %344, %cst_114 {dimension_numbers = #tpu.dot_dimension_numbers<[1], [0], [0], [1], [0, 0, 1, 1], [], []>} : vector<8x128xf32>, vector<128x384xf32>, vector<8x384xf32> -> vector<8x384xf32>
    %346 = vector.extract_strided_slice %343 {offsets = [0, 0], sizes = [8, 128], strides = [1, 1]} : vector<8x384xf32> to vector<8x128xf32>
    %347 = vector.extract_strided_slice %345 {offsets = [0, 0], sizes = [8, 128], strides = [1, 1]} : vector<8x384xf32> to vector<8x128xf32>
    %348 = arith.addf %346, %347 : vector<8x128xf32>
    %349 = arith.negf %348 : vector<8x128xf32>
    %350 = math.exp %349 : vector<8x128xf32>
    %cst_115 = arith.constant 1.000000e+00 : f32
    %351 = vector.broadcast %cst_115 : f32 to vector<8x128xf32>
    %352 = arith.addf %351, %350 : vector<8x128xf32>
    %353 = arith.divf %351, %352 : vector<8x128xf32>
    %354 = vector.extract_strided_slice %343 {offsets = [0, 128], sizes = [8, 128], strides = [1, 1]} : vector<8x384xf32> to vector<8x128xf32>
    %355 = vector.extract_strided_slice %345 {offsets = [0, 128], sizes = [8, 128], strides = [1, 1]} : vector<8x384xf32> to vector<8x128xf32>
    %356 = arith.addf %354, %355 : vector<8x128xf32>
    %357 = arith.negf %356 : vector<8x128xf32>
    %358 = math.exp %357 : vector<8x128xf32>
    %cst_116 = arith.constant 1.000000e+00 : f32
    %359 = vector.broadcast %cst_116 : f32 to vector<8x128xf32>
    %360 = arith.addf %359, %358 : vector<8x128xf32>
    %361 = arith.divf %359, %360 : vector<8x128xf32>
    %362 = vector.extract_strided_slice %343 {offsets = [0, 256], sizes = [8, 128], strides = [1, 1]} : vector<8x384xf32> to vector<8x128xf32>
    %363 = vector.extract_strided_slice %345 {offsets = [0, 256], sizes = [8, 128], strides = [1, 1]} : vector<8x384xf32> to vector<8x128xf32>
    %364 = arith.addf %363, %304 : vector<8x128xf32>
    %365 = arith.mulf %353, %364 : vector<8x128xf32>
    %366 = arith.addf %362, %365 : vector<8x128xf32>
    %367 = math.tanh %366 : vector<8x128xf32>
    %cst_117 = arith.constant 1.000000e+00 : f32
    %368 = vector.broadcast %cst_117 : f32 to vector<8x128xf32>
    %369 = arith.subf %368, %361 : vector<8x128xf32>
    %370 = arith.mulf %369, %367 : vector<8x128xf32>
    %371 = arith.mulf %361, %339 : vector<8x128xf32>
    %372 = arith.addf %370, %371 : vector<8x128xf32>
    %c2_i32_118 = arith.constant 2 : i32
    %c8_i32_119 = arith.constant 8 : i32
    %373 = arith.muli %c2_i32_118, %c8_i32_119 : i32
    %374 = tpu.assume_multiple %373, 8 : i32
    %375 = arith.index_cast %374 : i32 to index
    %c0_120 = arith.constant 0 : index
    %376 = vector.load %arg13[%375, %c0_120] : memref<64x384xf32, #tpu.memory_space<vmem>>, vector<8x384xf32>
    %c0_121 = arith.constant 0 : index
    %c0_122 = arith.constant 0 : index
    %377 = vector.load %arg6[%c0_121, %c0_122] : memref<128x384xf32, #tpu.memory_space<vmem>>, vector<128x384xf32>
    %cst_123 = arith.constant dense<0.000000e+00> : vector<8x384xf32>
    %378 = tpu.matmul %372, %377, %cst_123 {dimension_numbers = #tpu.dot_dimension_numbers<[1], [0], [0], [1], [0, 0, 1, 1], [], []>} : vector<8x128xf32>, vector<128x384xf32>, vector<8x384xf32> -> vector<8x384xf32>
    %379 = vector.extract_strided_slice %376 {offsets = [0, 0], sizes = [8, 128], strides = [1, 1]} : vector<8x384xf32> to vector<8x128xf32>
    %380 = vector.extract_strided_slice %378 {offsets = [0, 0], sizes = [8, 128], strides = [1, 1]} : vector<8x384xf32> to vector<8x128xf32>
    %381 = arith.addf %379, %380 : vector<8x128xf32>
    %382 = arith.negf %381 : vector<8x128xf32>
    %383 = math.exp %382 : vector<8x128xf32>
    %cst_124 = arith.constant 1.000000e+00 : f32
    %384 = vector.broadcast %cst_124 : f32 to vector<8x128xf32>
    %385 = arith.addf %384, %383 : vector<8x128xf32>
    %386 = arith.divf %384, %385 : vector<8x128xf32>
    %387 = vector.extract_strided_slice %376 {offsets = [0, 128], sizes = [8, 128], strides = [1, 1]} : vector<8x384xf32> to vector<8x128xf32>
    %388 = vector.extract_strided_slice %378 {offsets = [0, 128], sizes = [8, 128], strides = [1, 1]} : vector<8x384xf32> to vector<8x128xf32>
    %389 = arith.addf %387, %388 : vector<8x128xf32>
    %390 = arith.negf %389 : vector<8x128xf32>
    %391 = math.exp %390 : vector<8x128xf32>
    %cst_125 = arith.constant 1.000000e+00 : f32
    %392 = vector.broadcast %cst_125 : f32 to vector<8x128xf32>
    %393 = arith.addf %392, %391 : vector<8x128xf32>
    %394 = arith.divf %392, %393 : vector<8x128xf32>
    %395 = vector.extract_strided_slice %376 {offsets = [0, 256], sizes = [8, 128], strides = [1, 1]} : vector<8x384xf32> to vector<8x128xf32>
    %396 = vector.extract_strided_slice %378 {offsets = [0, 256], sizes = [8, 128], strides = [1, 1]} : vector<8x384xf32> to vector<8x128xf32>
    %397 = arith.addf %396, %304 : vector<8x128xf32>
    %398 = arith.mulf %386, %397 : vector<8x128xf32>
    %399 = arith.addf %395, %398 : vector<8x128xf32>
    %400 = math.tanh %399 : vector<8x128xf32>
    %cst_126 = arith.constant 1.000000e+00 : f32
    %401 = vector.broadcast %cst_126 : f32 to vector<8x128xf32>
    %402 = arith.subf %401, %394 : vector<8x128xf32>
    %403 = arith.mulf %402, %400 : vector<8x128xf32>
    %404 = arith.mulf %394, %372 : vector<8x128xf32>
    %405 = arith.addf %403, %404 : vector<8x128xf32>
    %c3_i32_127 = arith.constant 3 : i32
    %c8_i32_128 = arith.constant 8 : i32
    %406 = arith.muli %c3_i32_127, %c8_i32_128 : i32
    %407 = tpu.assume_multiple %406, 8 : i32
    %408 = arith.index_cast %407 : i32 to index
    %c0_129 = arith.constant 0 : index
    %409 = vector.load %arg13[%408, %c0_129] : memref<64x384xf32, #tpu.memory_space<vmem>>, vector<8x384xf32>
    %c0_130 = arith.constant 0 : index
    %c0_131 = arith.constant 0 : index
    %410 = vector.load %arg6[%c0_130, %c0_131] : memref<128x384xf32, #tpu.memory_space<vmem>>, vector<128x384xf32>
    %cst_132 = arith.constant dense<0.000000e+00> : vector<8x384xf32>
    %411 = tpu.matmul %405, %410, %cst_132 {dimension_numbers = #tpu.dot_dimension_numbers<[1], [0], [0], [1], [0, 0, 1, 1], [], []>} : vector<8x128xf32>, vector<128x384xf32>, vector<8x384xf32> -> vector<8x384xf32>
    %412 = vector.extract_strided_slice %409 {offsets = [0, 0], sizes = [8, 128], strides = [1, 1]} : vector<8x384xf32> to vector<8x128xf32>
    %413 = vector.extract_strided_slice %411 {offsets = [0, 0], sizes = [8, 128], strides = [1, 1]} : vector<8x384xf32> to vector<8x128xf32>
    %414 = arith.addf %412, %413 : vector<8x128xf32>
    %415 = arith.negf %414 : vector<8x128xf32>
    %416 = math.exp %415 : vector<8x128xf32>
    %cst_133 = arith.constant 1.000000e+00 : f32
    %417 = vector.broadcast %cst_133 : f32 to vector<8x128xf32>
    %418 = arith.addf %417, %416 : vector<8x128xf32>
    %419 = arith.divf %417, %418 : vector<8x128xf32>
    %420 = vector.extract_strided_slice %409 {offsets = [0, 128], sizes = [8, 128], strides = [1, 1]} : vector<8x384xf32> to vector<8x128xf32>
    %421 = vector.extract_strided_slice %411 {offsets = [0, 128], sizes = [8, 128], strides = [1, 1]} : vector<8x384xf32> to vector<8x128xf32>
    %422 = arith.addf %420, %421 : vector<8x128xf32>
    %423 = arith.negf %422 : vector<8x128xf32>
    %424 = math.exp %423 : vector<8x128xf32>
    %cst_134 = arith.constant 1.000000e+00 : f32
    %425 = vector.broadcast %cst_134 : f32 to vector<8x128xf32>
    %426 = arith.addf %425, %424 : vector<8x128xf32>
    %427 = arith.divf %425, %426 : vector<8x128xf32>
    %428 = vector.extract_strided_slice %409 {offsets = [0, 256], sizes = [8, 128], strides = [1, 1]} : vector<8x384xf32> to vector<8x128xf32>
    %429 = vector.extract_strided_slice %411 {offsets = [0, 256], sizes = [8, 128], strides = [1, 1]} : vector<8x384xf32> to vector<8x128xf32>
    %430 = arith.addf %429, %304 : vector<8x128xf32>
    %431 = arith.mulf %419, %430 : vector<8x128xf32>
    %432 = arith.addf %428, %431 : vector<8x128xf32>
    %433 = math.tanh %432 : vector<8x128xf32>
    %cst_135 = arith.constant 1.000000e+00 : f32
    %434 = vector.broadcast %cst_135 : f32 to vector<8x128xf32>
    %435 = arith.subf %434, %427 : vector<8x128xf32>
    %436 = arith.mulf %435, %433 : vector<8x128xf32>
    %437 = arith.mulf %427, %405 : vector<8x128xf32>
    %438 = arith.addf %436, %437 : vector<8x128xf32>
    %c4_i32_136 = arith.constant 4 : i32
    %c8_i32_137 = arith.constant 8 : i32
    %439 = arith.muli %c4_i32_136, %c8_i32_137 : i32
    %440 = tpu.assume_multiple %439, 8 : i32
    %441 = arith.index_cast %440 : i32 to index
    %c0_138 = arith.constant 0 : index
    %442 = vector.load %arg13[%441, %c0_138] : memref<64x384xf32, #tpu.memory_space<vmem>>, vector<8x384xf32>
    %c0_139 = arith.constant 0 : index
    %c0_140 = arith.constant 0 : index
    %443 = vector.load %arg6[%c0_139, %c0_140] : memref<128x384xf32, #tpu.memory_space<vmem>>, vector<128x384xf32>
    %cst_141 = arith.constant dense<0.000000e+00> : vector<8x384xf32>
    %444 = tpu.matmul %438, %443, %cst_141 {dimension_numbers = #tpu.dot_dimension_numbers<[1], [0], [0], [1], [0, 0, 1, 1], [], []>} : vector<8x128xf32>, vector<128x384xf32>, vector<8x384xf32> -> vector<8x384xf32>
    %445 = vector.extract_strided_slice %442 {offsets = [0, 0], sizes = [8, 128], strides = [1, 1]} : vector<8x384xf32> to vector<8x128xf32>
    %446 = vector.extract_strided_slice %444 {offsets = [0, 0], sizes = [8, 128], strides = [1, 1]} : vector<8x384xf32> to vector<8x128xf32>
    %447 = arith.addf %445, %446 : vector<8x128xf32>
    %448 = arith.negf %447 : vector<8x128xf32>
    %449 = math.exp %448 : vector<8x128xf32>
    %cst_142 = arith.constant 1.000000e+00 : f32
    %450 = vector.broadcast %cst_142 : f32 to vector<8x128xf32>
    %451 = arith.addf %450, %449 : vector<8x128xf32>
    %452 = arith.divf %450, %451 : vector<8x128xf32>
    %453 = vector.extract_strided_slice %442 {offsets = [0, 128], sizes = [8, 128], strides = [1, 1]} : vector<8x384xf32> to vector<8x128xf32>
    %454 = vector.extract_strided_slice %444 {offsets = [0, 128], sizes = [8, 128], strides = [1, 1]} : vector<8x384xf32> to vector<8x128xf32>
    %455 = arith.addf %453, %454 : vector<8x128xf32>
    %456 = arith.negf %455 : vector<8x128xf32>
    %457 = math.exp %456 : vector<8x128xf32>
    %cst_143 = arith.constant 1.000000e+00 : f32
    %458 = vector.broadcast %cst_143 : f32 to vector<8x128xf32>
    %459 = arith.addf %458, %457 : vector<8x128xf32>
    %460 = arith.divf %458, %459 : vector<8x128xf32>
    %461 = vector.extract_strided_slice %442 {offsets = [0, 256], sizes = [8, 128], strides = [1, 1]} : vector<8x384xf32> to vector<8x128xf32>
    %462 = vector.extract_strided_slice %444 {offsets = [0, 256], sizes = [8, 128], strides = [1, 1]} : vector<8x384xf32> to vector<8x128xf32>
    %463 = arith.addf %462, %304 : vector<8x128xf32>
    %464 = arith.mulf %452, %463 : vector<8x128xf32>
    %465 = arith.addf %461, %464 : vector<8x128xf32>
    %466 = math.tanh %465 : vector<8x128xf32>
    %cst_144 = arith.constant 1.000000e+00 : f32
    %467 = vector.broadcast %cst_144 : f32 to vector<8x128xf32>
    %468 = arith.subf %467, %460 : vector<8x128xf32>
    %469 = arith.mulf %468, %466 : vector<8x128xf32>
    %470 = arith.mulf %460, %438 : vector<8x128xf32>
    %471 = arith.addf %469, %470 : vector<8x128xf32>
    %c5_i32_145 = arith.constant 5 : i32
    %c8_i32_146 = arith.constant 8 : i32
    %472 = arith.muli %c5_i32_145, %c8_i32_146 : i32
    %473 = tpu.assume_multiple %472, 8 : i32
    %474 = arith.index_cast %473 : i32 to index
    %c0_147 = arith.constant 0 : index
    %475 = vector.load %arg13[%474, %c0_147] : memref<64x384xf32, #tpu.memory_space<vmem>>, vector<8x384xf32>
    %c0_148 = arith.constant 0 : index
    %c0_149 = arith.constant 0 : index
    %476 = vector.load %arg6[%c0_148, %c0_149] : memref<128x384xf32, #tpu.memory_space<vmem>>, vector<128x384xf32>
    %cst_150 = arith.constant dense<0.000000e+00> : vector<8x384xf32>
    %477 = tpu.matmul %471, %476, %cst_150 {dimension_numbers = #tpu.dot_dimension_numbers<[1], [0], [0], [1], [0, 0, 1, 1], [], []>} : vector<8x128xf32>, vector<128x384xf32>, vector<8x384xf32> -> vector<8x384xf32>
    %478 = vector.extract_strided_slice %475 {offsets = [0, 0], sizes = [8, 128], strides = [1, 1]} : vector<8x384xf32> to vector<8x128xf32>
    %479 = vector.extract_strided_slice %477 {offsets = [0, 0], sizes = [8, 128], strides = [1, 1]} : vector<8x384xf32> to vector<8x128xf32>
    %480 = arith.addf %478, %479 : vector<8x128xf32>
    %481 = arith.negf %480 : vector<8x128xf32>
    %482 = math.exp %481 : vector<8x128xf32>
    %cst_151 = arith.constant 1.000000e+00 : f32
    %483 = vector.broadcast %cst_151 : f32 to vector<8x128xf32>
    %484 = arith.addf %483, %482 : vector<8x128xf32>
    %485 = arith.divf %483, %484 : vector<8x128xf32>
    %486 = vector.extract_strided_slice %475 {offsets = [0, 128], sizes = [8, 128], strides = [1, 1]} : vector<8x384xf32> to vector<8x128xf32>
    %487 = vector.extract_strided_slice %477 {offsets = [0, 128], sizes = [8, 128], strides = [1, 1]} : vector<8x384xf32> to vector<8x128xf32>
    %488 = arith.addf %486, %487 : vector<8x128xf32>
    %489 = arith.negf %488 : vector<8x128xf32>
    %490 = math.exp %489 : vector<8x128xf32>
    %cst_152 = arith.constant 1.000000e+00 : f32
    %491 = vector.broadcast %cst_152 : f32 to vector<8x128xf32>
    %492 = arith.addf %491, %490 : vector<8x128xf32>
    %493 = arith.divf %491, %492 : vector<8x128xf32>
    %494 = vector.extract_strided_slice %475 {offsets = [0, 256], sizes = [8, 128], strides = [1, 1]} : vector<8x384xf32> to vector<8x128xf32>
    %495 = vector.extract_strided_slice %477 {offsets = [0, 256], sizes = [8, 128], strides = [1, 1]} : vector<8x384xf32> to vector<8x128xf32>
    %496 = arith.addf %495, %304 : vector<8x128xf32>
    %497 = arith.mulf %485, %496 : vector<8x128xf32>
    %498 = arith.addf %494, %497 : vector<8x128xf32>
    %499 = math.tanh %498 : vector<8x128xf32>
    %cst_153 = arith.constant 1.000000e+00 : f32
    %500 = vector.broadcast %cst_153 : f32 to vector<8x128xf32>
    %501 = arith.subf %500, %493 : vector<8x128xf32>
    %502 = arith.mulf %501, %499 : vector<8x128xf32>
    %503 = arith.mulf %493, %471 : vector<8x128xf32>
    %504 = arith.addf %502, %503 : vector<8x128xf32>
    %c6_i32_154 = arith.constant 6 : i32
    %c8_i32_155 = arith.constant 8 : i32
    %505 = arith.muli %c6_i32_154, %c8_i32_155 : i32
    %506 = tpu.assume_multiple %505, 8 : i32
    %507 = arith.index_cast %506 : i32 to index
    %c0_156 = arith.constant 0 : index
    %508 = vector.load %arg13[%507, %c0_156] : memref<64x384xf32, #tpu.memory_space<vmem>>, vector<8x384xf32>
    %c0_157 = arith.constant 0 : index
    %c0_158 = arith.constant 0 : index
    %509 = vector.load %arg6[%c0_157, %c0_158] : memref<128x384xf32, #tpu.memory_space<vmem>>, vector<128x384xf32>
    %cst_159 = arith.constant dense<0.000000e+00> : vector<8x384xf32>
    %510 = tpu.matmul %504, %509, %cst_159 {dimension_numbers = #tpu.dot_dimension_numbers<[1], [0], [0], [1], [0, 0, 1, 1], [], []>} : vector<8x128xf32>, vector<128x384xf32>, vector<8x384xf32> -> vector<8x384xf32>
    %511 = vector.extract_strided_slice %508 {offsets = [0, 0], sizes = [8, 128], strides = [1, 1]} : vector<8x384xf32> to vector<8x128xf32>
    %512 = vector.extract_strided_slice %510 {offsets = [0, 0], sizes = [8, 128], strides = [1, 1]} : vector<8x384xf32> to vector<8x128xf32>
    %513 = arith.addf %511, %512 : vector<8x128xf32>
    %514 = arith.negf %513 : vector<8x128xf32>
    %515 = math.exp %514 : vector<8x128xf32>
    %cst_160 = arith.constant 1.000000e+00 : f32
    %516 = vector.broadcast %cst_160 : f32 to vector<8x128xf32>
    %517 = arith.addf %516, %515 : vector<8x128xf32>
    %518 = arith.divf %516, %517 : vector<8x128xf32>
    %519 = vector.extract_strided_slice %508 {offsets = [0, 128], sizes = [8, 128], strides = [1, 1]} : vector<8x384xf32> to vector<8x128xf32>
    %520 = vector.extract_strided_slice %510 {offsets = [0, 128], sizes = [8, 128], strides = [1, 1]} : vector<8x384xf32> to vector<8x128xf32>
    %521 = arith.addf %519, %520 : vector<8x128xf32>
    %522 = arith.negf %521 : vector<8x128xf32>
    %523 = math.exp %522 : vector<8x128xf32>
    %cst_161 = arith.constant 1.000000e+00 : f32
    %524 = vector.broadcast %cst_161 : f32 to vector<8x128xf32>
    %525 = arith.addf %524, %523 : vector<8x128xf32>
    %526 = arith.divf %524, %525 : vector<8x128xf32>
    %527 = vector.extract_strided_slice %508 {offsets = [0, 256], sizes = [8, 128], strides = [1, 1]} : vector<8x384xf32> to vector<8x128xf32>
    %528 = vector.extract_strided_slice %510 {offsets = [0, 256], sizes = [8, 128], strides = [1, 1]} : vector<8x384xf32> to vector<8x128xf32>
    %529 = arith.addf %528, %304 : vector<8x128xf32>
    %530 = arith.mulf %518, %529 : vector<8x128xf32>
    %531 = arith.addf %527, %530 : vector<8x128xf32>
    %532 = math.tanh %531 : vector<8x128xf32>
    %cst_162 = arith.constant 1.000000e+00 : f32
    %533 = vector.broadcast %cst_162 : f32 to vector<8x128xf32>
    %534 = arith.subf %533, %526 : vector<8x128xf32>
    %535 = arith.mulf %534, %532 : vector<8x128xf32>
    %536 = arith.mulf %526, %504 : vector<8x128xf32>
    %537 = arith.addf %535, %536 : vector<8x128xf32>
    %c7_i32_163 = arith.constant 7 : i32
    %c8_i32_164 = arith.constant 8 : i32
    %538 = arith.muli %c7_i32_163, %c8_i32_164 : i32
    %539 = tpu.assume_multiple %538, 8 : i32
    %540 = arith.index_cast %539 : i32 to index
    %c0_165 = arith.constant 0 : index
    %541 = vector.load %arg13[%540, %c0_165] : memref<64x384xf32, #tpu.memory_space<vmem>>, vector<8x384xf32>
    %c0_166 = arith.constant 0 : index
    %c0_167 = arith.constant 0 : index
    %542 = vector.load %arg6[%c0_166, %c0_167] : memref<128x384xf32, #tpu.memory_space<vmem>>, vector<128x384xf32>
    %cst_168 = arith.constant dense<0.000000e+00> : vector<8x384xf32>
    %543 = tpu.matmul %537, %542, %cst_168 {dimension_numbers = #tpu.dot_dimension_numbers<[1], [0], [0], [1], [0, 0, 1, 1], [], []>} : vector<8x128xf32>, vector<128x384xf32>, vector<8x384xf32> -> vector<8x384xf32>
    %544 = vector.extract_strided_slice %541 {offsets = [0, 0], sizes = [8, 128], strides = [1, 1]} : vector<8x384xf32> to vector<8x128xf32>
    %545 = vector.extract_strided_slice %543 {offsets = [0, 0], sizes = [8, 128], strides = [1, 1]} : vector<8x384xf32> to vector<8x128xf32>
    %546 = arith.addf %544, %545 : vector<8x128xf32>
    %547 = arith.negf %546 : vector<8x128xf32>
    %548 = math.exp %547 : vector<8x128xf32>
    %cst_169 = arith.constant 1.000000e+00 : f32
    %549 = vector.broadcast %cst_169 : f32 to vector<8x128xf32>
    %550 = arith.addf %549, %548 : vector<8x128xf32>
    %551 = arith.divf %549, %550 : vector<8x128xf32>
    %552 = vector.extract_strided_slice %541 {offsets = [0, 128], sizes = [8, 128], strides = [1, 1]} : vector<8x384xf32> to vector<8x128xf32>
    %553 = vector.extract_strided_slice %543 {offsets = [0, 128], sizes = [8, 128], strides = [1, 1]} : vector<8x384xf32> to vector<8x128xf32>
    %554 = arith.addf %552, %553 : vector<8x128xf32>
    %555 = arith.negf %554 : vector<8x128xf32>
    %556 = math.exp %555 : vector<8x128xf32>
    %cst_170 = arith.constant 1.000000e+00 : f32
    %557 = vector.broadcast %cst_170 : f32 to vector<8x128xf32>
    %558 = arith.addf %557, %556 : vector<8x128xf32>
    %559 = arith.divf %557, %558 : vector<8x128xf32>
    %560 = vector.extract_strided_slice %541 {offsets = [0, 256], sizes = [8, 128], strides = [1, 1]} : vector<8x384xf32> to vector<8x128xf32>
    %561 = vector.extract_strided_slice %543 {offsets = [0, 256], sizes = [8, 128], strides = [1, 1]} : vector<8x384xf32> to vector<8x128xf32>
    %562 = arith.addf %561, %304 : vector<8x128xf32>
    %563 = arith.mulf %551, %562 : vector<8x128xf32>
    %564 = arith.addf %560, %563 : vector<8x128xf32>
    %565 = math.tanh %564 : vector<8x128xf32>
    %cst_171 = arith.constant 1.000000e+00 : f32
    %566 = vector.broadcast %cst_171 : f32 to vector<8x128xf32>
    %567 = arith.subf %566, %559 : vector<8x128xf32>
    %568 = arith.mulf %567, %565 : vector<8x128xf32>
    %569 = arith.mulf %559, %537 : vector<8x128xf32>
    %570 = arith.addf %568, %569 : vector<8x128xf32>
    %c8_i32_172 = arith.constant 8 : i32
    %c1_173 = arith.constant 1 : index
    %c0_174 = arith.constant 0 : index
    %c0_175 = arith.constant 0 : index
    %571 = vector.load %arg12[%c1_173, %c0_174, %c0_175] : memref<2x8x128xf32, #tpu.memory_space<vmem>>, vector<1x8x128xf32>
    %572 = vector.shape_cast %571 : vector<1x8x128xf32> to vector<8x128xf32>
    %573 = vector.shape_cast %570 : vector<8x128xf32> to vector<1x8x128xf32>
    tpu.vector_store %arg12[%c1_173, %c0_174, %c0_175], %573 {strides = array<i32>} : memref<2x8x128xf32, #tpu.memory_space<vmem>>, vector<1x8x128xf32>,
    %c0_i32_176 = arith.constant 0 : i32
    %574 = arith.cmpi eq, %arg0, %c0_i32_176 : i32
    %575 = arith.extui %574 : i1 to i32
    %c0_i32_177 = arith.constant 0 : i32
    %576 = arith.cmpi ne, %575, %c0_i32_177 : i32
    scf.if %576 {
      %c1_178 = arith.constant 1 : index
      %c0_179 = arith.constant 0 : index
      %c0_180 = arith.constant 0 : index
      %577 = vector.load %arg12[%c1_178, %c0_179, %c0_180] : memref<2x8x128xf32, #tpu.memory_space<vmem>>, vector<1x8x128xf32>
      %578 = vector.shape_cast %577 : vector<1x8x128xf32> to vector<8x128xf32>
      %c0_181 = arith.constant 0 : index
      %c0_182 = arith.constant 0 : index
      %579 = vector.load %arg9[%c0_181, %c0_182] : memref<128x128xf32, #tpu.memory_space<vmem>>, vector<128x128xf32>
      %cst_183 = arith.constant dense<0.000000e+00> : vector<8x128xf32>
      %580 = tpu.matmul %578, %579, %cst_183 {dimension_numbers = #tpu.dot_dimension_numbers<[1], [0], [0], [1], [0, 0, 1, 1], [], []>} : vector<8x128xf32>, vector<128x128xf32>, vector<8x128xf32> -> vector<8x128xf32>
      %c0_184 = arith.constant 0 : index
      %c0_185 = arith.constant 0 : index
      %581 = vector.load %arg10[%c0_184, %c0_185] : memref<1x128xf32, #tpu.memory_space<vmem>>, vector<1x128xf32>
      %582 = vector.broadcast %581 : vector<1x128xf32> to vector<8x128xf32>
      %583 = arith.addf %580, %582 : vector<8x128xf32>
      %c0_186 = arith.constant 0 : index
      %c0_187 = arith.constant 0 : index
      %584 = vector.load %arg11[%c0_186, %c0_187] : memref<8x128xf32, #tpu.memory_space<vmem>>, vector<8x128xf32>
      tpu.vector_store %arg11[%c0_186, %c0_187], %583 {strides = array<i32>} : memref<8x128xf32, #tpu.memory_space<vmem>>, vector<8x128xf32>,
    } else {
    }
    return
  }
  func.func @transform_0(%arg0: i32) -> (i32, i32) {
    %c0_i32 = arith.constant 0 : i32
    %c0_i32_0 = arith.constant 0 : i32
    return %arg0, %c0_i32 : i32, i32
  }
  func.func @transform_1(%arg0: i32) -> (i32, i32) {
    %c0_i32 = arith.constant 0 : i32
    %c0_i32_0 = arith.constant 0 : i32
    %c0_i32_1 = arith.constant 0 : i32
    return %c0_i32, %c0_i32_0 : i32, i32
  }
  func.func @transform_2(%arg0: i32) -> (i32, i32) {
    %c0_i32 = arith.constant 0 : i32
    %c0_i32_0 = arith.constant 0 : i32
    %c0_i32_1 = arith.constant 0 : i32
    return %c0_i32, %c0_i32_0 : i32, i32
  }
  func.func @transform_3(%arg0: i32) -> (i32, i32) {
    %c0_i32 = arith.constant 0 : i32
    %c0_i32_0 = arith.constant 0 : i32
    %c0_i32_1 = arith.constant 0 : i32
    return %c0_i32, %c0_i32_0 : i32, i32
  }
  func.func @transform_4(%arg0: i32) -> (i32, i32) {
    %c0_i32 = arith.constant 0 : i32
    %c0_i32_0 = arith.constant 0 : i32
    %c0_i32_1 = arith.constant 0 : i32
    return %c0_i32, %c0_i32_0 : i32, i32
  }
  func.func @transform_5(%arg0: i32) -> (i32, i32) {
    %c0_i32 = arith.constant 0 : i32
    %c0_i32_0 = arith.constant 0 : i32
    %c0_i32_1 = arith.constant 0 : i32
    return %c0_i32, %c0_i32_0 : i32, i32
  }
  func.func @transform_6(%arg0: i32) -> (i32, i32) {
    %c0_i32 = arith.constant 0 : i32
    %c0_i32_0 = arith.constant 0 : i32
    %c0_i32_1 = arith.constant 0 : i32
    return %c0_i32, %c0_i32_0 : i32, i32
  }
  func.func @transform_7(%arg0: i32) -> (i32, i32) {
    %c0_i32 = arith.constant 0 : i32
    %c0_i32_0 = arith.constant 0 : i32
    %c0_i32_1 = arith.constant 0 : i32
    return %c0_i32, %c0_i32_0 : i32, i32
  }
  func.func @transform_8(%arg0: i32) -> (i32, i32) {
    %c0_i32 = arith.constant 0 : i32
    %c0_i32_0 = arith.constant 0 : i32
    %c0_i32_1 = arith.constant 0 : i32
    return %c0_i32, %c0_i32_0 : i32, i32
  }
  func.func @transform_9(%arg0: i32) -> (i32, i32) {
    %c0_i32 = arith.constant 0 : i32
    %c0_i32_0 = arith.constant 0 : i32
    %c0_i32_1 = arith.constant 0 : i32
    return %c0_i32, %c0_i32_0 : i32, i32
  }
  func.func @transform_10(%arg0: i32) -> (i32, i32) {
    %c0_i32 = arith.constant 0 : i32
    %c0_i32_0 = arith.constant 0 : i32
    %c0_i32_1 = arith.constant 0 : i32
    return %c0_i32, %c0_i32_0 : i32, i32
  }
}

</mosaic_0001>

<llo_original>
// kernel: gru_motion_classifier_forward.1
$region0: #{gru_motion_classifier_forward.1}
  #allocation0 [shape = 'u32[]', space=smem, size = 0x4, offset = 0x4, fixed_abs, tag = 'smem constant byte address 0x4 - core index']
  #allocation1 [shape = 'u32[144,128]{1,0:T(1,128)}', space=vmem, size = 0x12000, scoped, tag = 'internal scratch']
  #allocation2 [shape = 'f32[2,8,128]{2,1,0:T(8,128)}', space=vmem, size = 0x2000, scoped, tag = 'scratch operand']
  #allocation3 [shape = 'f32[64,384]{1,0:T(8,128)}', space=vmem, size = 0x18000, scoped, tag = 'scratch operand']
  #allocation4 [shape = 'f32[64,128]{1,0:T(8,128)}', space=vmem, size = 0x8000, scoped, tag = 'scratch operand']
  %s0 = inlined_call_operand.vmem [shape: f32[64,128], index: 0, kind: input, shape index: {}]
  %s1 = inlined_call_operand.vmem [shape: f32[128,384], index: 1, kind: input, shape index: {}]
  %s2 = inlined_call_operand.hbm [shape: f32[128,384], index: 2, kind: input, shape index: {}]
  %s3 = inlined_call_operand.vmem [shape: f32[1,128], index: 3, kind: input, shape index: {}]
  %s4 = inlined_call_operand.hbm [shape: f32[128,384], index: 4, kind: input, shape index: {}]
  %s5 = inlined_call_operand.hbm [shape: f32[128,384], index: 5, kind: input, shape index: {}]
  %s6 = inlined_call_operand.vmem [shape: f32[1,384], index: 6, kind: input, shape index: {}]
  %s7 = inlined_call_operand.vmem [shape: f32[1,128], index: 7, kind: input, shape index: {}]
  %s8 = inlined_call_operand.hbm [shape: f32[128,128], index: 8, kind: input, shape index: {}]
  %s9 = inlined_call_operand.vmem [shape: f32[1,128], index: 9, kind: input, shape index: {}]
  %s10 = inlined_call_operand.vmem [shape: f32[8,128], index: 10, kind: output, shape index: {}]
  %s11 = sld [smem:[#allocation0]]
  $region74: #{gru_motion_classifier_forward.1} parent=0
    _
  %s13 = ssub.s32 1, %s11
  %s14 = scalar_select 0, %s13, %s11
  $region1: #{gru_motion_classifier_forward.1} parent=0
    #allocation5 [shape = 'u8[196608]{0}', space=vmem, size = 0x30000, scoped, tag = 'input window, operand 2, single buffered']
    #allocation6 [shape = 's32[1]{0}', space=sflag, size = 0x4, scoped, tag = 'scoped memory for gru_motion_classifier_forward.1']
    #allocation7 [shape = 'u8[196608]{0}', space=vmem, size = 0x30000, scoped, tag = 'input window, operand 4, single buffered']
    #allocation8 [shape = 's32[1]{0}', space=sflag, size = 0x4, scoped, tag = 'scoped memory for gru_motion_classifier_forward.1']
    #allocation9 [shape = 'u8[196608]{0}', space=vmem, size = 0x30000, scoped, tag = 'input window, operand 5, single buffered']
    #allocation10 [shape = 'u8[65536]{0}', space=vmem, size = 0x10000, scoped, tag = 'input window, operand 8, single buffered']
    #allocation11 [shape = 's32[1]{0}', space=sflag, size = 0x4, scoped, tag = 'scoped memory for gru_motion_classifier_forward.1']
    %15 = vsyncpa [#allocation6], 0
    %16 = vsyncpa [#allocation8], 0
    %17 = vsyncpa [#allocation11], 0
    // Predicated region
    $region2: #{gru_motion_classifier_forward.1} parent=1 // pred_check
      _
    $region3: #{gru_motion_classifier_forward.1} parent=1 // pred_check_branch
      %19 = sbr.rel (0) target = $region5
    $region4: #{gru_motion_classifier_forward.1} parent=1 // pred_region
      _
    $region5: #{gru_motion_classifier_forward.1} parent=1 // pred_fallthru
      _
    // Predicated region
    $region6: #{gru_motion_classifier_forward.1} parent=1 // pred_check
      _
    $region7: #{gru_motion_classifier_forward.1} parent=1 // pred_check_branch
      %21 = sbr.rel (0) target = $region9
    $region8: #{gru_motion_classifier_forward.1} parent=1 // pred_region
      _
    $region9: #{gru_motion_classifier_forward.1} parent=1 // pred_fallthru
      _
    // Predicated region
    $region10: #{gru_motion_classifier_forward.1} parent=1 // pred_check
      _
    $region11: #{gru_motion_classifier_forward.1} parent=1 // pred_check_branch
      %23 = sbr.rel (0) target = $region13
    $region12: #{gru_motion_classifier_forward.1} parent=1 // pred_region
      %s25 = ssub.s32 6144, 6144
      %26 = vsyncadd [#allocation6], %s25
      %s27 = sshll.u32 [#allocation5], 4
      %s28 = int_to_ptr.vmem [resolvable:$true] %s27
      %33 = dma.hbm_to_vmem [thread:$0]  %s2, 6144, %s28, [#allocation6], 384, 384, 24
    $region13: #{gru_motion_classifier_forward.1} parent=1 // pred_fallthru
      _
    // Predicated region
    $region14: #{gru_motion_classifier_forward.1} parent=1 // pred_check
      _
    $region15: #{gru_motion_classifier_forward.1} parent=1 // pred_check_branch
      %35 = sbr.rel (0) target = $region17
    $region16: #{gru_motion_classifier_forward.1} parent=1 // pred_region
      _
    $region17: #{gru_motion_classifier_forward.1} parent=1 // pred_fallthru
      _
    // Predicated region
    $region18: #{gru_motion_classifier_forward.1} parent=1 // pred_check
      _
    $region19: #{gru_motion_classifier_forward.1} parent=1 // pred_check_branch
      %37 = sbr.rel (0) target = $region21
    $region20: #{gru_motion_classifier_forward.1} parent=1 // pred_region
      %s39 = ssub.s32 6144, 6144
      %40 = vsyncadd [#allocation8], %s39
      %s41 = sshll.u32 [#allocation7], 4
      %s42 = int_to_ptr.vmem [resolvable:$true] %s41
      %47 = dma.hbm_to_vmem [thread:$0]  %s4, 6144, %s42, [#allocation8], 384, 384, 24
    $region21: #{gru_motion_classifier_forward.1} parent=1 // pred_fallthru
      _
    // Predicated region
    $region22: #{gru_motion_classifier_forward.1} parent=1 // pred_check
      _
    $region23: #{gru_motion_classifier_forward.1} parent=1 // pred_check_branch
      %49 = sbr.rel (0) target = $region25
    $region24: #{gru_motion_classifier_forward.1} parent=1 // pred_region
      %s51 = ssub.s32 6144, 6144
      %52 = vsyncadd [#allocation8], %s51
      %s53 = sshll.u32 [#allocation9], 4
      %s54 = int_to_ptr.vmem [resolvable:$true] %s53
      %59 = dma.hbm_to_vmem [thread:$0]  %s5, 6144, %s54, [#allocation8], 384, 384, 24
    $region25: #{gru_motion_classifier_forward.1} parent=1 // pred_fallthru
      _
    // Predicated region
    $region26: #{gru_motion_classifier_forward.1} parent=1 // pred_check
      _
    $region27: #{gru_motion_classifier_forward.1} parent=1 // pred_check_branch
      %61 = sbr.rel (0) target = $region29
    $region28: #{gru_motion_classifier_forward.1} parent=1 // pred_region
      _
    $region29: #{gru_motion_classifier_forward.1} parent=1 // pred_fallthru
      _
    // Predicated region
    $region30: #{gru_motion_classifier_forward.1} parent=1 // pred_check
      _
    $region31: #{gru_motion_classifier_forward.1} parent=1 // pred_check_branch
      %63 = sbr.rel (0) target = $region33
    $region32: #{gru_motion_classifier_forward.1} parent=1 // pred_region
      _
    $region33: #{gru_motion_classifier_forward.1} parent=1 // pred_fallthru
      _
    // Predicated region
    $region34: #{gru_motion_classifier_forward.1} parent=1 // pred_check
      _
    $region35: #{gru_motion_classifier_forward.1} parent=1 // pred_check_branch
      %65 = sbr.rel (0) target = $region37
    $region36: #{gru_motion_classifier_forward.1} parent=1 // pred_region
      %s67 = ssub.s32 2048, 2048
      %68 = vsyncadd [#allocation11], %s67
      %s69 = sshll.u32 [#allocation10], 4
      %s70 = int_to_ptr.vmem [resolvable:$true] %s69
      %75 = dma.hbm_to_vmem [thread:$0]  %s8, 2048, %s70, [#allocation11], 128, 128, 8
    $region37: #{gru_motion_classifier_forward.1} parent=1 // pred_fallthru
      _
    // Predicated region
    $region38: #{gru_motion_classifier_forward.1} parent=1 // pred_check
      _
    $region39: #{gru_motion_classifier_forward.1} parent=1 // pred_check_branch
      %77 = sbr.rel (0) target = $region41
    $region40: #{gru_motion_classifier_forward.1} parent=1 // pred_region
      _
    $region41: #{gru_motion_classifier_forward.1} parent=1 // pred_fallthru
      _
    // Predicated region
    $region42: #{gru_motion_classifier_forward.1} parent=1 // pred_check
      _
    $region43: #{gru_motion_classifier_forward.1} parent=1 // pred_check_branch
      %79 = sbr.rel (0) target = $region45
    $region44: #{gru_motion_classifier_forward.1} parent=1 // pred_region
      %80 = dma.done [#allocation6], 6144
    $region45: #{gru_motion_classifier_forward.1} parent=1 // pred_fallthru
      _
    // Predicated region
    $region46: #{gru_motion_classifier_forward.1} parent=1 // pred_check
      _
    $region47: #{gru_motion_classifier_forward.1} parent=1 // pred_check_branch
      %82 = sbr.rel (0) target = $region49
    $region48: #{gru_motion_classifier_forward.1} parent=1 // pred_region
      %83 = dma.done [#allocation8], 6144
    $region49: #{gru_motion_classifier_forward.1} parent=1 // pred_fallthru
      _
    // Predicated region
    $region50: #{gru_motion_classifier_forward.1} parent=1 // pred_check
      _
    $region51: #{gru_motion_classifier_forward.1} parent=1 // pred_check_branch
      %85 = sbr.rel (0) target = $region53
    $region52: #{gru_motion_classifier_forward.1} parent=1 // pred_region
      %86 = dma.done [#allocation8], 6144
    $region53: #{gru_motion_classifier_forward.1} parent=1 // pred_fallthru
      _
    // Predicated region
    $region54: #{gru_motion_classifier_forward.1} parent=1 // pred_check
      _
    $region55: #{gru_motion_classifier_forward.1} parent=1 // pred_check_branch
      %88 = sbr.rel (0) target = $region57
    $region56: #{gru_motion_classifier_forward.1} parent=1 // pred_region
      %89 = dma.done [#allocation11], 2048
    $region57: #{gru_motion_classifier_forward.1} parent=1 // pred_fallthru
      _
    %p90 = scmp.eq.s32.totalorder 0, 0
    // Predicated region
    $region58: #{gru_motion_classifier_forward.1} parent=1 // pred_check
      %p91 = pneg %p90
    $region59: #{gru_motion_classifier_forward.1} parent=1 // pred_check_branch
      %93 = sbr.rel (%p91) target = $region61
    $region60: #{gru_motion_classifier_forward.1} parent=1 // pred_region
      %94 = vst [vmem:[#allocation2] sm:$0xff] 0.0
      %95 = vst [vmem:[#allocation2 + $0x8] sm:$0xff] 0.0
    $region61: #{gru_motion_classifier_forward.1} parent=1 // pred_fallthru
      _
    %v96 = vld [vmem:[%s0] sm:$0xff]
    %v97 = vld [vmem:[%s0 + $0x8] sm:$0xff]
    %v98 = vld [vmem:[%s0 + $0x10] sm:$0xff]
    %v99 = vld [vmem:[%s0 + $0x18] sm:$0xff]
    %v100 = vld [vmem:[%s0 + $0x20] sm:$0xff]
    %v101 = vld [vmem:[%s0 + $0x28] sm:$0xff]
    %v102 = vld [vmem:[%s0 + $0x30] sm:$0xff]
    %v103 = vld [vmem:[%s0 + $0x38] sm:$0xff]
    %v104 = vld [vmem:[%s1] sm:$0xff]
    %v105 = vld [vmem:[%s1 + $0x8] sm:$0xff]
    %v106 = vld [vmem:[%s1 + $0x10] sm:$0xff]
    %v107 = vld [vmem:[%s1 + $0x18] sm:$0xff]
    %v108 = vld [vmem:[%s1 + $0x20] sm:$0xff]
    %v109 = vld [vmem:[%s1 + $0x28] sm:$0xff]
    %v110 = vld [vmem:[%s1 + $0x30] sm:$0xff]
    %v111 = vld [vmem:[%s1 + $0x38] sm:$0xff]
    %v112 = vld [vmem:[%s1 + $0x40] sm:$0xff]
    %v113 = vld [vmem:[%s1 + $0x48] sm:$0xff]
    %v114 = vld [vmem:[%s1 + $0x50] sm:$0xff]
    %v115 = vld [vmem:[%s1 + $0x58] sm:$0xff]
    %v116 = vld [vmem:[%s1 + $0x60] sm:$0xff]
    %v117 = vld [vmem:[%s1 + $0x68] sm:$0xff]
    %v118 = vld [vmem:[%s1 + $0x70] sm:$0xff]
    %v119 = vld [vmem:[%s1 + $0x78] sm:$0xff]
    %v120 = vld [vmem:[%s1 + $0x80] sm:$0xff]
    %v121 = vld [vmem:[%s1 + $0x88] sm:$0xff]
    %v122 = vld [vmem:[%s1 + $0x90] sm:$0xff]
    %v123 = vld [vmem:[%s1 + $0x98] sm:$0xff]
    %v124 = vld [vmem:[%s1 + $0xa0] sm:$0xff]
    %v125 = vld [vmem:[%s1 + $0xa8] sm:$0xff]
    %v126 = vld [vmem:[%s1 + $0xb0] sm:$0xff]
    %v127 = vld [vmem:[%s1 + $0xb8] sm:$0xff]
    %v128 = vld [vmem:[%s1 + $0xc0] sm:$0xff]
    %v129 = vld [vmem:[%s1 + $0xc8] sm:$0xff]
    %v130 = vld [vmem:[%s1 + $0xd0] sm:$0xff]
    %v131 = vld [vmem:[%s1 + $0xd8] sm:$0xff]
    %v132 = vld [vmem:[%s1 + $0xe0] sm:$0xff]
    %v133 = vld [vmem:[%s1 + $0xe8] sm:$0xff]
    %v134 = vld [vmem:[%s1 + $0xf0] sm:$0xff]
    %v135 = vld [vmem:[%s1 + $0xf8] sm:$0xff]
    %v136 = vld [vmem:[%s1 + $0x100] sm:$0xff]
    %v137 = vld [vmem:[%s1 + $0x108] sm:$0xff]
    %v138 = vld [vmem:[%s1 + $0x110] sm:$0xff]
    %v139 = vld [vmem:[%s1 + $0x118] sm:$0xff]
    %v140 = vld [vmem:[%s1 + $0x120] sm:$0xff]
    %v141 = vld [vmem:[%s1 + $0x128] sm:$0xff]
    %v142 = vld [vmem:[%s1 + $0x130] sm:$0xff]
    %v143 = vld [vmem:[%s1 + $0x138] sm:$0xff]
    %v144 = vld [vmem:[%s1 + $0x140] sm:$0xff]
    %v145 = vld [vmem:[%s1 + $0x148] sm:$0xff]
    %v146 = vld [vmem:[%s1 + $0x150] sm:$0xff]
    %v147 = vld [vmem:[%s1 + $0x158] sm:$0xff]
    %v148 = vld [vmem:[%s1 + $0x160] sm:$0xff]
    %v149 = vld [vmem:[%s1 + $0x168] sm:$0xff]
    %v150 = vld [vmem:[%s1 + $0x170] sm:$0xff]
    %v151 = vld [vmem:[%s1 + $0x178] sm:$0xff]
    %152 = vmatprep.subr.mxu0 %v105
    %153 = vmatpush1.msra.mxu0 %v104
    %154 = vmatprep.subr.mxu0 %v108
    %155 = vmatpush1.msra.mxu0 %v107
    %156 = vmatprep.subr.mxu0 %v111
    %157 = vmatpush1.msra.mxu0 %v110
    %158 = vmatprep.subr.mxu0 %v114
    %159 = vmatpush1.msra.mxu0 %v113
    %160 = vmatprep.subr.mxu0 %v117
    %161 = vmatpush1.msra.mxu0 %v116
    %162 = vmatprep.subr.mxu0 %v120
    %163 = vmatpush1.msra.mxu0 %v119
    %164 = vmatprep.subr.mxu0 %v123
    %165 = vmatpush1.msra.mxu0 %v122
    %166 = vmatprep.subr.mxu0 %v126
    %167 = vmatpush1.msra.mxu0 %v125
    %168 = vmatprep.subr.mxu0 %v129
    %169 = vmatpush1.msra.mxu0 %v128
    %170 = vmatprep.subr.mxu0 %v132
    %171 = vmatpush1.msra.mxu0 %v131
    %172 = vmatprep.subr.mxu0 %v135
    %173 = vmatpush1.msra.mxu0 %v134
    %174 = vmatprep.subr.mxu0 %v138
    %175 = vmatpush1.msra.mxu0 %v137
    %176 = vmatprep.subr.mxu0 %v141
    %177 = vmatpush1.msra.mxu0 %v140
    %178 = vmatprep.subr.mxu0 %v144
    %179 = vmatpush1.msra.mxu0 %v143
    %180 = vmatprep.subr.mxu0 %v147
    %181 = vmatpush1.msra.mxu0 %v146
    %182 = vmatprep.subr.mxu0 %v150
    %183 = vmatpush1.msra.mxu0 %v149
    %184 = vmatprep.subr.mxu0 0.0
    %185 = vmatpush1.msra.mxu0 0.0
    %186 = vmatprep.subr.mxu0 0.0
    %187 = vmatpush1.msra.mxu0 0.0
    %188 = vmatprep.subr.mxu0 0.0
    %189 = vmatpush1.msra.mxu0 0.0
    %190 = vmatprep.subr.mxu0 0.0
    %191 = vmatpush1.msra.mxu0 0.0
    %192 = vmatprep.subr.mxu0 0.0
    %193 = vmatpush1.msra.mxu0 0.0
    %194 = vmatprep.subr.mxu0 0.0
    %195 = vmatpush1.msra.mxu0 0.0
    %196 = vmatprep.subr.mxu0 0.0
    %197 = vmatpush1.msra.mxu0 0.0
    %198 = vmatprep.subr.mxu0 0.0
    %199 = vmatpush1.msra.mxu0 0.0
    %200 = vmatprep.subr.mxu0 0.0
    %201 = vmatpush1.msra.mxu0 0.0
    %202 = vmatprep.subr.mxu0 0.0
    %203 = vmatpush1.msra.mxu0 0.0
    %204 = vmatprep.subr.mxu0 0.0
    %205 = vmatpush1.msra.mxu0 0.0
    %206 = vmatprep.subr.mxu0 0.0
    %207 = vmatpush1.msra.mxu0 0.0
    %208 = vmatprep.subr.mxu0 0.0
    %209 = vmatpush1.msra.mxu0 0.0
    %210 = vmatprep.subr.mxu0 0.0
    %211 = vmatpush1.msra.mxu0 0.0
    %212 = vmatprep.subr.mxu0 0.0
    %213 = vmatpush1.msra.mxu0 0.0
    %214 = vmatprep.subr.mxu0 0.0
    %215 = vmatpush1.msra.mxu0 0.0
    %216 = vmatprep.mubr.f32.mxu0 0.0
    %217 = vmatmul.mubr.f32.gmra.mrb[0].mxu0 %v96
    %v218 = vpop.f32.mrb[0].mxu0
    %v219 = vadd.f32 0.0, %v218
    %v220 = vpop.f32.mrb[0].mxu0
    %v221 = vadd.f32 0.0, %v220
    %222 = vmatprep.mubr.f32.mxu0 0.0
    %223 = vmatmul.mubr.f32.gmra.mrb[0].mxu0 %v97
    %v224 = vpop.f32.mrb[0].mxu0
    %v225 = vadd.f32 0.0, %v224
    %v226 = vpop.f32.mrb[0].mxu0
    %v227 = vadd.f32 0.0, %v226
    %228 = vmatprep.mubr.f32.mxu0 0.0
    %229 = vmatmul.mubr.f32.gmra.mrb[0].mxu0 %v98
    %v230 = vpop.f32.mrb[0].mxu0
    %v231 = vadd.f32 0.0, %v230
    %v232 = vpop.f32.mrb[0].mxu0
    %v233 = vadd.f32 0.0, %v232
    %234 = vmatprep.mubr.f32.mxu0 0.0
    %235 = vmatmul.mubr.f32.gmra.mrb[0].mxu0 %v99
    %v236 = vpop.f32.mrb[0].mxu0
    %v237 = vadd.f32 0.0, %v236
    %v238 = vpop.f32.mrb[0].mxu0
    %v239 = vadd.f32 0.0, %v238
    %240 = vmatprep.mubr.f32.mxu0 0.0
    %241 = vmatmul.mubr.f32.gmra.mrb[0].mxu0 %v100
    %v242 = vpop.f32.mrb[0].mxu0
    %v243 = vadd.f32 0.0, %v242
    %v244 = vpop.f32.mrb[0].mxu0
    %v245 = vadd.f32 0.0, %v244
    %246 = vmatprep.mubr.f32.mxu0 0.0
    %247 = vmatmul.mubr.f32.gmra.mrb[0].mxu0 %v101
    %v248 = vpop.f32.mrb[0].mxu0
    %v249 = vadd.f32 0.0, %v248
    %v250 = vpop.f32.mrb[0].mxu0
    %v251 = vadd.f32 0.0, %v250
    %252 = vmatprep.mubr.f32.mxu0 0.0
    %253 = vmatmul.mubr.f32.gmra.mrb[0].mxu0 %v102
    %v254 = vpop.f32.mrb[0].mxu0
    %v255 = vadd.f32 0.0, %v254
    %v256 = vpop.f32.mrb[0].mxu0
    %v257 = vadd.f32 0.0, %v256
    %258 = vmatprep.mubr.f32.mxu0 0.0
    %259 = vmatmul.mubr.f32.gmra.mrb[0].mxu0 %v103
    %v260 = vpop.f32.mrb[0].mxu0
    %v261 = vadd.f32 0.0, %v260
    %v262 = vpop.f32.mrb[0].mxu0
    %v263 = vadd.f32 0.0, %v262
    %264 = vdwg.mxu0
    %265 = vmatprep.subr.mxu0 0.0
    %266 = vmatpush1.msra.mxu0 %v106
    %267 = vmatprep.subr.mxu0 0.0
    %268 = vmatpush1.msra.mxu0 %v109
    %269 = vmatprep.subr.mxu0 0.0
    %270 = vmatpush1.msra.mxu0 %v112
    %271 = vmatprep.subr.mxu0 0.0
    %272 = vmatpush1.msra.mxu0 %v115
    %273 = vmatprep.subr.mxu0 0.0
    %274 = vmatpush1.msra.mxu0 %v118
    %275 = vmatprep.subr.mxu0 0.0
    %276 = vmatpush1.msra.mxu0 %v121
    %277 = vmatprep.subr.mxu0 0.0
    %278 = vmatpush1.msra.mxu0 %v124
    %279 = vmatprep.subr.mxu0 0.0
    %280 = vmatpush1.msra.mxu0 %v127
    %281 = vmatprep.subr.mxu0 0.0
    %282 = vmatpush1.msra.mxu0 %v130
    %283 = vmatprep.subr.mxu0 0.0
    %284 = vmatpush1.msra.mxu0 %v133
    %285 = vmatprep.subr.mxu0 0.0
    %286 = vmatpush1.msra.mxu0 %v136
    %287 = vmatprep.subr.mxu0 0.0
    %288 = vmatpush1.msra.mxu0 %v139
    %289 = vmatprep.subr.mxu0 0.0
    %290 = vmatpush1.msra.mxu0 %v142
    %291 = vmatprep.subr.mxu0 0.0
    %292 = vmatpush1.msra.mxu0 %v145
    %293 = vmatprep.subr.mxu0 0.0
    %294 = vmatpush1.msra.mxu0 %v148
    %295 = vmatprep.subr.mxu0 0.0
    %296 = vmatpush1.msra.mxu0 %v151
    %297 = vmatprep.subr.mxu0 0.0
    %298 = vmatpush1.msra.mxu0 0.0
    %299 = vmatprep.subr.mxu0 0.0
    %300 = vmatpush1.msra.mxu0 0.0
    %301 = vmatprep.subr.mxu0 0.0
    %302 = vmatpush1.msra.mxu0 0.0
    %303 = vmatprep.subr.mxu0 0.0
    %304 = vmatpush1.msra.mxu0 0.0
    %305 = vmatprep.subr.mxu0 0.0
    %306 = vmatpush1.msra.mxu0 0.0
    %307 = vmatprep.subr.mxu0 0.0
    %308 = vmatpush1.msra.mxu0 0.0
    %309 = vmatprep.subr.mxu0 0.0
    %310 = vmatpush1.msra.mxu0 0.0
    %311 = vmatprep.subr.mxu0 0.0
    %312 = vmatpush1.msra.mxu0 0.0
    %313 = vmatprep.subr.mxu0 0.0
    %314 = vmatpush1.msra.mxu0 0.0
    %315 = vmatprep.subr.mxu0 0.0
    %316 = vmatpush1.msra.mxu0 0.0
    %317 = vmatprep.subr.mxu0 0.0
    %318 = vmatpush1.msra.mxu0 0.0
    %319 = vmatprep.subr.mxu0 0.0
    %320 = vmatpush1.msra.mxu0 0.0
    %321 = vmatprep.subr.mxu0 0.0
    %322 = vmatpush1.msra.mxu0 0.0
    %323 = vmatprep.subr.mxu0 0.0
    %324 = vmatpush1.msra.mxu0 0.0
    %325 = vmatprep.subr.mxu0 0.0
    %326 = vmatpush1.msra.mxu0 0.0
    %327 = vmatprep.subr.mxu0 0.0
    %328 = vmatpush1.msra.mxu0 0.0
    %329 = vmatprep.mubr.f32.mxu0 0.0
    %330 = vmatmul.mubr.f32.gmra.mrb[0].mxu0 %v96
    %v331 = vpop.f32.mrb[0].mxu0
    %v332 = vadd.f32 0.0, %v331
    %v333 = vpop.f32.mrb[0].mxu0
    %334 = vmatprep.mubr.f32.mxu0 0.0
    %335 = vmatmul.mubr.f32.gmra.mrb[0].mxu0 %v97
    %v336 = vpop.f32.mrb[0].mxu0
    %v337 = vadd.f32 0.0, %v336
    %v338 = vpop.f32.mrb[0].mxu0
    %339 = vmatprep.mubr.f32.mxu0 0.0
    %340 = vmatmul.mubr.f32.gmra.mrb[0].mxu0 %v98
    %v341 = vpop.f32.mrb[0].mxu0
    %v342 = vadd.f32 0.0, %v341
    %v343 = vpop.f32.mrb[0].mxu0
    %344 = vmatprep.mubr.f32.mxu0 0.0
    %345 = vmatmul.mubr.f32.gmra.mrb[0].mxu0 %v99
    %v346 = vpop.f32.mrb[0].mxu0
    %v347 = vadd.f32 0.0, %v346
    %v348 = vpop.f32.mrb[0].mxu0
    %349 = vmatprep.mubr.f32.mxu0 0.0
    %350 = vmatmul.mubr.f32.gmra.mrb[0].mxu0 %v100
    %v351 = vpop.f32.mrb[0].mxu0
    %v352 = vadd.f32 0.0, %v351
    %v353 = vpop.f32.mrb[0].mxu0
    %354 = vmatprep.mubr.f32.mxu0 0.0
    %355 = vmatmul.mubr.f32.gmra.mrb[0].mxu0 %v101
    %v356 = vpop.f32.mrb[0].mxu0
    %v357 = vadd.f32 0.0, %v356
    %v358 = vpop.f32.mrb[0].mxu0
    %359 = vmatprep.mubr.f32.mxu0 0.0
    %360 = vmatmul.mubr.f32.gmra.mrb[0].mxu0 %v102
    %v361 = vpop.f32.mrb[0].mxu0
    %v362 = vadd.f32 0.0, %v361
    %v363 = vpop.f32.mrb[0].mxu0
    %364 = vmatprep.mubr.f32.mxu0 0.0
    %365 = vmatmul.mubr.f32.gmra.mrb[0].mxu0 %v103
    %v366 = vpop.f32.mrb[0].mxu0
    %v367 = vadd.f32 0.0, %v366
    %v368 = vpop.f32.mrb[0].mxu0
    %369 = vdwg.mxu0
    %370 = vst [vmem:[#allocation3] sm:$0xff] %v219
    %371 = vst [vmem:[#allocation3 + $0x8] sm:$0xff] %v221
    %372 = vst [vmem:[#allocation3 + $0x10] sm:$0xff] %v332
    %373 = vst [vmem:[#allocation3 + $0x18] sm:$0xff] %v225
    %374 = vst [vmem:[#allocation3 + $0x20] sm:$0xff] %v227
    %375 = vst [vmem:[#allocation3 + $0x28] sm:$0xff] %v337
    %376 = vst [vmem:[#allocation3 + $0x30] sm:$0xff] %v231
    %377 = vst [vmem:[#allocation3 + $0x38] sm:$0xff] %v233
    %378 = vst [vmem:[#allocation3 + $0x40] sm:$0xff] %v342
    %379 = vst [vmem:[#allocation3 + $0x48] sm:$0xff] %v237
    %380 = vst [vmem:[#allocation3 + $0x50] sm:$0xff] %v239
    %381 = vst [vmem:[#allocation3 + $0x58] sm:$0xff] %v347
    %382 = vst [vmem:[#allocation3 + $0x60] sm:$0xff] %v243
    %383 = vst [vmem:[#allocation3 + $0x68] sm:$0xff] %v245
    %384 = vst [vmem:[#allocation3 + $0x70] sm:$0xff] %v352
    %385 = vst [vmem:[#allocation3 + $0x78] sm:$0xff] %v249
    %386 = vst [vmem:[#allocation3 + $0x80] sm:$0xff] %v251
    %387 = vst [vmem:[#allocation3 + $0x88] sm:$0xff] %v357
    %388 = vst [vmem:[#allocation3 + $0x90] sm:$0xff] %v255
    %389 = vst [vmem:[#allocation3 + $0x98] sm:$0xff] %v257
    %390 = vst [vmem:[#allocation3 + $0xa0] sm:$0xff] %v362
    %391 = vst [vmem:[#allocation3 + $0xa8] sm:$0xff] %v261
    %392 = vst [vmem:[#allocation3 + $0xb0] sm:$0xff] %v263
    %393 = vst [vmem:[#allocation3 + $0xb8] sm:$0xff] %v367
    %v394 = vld [vmem:[%s3] sm:$0x1]
    %v396 = vlaneseq
    %v397 = vshrl.u32 %v396, 7
    %v398 = vsub.s32 0, %v397
    %v399 = vrot.slane %v394, %v398
    %v401 = vld [vmem:[#allocation2] sm:$0xff]
    %s402 = smul.u32 0, 3
    %s403 = smul.addr %s402, 8
    %s404 = scalar_lea.vmem [#allocation3], %s403
    %v405 = vld [vmem:[%s404] sm:$0xff]
    %v406 = vld [vmem:[%s404 + $0x8] sm:$0xff]
    %v407 = vld [vmem:[%s404 + $0x10] sm:$0xff]
    %v408 = vld [vmem:[#allocation5] sm:$0xff]
    %v409 = vld [vmem:[#allocation5 + $0x8] sm:$0xff]
    %v410 = vld [vmem:[#allocation5 + $0x10] sm:$0xff]
    %v411 = vld [vmem:[#allocation5 + $0x18] sm:$0xff]
    %v412 = vld [vmem:[#allocation5 + $0x20] sm:$0xff]
    %v413 = vld [vmem:[#allocation5 + $0x28] sm:$0xff]
    %v414 = vld [vmem:[#allocation5 + $0x30] sm:$0xff]
    %v415 = vld [vmem:[#allocation5 + $0x38] sm:$0xff]
    %v416 = vld [vmem:[#allocation5 + $0x40] sm:$0xff]
    %v417 = vld [vmem:[#allocation5 + $0x48] sm:$0xff]
    %v418 = vld [vmem:[#allocation5 + $0x50] sm:$0xff]
    %v419 = vld [vmem:[#allocation5 + $0x58] sm:$0xff]
    %v420 = vld [vmem:[#allocation5 + $0x60] sm:$0xff]
    %v421 = vld [vmem:[#allocation5 + $0x68] sm:$0xff]
    %v422 = vld [vmem:[#allocation5 + $0x70] sm:$0xff]
    %v423 = vld [vmem:[#allocation5 + $0x78] sm:$0xff]
    %v424 = vld [vmem:[#allocation5 + $0x80] sm:$0xff]
    %v425 = vld [vmem:[#allocation5 + $0x88] sm:$0xff]
    %v426 = vld [vmem:[#allocation5 + $0x90] sm:$0xff]
    %v427 = vld [vmem:[#allocation5 + $0x98] sm:$0xff]
    %v428 = vld [vmem:[#allocation5 + $0xa0] sm:$0xff]
    %v429 = vld [vmem:[#allocation5 + $0xa8] sm:$0xff]
    %v430 = vld [vmem:[#allocation5 + $0xb0] sm:$0xff]
    %v431 = vld [vmem:[#allocation5 + $0xb8] sm:$0xff]
    %v432 = vld [vmem:[#allocation5 + $0xc0] sm:$0xff]
    %v433 = vld [vmem:[#allocation5 + $0xc8] sm:$0xff]
    %v434 = vld [vmem:[#allocation5 + $0xd0] sm:$0xff]
    %v435 = vld [vmem:[#allocation5 + $0xd8] sm:$0xff]
    %v436 = vld [vmem:[#allocation5 + $0xe0] sm:$0xff]
    %v437 = vld [vmem:[#allocation5 + $0xe8] sm:$0xff]
    %v438 = vld [vmem:[#allocation5 + $0xf0] sm:$0xff]
    %v439 = vld [vmem:[#allocation5 + $0xf8] sm:$0xff]
    %v440 = vld [vmem:[#allocation5 + $0x100] sm:$0xff]
    %v441 = vld [vmem:[#allocation5 + $0x108] sm:$0xff]
    %v442 = vld [vmem:[#allocation5 + $0x110] sm:$0xff]
    %v443 = vld [vmem:[#allocation5 + $0x118] sm:$0xff]
    %v444 = vld [vmem:[#allocation5 + $0x120] sm:$0xff]
    %v445 = vld [vmem:[#allocation5 + $0x128] sm:$0xff]
    %v446 = vld [vmem:[#allocation5 + $0x130] sm:$0xff]
    %v447 = vld [vmem:[#allocation5 + $0x138] sm:$0xff]
    %v448 = vld [vmem:[#allocation5 + $0x140] sm:$0xff]
    %v449 = vld [vmem:[#allocation5 + $0x148] sm:$0xff]
    %v450 = vld [vmem:[#allocation5 + $0x150] sm:$0xff]
    %v451 = vld [vmem:[#allocation5 + $0x158] sm:$0xff]
    %v452 = vld [vmem:[#allocation5 + $0x160] sm:$0xff]
    %v453 = vld [vmem:[#allocation5 + $0x168] sm:$0xff]
    %v454 = vld [vmem:[#allocation5 + $0x170] sm:$0xff]
    %v455 = vld [vmem:[#allocation5 + $0x178] sm:$0xff]
    %456 = vmatprep.subr.mxu0 %v409
    %457 = vmatpush1.msra.mxu0 %v408
    %458 = vmatprep.subr.mxu0 %v412
    %459 = vmatpush1.msra.mxu0 %v411
    %460 = vmatprep.subr.mxu0 %v415
    %461 = vmatpush1.msra.mxu0 %v414
    %462 = vmatprep.subr.mxu0 %v418
    %463 = vmatpush1.msra.mxu0 %v417
    %464 = vmatprep.subr.mxu0 %v421
    %465 = vmatpush1.msra.mxu0 %v420
    %466 = vmatprep.subr.mxu0 %v424
    %467 = vmatpush1.msra.mxu0 %v423
    %468 = vmatprep.subr.mxu0 %v427
    %469 = vmatpush1.msra.mxu0 %v426
    %470 = vmatprep.subr.mxu0 %v430
    %471 = vmatpush1.msra.mxu0 %v429
    %472 = vmatprep.subr.mxu0 %v433
    %473 = vmatpush1.msra.mxu0 %v432
    %474 = vmatprep.subr.mxu0 %v436
    %475 = vmatpush1.msra.mxu0 %v435
    %476 = vmatprep.subr.mxu0 %v439
    %477 = vmatpush1.msra.mxu0 %v438
    %478 = vmatprep.subr.mxu0 %v442
    %479 = vmatpush1.msra.mxu0 %v441
    %480 = vmatprep.subr.mxu0 %v445
    %481 = vmatpush1.msra.mxu0 %v444
    %482 = vmatprep.subr.mxu0 %v448
    %483 = vmatpush1.msra.mxu0 %v447
    %484 = vmatprep.subr.mxu0 %v451
    %485 = vmatpush1.msra.mxu0 %v450
    %486 = vmatprep.subr.mxu0 %v454
    %487 = vmatpush1.msra.mxu0 %v453
    %488 = vmatprep.subr.mxu0 0.0
    %489 = vmatpush1.msra.mxu0 0.0
    %490 = vmatprep.subr.mxu0 0.0
    %491 = vmatpush1.msra.mxu0 0.0
    %492 = vmatprep.subr.mxu0 0.0
    %493 = vmatpush1.msra.mxu0 0.0
    %494 = vmatprep.subr.mxu0 0.0
    %495 = vmatpush1.msra.mxu0 0.0
    %496 = vmatprep.subr.mxu0 0.0
    %497 = vmatpush1.msra.mxu0 0.0
    %498 = vmatprep.subr.mxu0 0.0
    %499 = vmatpush1.msra.mxu0 0.0
    %500 = vmatprep.subr.mxu0 0.0
    %501 = vmatpush1.msra.mxu0 0.0
    %502 = vmatprep.subr.mxu0 0.0
    %503 = vmatpush1.msra.mxu0 0.0
    %504 = vmatprep.subr.mxu0 0.0
    %505 = vmatpush1.msra.mxu0 0.0
    %506 = vmatprep.subr.mxu0 0.0
    %507 = vmatpush1.msra.mxu0 0.0
    %508 = vmatprep.subr.mxu0 0.0
    %509 = vmatpush1.msra.mxu0 0.0
    %510 = vmatprep.subr.mxu0 0.0
    %511 = vmatpush1.msra.mxu0 0.0
    %512 = vmatprep.subr.mxu0 0.0
    %513 = vmatpush1.msra.mxu0 0.0
    %514 = vmatprep.subr.mxu0 0.0
    %515 = vmatpush1.msra.mxu0 0.0
    %516 = vmatprep.subr.mxu0 0.0
    %517 = vmatpush1.msra.mxu0 0.0
    %518 = vmatprep.subr.mxu0 0.0
    %519 = vmatpush1.msra.mxu0 0.0
    %520 = vmatprep.mubr.f32.mxu0 0.0
    %521 = vmatmul.mubr.f32.gmra.mrb[0].mxu0 %v401
    %v522 = vpop.f32.mrb[0].mxu0
    %v523 = vadd.f32 0.0, %v522
    %v524 = vpop.f32.mrb[0].mxu0
    %v525 = vadd.f32 0.0, %v524
    %526 = vdwg.mxu0
    %527 = vmatprep.subr.mxu0 0.0
    %528 = vmatpush1.msra.mxu0 %v410
    %529 = vmatprep.subr.mxu0 0.0
    %530 = vmatpush1.msra.mxu0 %v413
    %531 = vmatprep.subr.mxu0 0.0
    %532 = vmatpush1.msra.mxu0 %v416
    %533 = vmatprep.subr.mxu0 0.0
    %534 = vmatpush1.msra.mxu0 %v419
    %535 = vmatprep.subr.mxu0 0.0
    %536 = vmatpush1.msra.mxu0 %v422
    %537 = vmatprep.subr.mxu0 0.0
    %538 = vmatpush1.msra.mxu0 %v425
    %539 = vmatprep.subr.mxu0 0.0
    %540 = vmatpush1.msra.mxu0 %v428
    %541 = vmatprep.subr.mxu0 0.0
    %542 = vmatpush1.msra.mxu0 %v431
    %543 = vmatprep.subr.mxu0 0.0
    %544 = vmatpush1.msra.mxu0 %v434
    %545 = vmatprep.subr.mxu0 0.0
    %546 = vmatpush1.msra.mxu0 %v437
    %547 = vmatprep.subr.mxu0 0.0
    %548 = vmatpush1.msra.mxu0 %v440
    %549 = vmatprep.subr.mxu0 0.0
    %550 = vmatpush1.msra.mxu0 %v443
    %551 = vmatprep.subr.mxu0 0.0
    %552 = vmatpush1.msra.mxu0 %v446
    %553 = vmatprep.subr.mxu0 0.0
    %554 = vmatpush1.msra.mxu0 %v449
    %555 = vmatprep.subr.mxu0 0.0
    %556 = vmatpush1.msra.mxu0 %v452
    %557 = vmatprep.subr.mxu0 0.0
    %558 = vmatpush1.msra.mxu0 %v455
    %559 = vmatprep.subr.mxu0 0.0
    %560 = vmatpush1.msra.mxu0 0.0
    %561 = vmatprep.subr.mxu0 0.0
    %562 = vmatpush1.msra.mxu0 0.0
    %563 = vmatprep.subr.mxu0 0.0
    %564 = vmatpush1.msra.mxu0 0.0
    %565 = vmatprep.subr.mxu0 0.0
    %566 = vmatpush1.msra.mxu0 0.0
    %567 = vmatprep.subr.mxu0 0.0
    %568 = vmatpush1.msra.mxu0 0.0
    %569 = vmatprep.subr.mxu0 0.0
    %570 = vmatpush1.msra.mxu0 0.0
    %571 = vmatprep.subr.mxu0 0.0
    %572 = vmatpush1.msra.mxu0 0.0
    %573 = vmatprep.subr.mxu0 0.0
    %574 = vmatpush1.msra.mxu0 0.0
    %575 = vmatprep.subr.mxu0 0.0
    %576 = vmatpush1.msra.mxu0 0.0
    %577 = vmatprep.subr.mxu0 0.0
    %578 = vmatpush1.msra.mxu0 0.0
    %579 = vmatprep.subr.mxu0 0.0
    %580 = vmatpush1.msra.mxu0 0.0
    %581 = vmatprep.subr.mxu0 0.0
    %582 = vmatpush1.msra.mxu0 0.0
    %583 = vmatprep.subr.mxu0 0.0
    %584 = vmatpush1.msra.mxu0 0.0
    %585 = vmatprep.subr.mxu0 0.0
    %586 = vmatpush1.msra.mxu0 0.0
    %587 = vmatprep.subr.mxu0 0.0
    %588 = vmatpush1.msra.mxu0 0.0
    %589 = vmatprep.subr.mxu0 0.0
    %590 = vmatpush1.msra.mxu0 0.0
    %591 = vmatprep.mubr.f32.mxu0 0.0
    %592 = vmatmul.mubr.f32.gmra.mrb[0].mxu0 %v401
    %v593 = vpop.f32.mrb[0].mxu0
    %v594 = vadd.f32 0.0, %v593
    %v595 = vpop.f32.mrb[0].mxu0
    %596 = vdwg.mxu0
    %v597 = vadd.f32 %v405, %v523
    %v598 = vxor.u32 %v597, 2147483648
    %v599 = vmul.f32 %v598, 1.442695
    %v600 = vpow.pop %v599
    %v601 = vadd.f32 %v600, 1.0
    %v602 = vrcp.pop %v601
    %v603 = vmul.f32 1.0, %v602
    %v604 = vadd.f32 %v406, %v525
    %v605 = vxor.u32 %v604, 2147483648
    %v606 = vmul.f32 %v605, 1.442695
    %v607 = vpow.pop %v606
    %v608 = vadd.f32 %v607, 1.0
    %v609 = vrcp.pop %v608
    %v610 = vmul.f32 1.0, %v609
    %v611 = vadd.f32 %v594, %v399
    %v612 = vmul.f32 %v603, %v611
    %v613 = vadd.f32 %v407, %v612
    %v614 = vtanh.pop %v613
    %v615 = vsub.f32 1.0, %v610
    %v616 = vmul.f32 %v615, %v614
    %v617 = vmul.f32 %v610, %v401
    %v618 = vadd.f32 %v616, %v617
    %619 = vst [vmem:[#allocation4] sm:$0xff] %v618
    %s620 = smul.u32 1, 3
    %s621 = smul.addr %s620, 8
    %s622 = scalar_lea.vmem [#allocation3], %s621
    %v623 = vld [vmem:[%s622] sm:$0xff]
    %v624 = vld [vmem:[%s622 + $0x8] sm:$0xff]
    %v625 = vld [vmem:[%s622 + $0x10] sm:$0xff]
    %v626 = vld [vmem:[#allocation5] sm:$0xff]
    %v627 = vld [vmem:[#allocation5 + $0x8] sm:$0xff]
    %v628 = vld [vmem:[#allocation5 + $0x10] sm:$0xff]
    %v629 = vld [vmem:[#allocation5 + $0x18] sm:$0xff]
    %v630 = vld [vmem:[#allocation5 + $0x20] sm:$0xff]
    %v631 = vld [vmem:[#allocation5 + $0x28] sm:$0xff]
    %v632 = vld [vmem:[#allocation5 + $0x30] sm:$0xff]
    %v633 = vld [vmem:[#allocation5 + $0x38] sm:$0xff]
    %v634 = vld [vmem:[#allocation5 + $0x40] sm:$0xff]
    %v635 = vld [vmem:[#allocation5 + $0x48] sm:$0xff]
    %v636 = vld [vmem:[#allocation5 + $0x50] sm:$0xff]
    %v637 = vld [vmem:[#allocation5 + $0x58] sm:$0xff]
    %v638 = vld [vmem:[#allocation5 + $0x60] sm:$0xff]
    %v639 = vld [vmem:[#allocation5 + $0x68] sm:$0xff]
    %v640 = vld [vmem:[#allocation5 + $0x70] sm:$0xff]
    %v641 = vld [vmem:[#allocation5 + $0x78] sm:$0xff]
    %v642 = vld [vmem:[#allocation5 + $0x80] sm:$0xff]
    %v643 = vld [vmem:[#allocation5 + $0x88] sm:$0xff]
    %v644 = vld [vmem:[#allocation5 + $0x90] sm:$0xff]
    %v645 = vld [vmem:[#allocation5 + $0x98] sm:$0xff]
    %v646 = vld [vmem:[#allocation5 + $0xa0] sm:$0xff]
    %v647 = vld [vmem:[#allocation5 + $0xa8] sm:$0xff]
    %v648 = vld [vmem:[#allocation5 + $0xb0] sm:$0xff]
    %v649 = vld [vmem:[#allocation5 + $0xb8] sm:$0xff]
    %v650 = vld [vmem:[#allocation5 + $0xc0] sm:$0xff]
    %v651 = vld [vmem:[#allocation5 + $0xc8] sm:$0xff]
    %v652 = vld [vmem:[#allocation5 + $0xd0] sm:$0xff]
    %v653 = vld [vmem:[#allocation5 + $0xd8] sm:$0xff]
    %v654 = vld [vmem:[#allocation5 + $0xe0] sm:$0xff]
    %v655 = vld [vmem:[#allocation5 + $0xe8] sm:$0xff]
    %v656 = vld [vmem:[#allocation5 + $0xf0] sm:$0xff]
    %v657 = vld [vmem:[#allocation5 + $0xf8] sm:$0xff]
    %v658 = vld [vmem:[#allocation5 + $0x100] sm:$0xff]
    %v659 = vld [vmem:[#allocation5 + $0x108] sm:$0xff]
    %v660 = vld [vmem:[#allocation5 + $0x110] sm:$0xff]
    %v661 = vld [vmem:[#allocation5 + $0x118] sm:$0xff]
    %v662 = vld [vmem:[#allocation5 + $0x120] sm:$0xff]
    %v663 = vld [vmem:[#allocation5 + $0x128] sm:$0xff]
    %v664 = vld [vmem:[#allocation5 + $0x130] sm:$0xff]
    %v665 = vld [vmem:[#allocation5 + $0x138] sm:$0xff]
    %v666 = vld [vmem:[#allocation5 + $0x140] sm:$0xff]
    %v667 = vld [vmem:[#allocation5 + $0x148] sm:$0xff]
    %v668 = vld [vmem:[#allocation5 + $0x150] sm:$0xff]
    %v669 = vld [vmem:[#allocation5 + $0x158] sm:$0xff]
    %v670 = vld [vmem:[#allocation5 + $0x160] sm:$0xff]
    %v671 = vld [vmem:[#allocation5 + $0x168] sm:$0xff]
    %v672 = vld [vmem:[#allocation5 + $0x170] sm:$0xff]
    %v673 = vld [vmem:[#allocation5 + $0x178] sm:$0xff]
    %674 = vmatprep.subr.mxu0 %v627
    %675 = vmatpush1.msra.mxu0 %v626
    %676 = vmatprep.subr.mxu0 %v630
    %677 = vmatpush1.msra.mxu0 %v629
    %678 = vmatprep.subr.mxu0 %v633
    %679 = vmatpush1.msra.mxu0 %v632
    %680 = vmatprep.subr.mxu0 %v636
    %681 = vmatpush1.msra.mxu0 %v635
    %682 = vmatprep.subr.mxu0 %v639
    %683 = vmatpush1.msra.mxu0 %v638
    %684 = vmatprep.subr.mxu0 %v642
    %685 = vmatpush1.msra.mxu0 %v641
    %686 = vmatprep.subr.mxu0 %v645
    %687 = vmatpush1.msra.mxu0 %v644
    %688 = vmatprep.subr.mxu0 %v648
    %689 = vmatpush1.msra.mxu0 %v647
    %690 = vmatprep.subr.mxu0 %v651
    %691 = vmatpush1.msra.mxu0 %v650
    %692 = vmatprep.subr.mxu0 %v654
    %693 = vmatpush1.msra.mxu0 %v653
    %694 = vmatprep.subr.mxu0 %v657
    %695 = vmatpush1.msra.mxu0 %v656
    %696 = vmatprep.subr.mxu0 %v660
    %697 = vmatpush1.msra.mxu0 %v659
    %698 = vmatprep.subr.mxu0 %v663
    %699 = vmatpush1.msra.mxu0 %v662
    %700 = vmatprep.subr.mxu0 %v666
    %701 = vmatpush1.msra.mxu0 %v665
    %702 = vmatprep.subr.mxu0 %v669
    %703 = vmatpush1.msra.mxu0 %v668
    %704 = vmatprep.subr.mxu0 %v672
    %705 = vmatpush1.msra.mxu0 %v671
    %706 = vmatprep.subr.mxu0 0.0
    %707 = vmatpush1.msra.mxu0 0.0
    %708 = vmatprep.subr.mxu0 0.0
    %709 = vmatpush1.msra.mxu0 0.0
    %710 = vmatprep.subr.mxu0 0.0
    %711 = vmatpush1.msra.mxu0 0.0
    %712 = vmatprep.subr.mxu0 0.0
    %713 = vmatpush1.msra.mxu0 0.0
    %714 = vmatprep.subr.mxu0 0.0
    %715 = vmatpush1.msra.mxu0 0.0
    %716 = vmatprep.subr.mxu0 0.0
    %717 = vmatpush1.msra.mxu0 0.0
    %718 = vmatprep.subr.mxu0 0.0
    %719 = vmatpush1.msra.mxu0 0.0
    %720 = vmatprep.subr.mxu0 0.0
    %721 = vmatpush1.msra.mxu0 0.0
    %722 = vmatprep.subr.mxu0 0.0
    %723 = vmatpush1.msra.mxu0 0.0
    %724 = vmatprep.subr.mxu0 0.0
    %725 = vmatpush1.msra.mxu0 0.0
    %726 = vmatprep.subr.mxu0 0.0
    %727 = vmatpush1.msra.mxu0 0.0
    %728 = vmatprep.subr.mxu0 0.0
    %729 = vmatpush1.msra.mxu0 0.0
    %730 = vmatprep.subr.mxu0 0.0
    %731 = vmatpush1.msra.mxu0 0.0
    %732 = vmatprep.subr.mxu0 0.0
    %733 = vmatpush1.msra.mxu0 0.0
    %734 = vmatprep.subr.mxu0 0.0
    %735 = vmatpush1.msra.mxu0 0.0
    %736 = vmatprep.subr.mxu0 0.0
    %737 = vmatpush1.msra.mxu0 0.0
    %738 = vmatprep.mubr.f32.mxu0 0.0
    %739 = vmatmul.mubr.f32.gmra.mrb[0].mxu0 %v618
    %v740 = vpop.f32.mrb[0].mxu0
    %v741 = vadd.f32 0.0, %v740
    %v742 = vpop.f32.mrb[0].mxu0
    %v743 = vadd.f32 0.0, %v742
    %744 = vdwg.mxu0
    %745 = vmatprep.subr.mxu0 0.0
    %746 = vmatpush1.msra.mxu0 %v628
    %747 = vmatprep.subr.mxu0 0.0
    %748 = vmatpush1.msra.mxu0 %v631
    %749 = vmatprep.subr.mxu0 0.0
    %750 = vmatpush1.msra.mxu0 %v634
    %751 = vmatprep.subr.mxu0 0.0
    %752 = vmatpush1.msra.mxu0 %v637
    %753 = vmatprep.subr.mxu0 0.0
    %754 = vmatpush1.msra.mxu0 %v640
    %755 = vmatprep.subr.mxu0 0.0
    %756 = vmatpush1.msra.mxu0 %v643
    %757 = vmatprep.subr.mxu0 0.0
    %758 = vmatpush1.msra.mxu0 %v646
    %759 = vmatprep.subr.mxu0 0.0
    %760 = vmatpush1.msra.mxu0 %v649
    %761 = vmatprep.subr.mxu0 0.0
    %762 = vmatpush1.msra.mxu0 %v652
    %763 = vmatprep.subr.mxu0 0.0
    %764 = vmatpush1.msra.mxu0 %v655
    %765 = vmatprep.subr.mxu0 0.0
    %766 = vmatpush1.msra.mxu0 %v658
    %767 = vmatprep.subr.mxu0 0.0
    %768 = vmatpush1.msra.mxu0 %v661
    %769 = vmatprep.subr.mxu0 0.0
    %770 = vmatpush1.msra.mxu0 %v664
    %771 = vmatprep.subr.mxu0 0.0
    %772 = vmatpush1.msra.mxu0 %v667
    %773 = vmatprep.subr.mxu0 0.0
    %774 = vmatpush1.msra.mxu0 %v670
    %775 = vmatprep.subr.mxu0 0.0
    %776 = vmatpush1.msra.mxu0 %v673
    %777 = vmatprep.subr.mxu0 0.0
    %778 = vmatpush1.msra.mxu0 0.0
    %779 = vmatprep.subr.mxu0 0.0
    %780 = vmatpush1.msra.mxu0 0.0
    %781 = vmatprep.subr.mxu0 0.0
    %782 = vmatpush1.msra.mxu0 0.0
    %783 = vmatprep.subr.mxu0 0.0
    %784 = vmatpush1.msra.mxu0 0.0
    %785 = vmatprep.subr.mxu0 0.0
    %786 = vmatpush1.msra.mxu0 0.0
    %787 = vmatprep.subr.mxu0 0.0
    %788 = vmatpush1.msra.mxu0 0.0
    %789 = vmatprep.subr.mxu0 0.0
    %790 = vmatpush1.msra.mxu0 0.0
    %791 = vmatprep.subr.mxu0 0.0
    %792 = vmatpush1.msra.mxu0 0.0
    %793 = vmatprep.subr.mxu0 0.0
    %794 = vmatpush1.msra.mxu0 0.0
    %795 = vmatprep.subr.mxu0 0.0
    %796 = vmatpush1.msra.mxu0 0.0
    %797 = vmatprep.subr.mxu0 0.0
    %798 = vmatpush1.msra.mxu0 0.0
    %799 = vmatprep.subr.mxu0 0.0
    %800 = vmatpush1.msra.mxu0 0.0
    %801 = vmatprep.subr.mxu0 0.0
    %802 = vmatpush1.msra.mxu0 0.0
    %803 = vmatprep.subr.mxu0 0.0
    %804 = vmatpush1.msra.mxu0 0.0
    %805 = vmatprep.subr.mxu0 0.0
    %806 = vmatpush1.msra.mxu0 0.0
    %807 = vmatprep.subr.mxu0 0.0
    %808 = vmatpush1.msra.mxu0 0.0
    %809 = vmatprep.mubr.f32.mxu0 0.0
    %810 = vmatmul.mubr.f32.gmra.mrb[0].mxu0 %v618
    %v811 = vpop.f32.mrb[0].mxu0
    %v812 = vadd.f32 0.0, %v811
    %v813 = vpop.f32.mrb[0].mxu0
    %814 = vdwg.mxu0
    %v815 = vadd.f32 %v623, %v741
    %v816 = vxor.u32 %v815, 2147483648
    %v817 = vmul.f32 %v816, 1.442695
    %v818 = vpow.pop %v817
    %v819 = vadd.f32 %v818, 1.0
    %v820 = vrcp.pop %v819
    %v821 = vmul.f32 1.0, %v820
    %v822 = vadd.f32 %v624, %v743
    %v823 = vxor.u32 %v822, 2147483648
    %v824 = vmul.f32 %v823, 1.442695
    %v825 = vpow.pop %v824
    %v826 = vadd.f32 %v825, 1.0
    %v827 = vrcp.pop %v826
    %v828 = vmul.f32 1.0, %v827
    %v829 = vadd.f32 %v812, %v399
    %v830 = vmul.f32 %v821, %v829
    %v831 = vadd.f32 %v625, %v830
    %v832 = vtanh.pop %v831
    %v833 = vsub.f32 1.0, %v828
    %v834 = vmul.f32 %v833, %v832
    %v835 = vmul.f32 %v828, %v618
    %v836 = vadd.f32 %v834, %v835
    %s837 = scalar_lea.vmem [#allocation4], 8
    %838 = vst [vmem:[%s837] sm:$0xff] %v836
    %s839 = smul.u32 2, 3
    %s840 = smul.addr %s839, 8
    %s841 = scalar_lea.vmem [#allocation3], %s840
    %v842 = vld [vmem:[%s841] sm:$0xff]
    %v843 = vld [vmem:[%s841 + $0x8] sm:$0xff]
    %v844 = vld [vmem:[%s841 + $0x10] sm:$0xff]
    %v845 = vld [vmem:[#allocation5] sm:$0xff]
    %v846 = vld [vmem:[#allocation5 + $0x8] sm:$0xff]
    %v847 = vld [vmem:[#allocation5 + $0x10] sm:$0xff]
    %v848 = vld [vmem:[#allocation5 + $0x18] sm:$0xff]
    %v849 = vld [vmem:[#allocation5 + $0x20] sm:$0xff]
    %v850 = vld [vmem:[#allocation5 + $0x28] sm:$0xff]
    %v851 = vld [vmem:[#allocation5 + $0x30] sm:$0xff]
    %v852 = vld [vmem:[#allocation5 + $0x38] sm:$0xff]
    %v853 = vld [vmem:[#allocation5 + $0x40] sm:$0xff]
    %v854 = vld [vmem:[#allocation5 + $0x48] sm:$0xff]
    %v855 = vld [vmem:[#allocation5 + $0x50] sm:$0xff]
    %v856 = vld [vmem:[#allocation5 + $0x58] sm:$0xff]
    %v857 = vld [vmem:[#allocation5 + $0x60] sm:$0xff]
    %v858 = vld [vmem:[#allocation5 + $0x68] sm:$0xff]
    %v859 = vld [vmem:[#allocation5 + $0x70] sm:$0xff]
    %v860 = vld [vmem:[#allocation5 + $0x78] sm:$0xff]
    %v861 = vld [vmem:[#allocation5 + $0x80] sm:$0xff]
    %v862 = vld [vmem:[#allocation5 + $0x88] sm:$0xff]
    %v863 = vld [vmem:[#allocation5 + $0x90] sm:$0xff]
    %v864 = vld [vmem:[#allocation5 + $0x98] sm:$0xff]
    %v865 = vld [vmem:[#allocation5 + $0xa0] sm:$0xff]
    %v866 = vld [vmem:[#allocation5 + $0xa8] sm:$0xff]
    %v867 = vld [vmem:[#allocation5 + $0xb0] sm:$0xff]
    %v868 = vld [vmem:[#allocation5 + $0xb8] sm:$0xff]
    %v869 = vld [vmem:[#allocation5 + $0xc0] sm:$0xff]
    %v870 = vld [vmem:[#allocation5 + $0xc8] sm:$0xff]
    %v871 = vld [vmem:[#allocation5 + $0xd0] sm:$0xff]
    %v872 = vld [vmem:[#allocation5 + $0xd8] sm:$0xff]
    %v873 = vld [vmem:[#allocation5 + $0xe0] sm:$0xff]
    %v874 = vld [vmem:[#allocation5 + $0xe8] sm:$0xff]
    %v875 = vld [vmem:[#allocation5 + $0xf0] sm:$0xff]
    %v876 = vld [vmem:[#allocation5 + $0xf8] sm:$0xff]
    %v877 = vld [vmem:[#allocation5 + $0x100] sm:$0xff]
    %v878 = vld [vmem:[#allocation5 + $0x108] sm:$0xff]
    %v879 = vld [vmem:[#allocation5 + $0x110] sm:$0xff]
    %v880 = vld [vmem:[#allocation5 + $0x118] sm:$0xff]
    %v881 = vld [vmem:[#allocation5 + $0x120] sm:$0xff]
    %v882 = vld [vmem:[#allocation5 + $0x128] sm:$0xff]
    %v883 = vld [vmem:[#allocation5 + $0x130] sm:$0xff]
    %v884 = vld [vmem:[#allocation5 + $0x138] sm:$0xff]
    %v885 = vld [vmem:[#allocation5 + $0x140] sm:$0xff]
    %v886 = vld [vmem:[#allocation5 + $0x148] sm:$0xff]
    %v887 = vld [vmem:[#allocation5 + $0x150] sm:$0xff]
    %v888 = vld [vmem:[#allocation5 + $0x158] sm:$0xff]
    %v889 = vld [vmem:[#allocation5 + $0x160] sm:$0xff]
    %v890 = vld [vmem:[#allocation5 + $0x168] sm:$0xff]
    %v891 = vld [vmem:[#allocation5 + $0x170] sm:$0xff]
    %v892 = vld [vmem:[#allocation5 + $0x178] sm:$0xff]
    %893 = vmatprep.subr.mxu0 %v846
    %894 = vmatpush1.msra.mxu0 %v845
    %895 = vmatprep.subr.mxu0 %v849
    %896 = vmatpush1.msra.mxu0 %v848
    %897 = vmatprep.subr.mxu0 %v852
    %898 = vmatpush1.msra.mxu0 %v851
    %899 = vmatprep.subr.mxu0 %v855
    %900 = vmatpush1.msra.mxu0 %v854
    %901 = vmatprep.subr.mxu0 %v858
    %902 = vmatpush1.msra.mxu0 %v857
    %903 = vmatprep.subr.mxu0 %v861
    %904 = vmatpush1.msra.mxu0 %v860
    %905 = vmatprep.subr.mxu0 %v864
    %906 = vmatpush1.msra.mxu0 %v863
    %907 = vmatprep.subr.mxu0 %v867
    %908 = vmatpush1.msra.mxu0 %v866
    %909 = vmatprep.subr.mxu0 %v870
    %910 = vmatpush1.msra.mxu0 %v869
    %911 = vmatprep.subr.mxu0 %v873
    %912 = vmatpush1.msra.mxu0 %v872
    %913 = vmatprep.subr.mxu0 %v876
    %914 = vmatpush1.msra.mxu0 %v875
    %915 = vmatprep.subr.mxu0 %v879
    %916 = vmatpush1.msra.mxu0 %v878
    %917 = vmatprep.subr.mxu0 %v882
    %918 = vmatpush1.msra.mxu0 %v881
    %919 = vmatprep.subr.mxu0 %v885
    %920 = vmatpush1.msra.mxu0 %v884
    %921 = vmatprep.subr.mxu0 %v888
    %922 = vmatpush1.msra.mxu0 %v887
    %923 = vmatprep.subr.mxu0 %v891
    %924 = vmatpush1.msra.mxu0 %v890
    %925 = vmatprep.subr.mxu0 0.0
    %926 = vmatpush1.msra.mxu0 0.0
    %927 = vmatprep.subr.mxu0 0.0
    %928 = vmatpush1.msra.mxu0 0.0
    %929 = vmatprep.subr.mxu0 0.0
    %930 = vmatpush1.msra.mxu0 0.0
    %931 = vmatprep.subr.mxu0 0.0
    %932 = vmatpush1.msra.mxu0 0.0
    %933 = vmatprep.subr.mxu0 0.0
    %934 = vmatpush1.msra.mxu0 0.0
    %935 = vmatprep.subr.mxu0 0.0
    %936 = vmatpush1.msra.mxu0 0.0
    %937 = vmatprep.subr.mxu0 0.0
    %938 = vmatpush1.msra.mxu0 0.0
    %939 = vmatprep.subr.mxu0 0.0
    %940 = vmatpush1.msra.mxu0 0.0
    %941 = vmatprep.subr.mxu0 0.0
    %942 = vmatpush1.msra.mxu0 0.0
    %943 = vmatprep.subr.mxu0 0.0
    %944 = vmatpush1.msra.mxu0 0.0
    %945 = vmatprep.subr.mxu0 0.0
    %946 = vmatpush1.msra.mxu0 0.0
    %947 = vmatprep.subr.mxu0 0.0
    %948 = vmatpush1.msra.mxu0 0.0
    %949 = vmatprep.subr.mxu0 0.0
    %950 = vmatpush1.msra.mxu0 0.0
    %951 = vmatprep.subr.mxu0 0.0
    %952 = vmatpush1.msra.mxu0 0.0
    %953 = vmatprep.subr.mxu0 0.0
    %954 = vmatpush1.msra.mxu0 0.0
    %955 = vmatprep.subr.mxu0 0.0
    %956 = vmatpush1.msra.mxu0 0.0
    %957 = vmatprep.mubr.f32.mxu0 0.0
    %958 = vmatmul.mubr.f32.gmra.mrb[0].mxu0 %v836
    %v959 = vpop.f32.mrb[0].mxu0
    %v960 = vadd.f32 0.0, %v959
    %v961 = vpop.f32.mrb[0].mxu0
    %v962 = vadd.f32 0.0, %v961
    %963 = vdwg.mxu0
    %964 = vmatprep.subr.mxu0 0.0
    %965 = vmatpush1.msra.mxu0 %v847
    %966 = vmatprep.subr.mxu0 0.0
    %967 = vmatpush1.msra.mxu0 %v850
    %968 = vmatprep.subr.mxu0 0.0
    %969 = vmatpush1.msra.mxu0 %v853
    %970 = vmatprep.subr.mxu0 0.0
    %971 = vmatpush1.msra.mxu0 %v856
    %972 = vmatprep.subr.mxu0 0.0
    %973 = vmatpush1.msra.mxu0 %v859
    %974 = vmatprep.subr.mxu0 0.0
    %975 = vmatpush1.msra.mxu0 %v862
    %976 = vmatprep.subr.mxu0 0.0
    %977 = vmatpush1.msra.mxu0 %v865
    %978 = vmatprep.subr.mxu0 0.0
    %979 = vmatpush1.msra.mxu0 %v868
    %980 = vmatprep.subr.mxu0 0.0
    %981 = vmatpush1.msra.mxu0 %v871
    %982 = vmatprep.subr.mxu0 0.0
    %983 = vmatpush1.msra.mxu0 %v874
    %984 = vmatprep.subr.mxu0 0.0
    %985 = vmatpush1.msra.mxu0 %v877
    %986 = vmatprep.subr.mxu0 0.0
    %987 = vmatpush1.msra.mxu0 %v880
    %988 = vmatprep.subr.mxu0 0.0
    %989 = vmatpush1.msra.mxu0 %v883
    %990 = vmatprep.subr.mxu0 0.0
    %991 = vmatpush1.msra.mxu0 %v886
    %992 = vmatprep.subr.mxu0 0.0
    %993 = vmatpush1.msra.mxu0 %v889
    %994 = vmatprep.subr.mxu0 0.0
    %995 = vmatpush1.msra.mxu0 %v892
    %996 = vmatprep.subr.mxu0 0.0
    %997 = vmatpush1.msra.mxu0 0.0
    %998 = vmatprep.subr.mxu0 0.0
    %999 = vmatpush1.msra.mxu0 0.0
    %1000 = vmatprep.subr.mxu0 0.0
    %1001 = vmatpush1.msra.mxu0 0.0
    %1002 = vmatprep.subr.mxu0 0.0
    %1003 = vmatpush1.msra.mxu0 0.0
    %1004 = vmatprep.subr.mxu0 0.0
    %1005 = vmatpush1.msra.mxu0 0.0
    %1006 = vmatprep.subr.mxu0 0.0
    %1007 = vmatpush1.msra.mxu0 0.0
    %1008 = vmatprep.subr.mxu0 0.0
    %1009 = vmatpush1.msra.mxu0 0.0
    %1010 = vmatprep.subr.mxu0 0.0
    %1011 = vmatpush1.msra.mxu0 0.0
    %1012 = vmatprep.subr.mxu0 0.0
    %1013 = vmatpush1.msra.mxu0 0.0
    %1014 = vmatprep.subr.mxu0 0.0
    %1015 = vmatpush1.msra.mxu0 0.0
    %1016 = vmatprep.subr.mxu0 0.0
    %1017 = vmatpush1.msra.mxu0 0.0
    %1018 = vmatprep.subr.mxu0 0.0
    %1019 = vmatpush1.msra.mxu0 0.0
    %1020 = vmatprep.subr.mxu0 0.0
    %1021 = vmatpush1.msra.mxu0 0.0
    %1022 = vmatprep.subr.mxu0 0.0
    %1023 = vmatpush1.msra.mxu0 0.0
    %1024 = vmatprep.subr.mxu0 0.0
    %1025 = vmatpush1.msra.mxu0 0.0
    %1026 = vmatprep.subr.mxu0 0.0
    %1027 = vmatpush1.msra.mxu0 0.0
    %1028 = vmatprep.mubr.f32.mxu0 0.0
    %1029 = vmatmul.mubr.f32.gmra.mrb[0].mxu0 %v836
    %v1030 = vpop.f32.mrb[0].mxu0
    %v1031 = vadd.f32 0.0, %v1030
    %v1032 = vpop.f32.mrb[0].mxu0
    %1033 = vdwg.mxu0
    %v1034 = vadd.f32 %v842, %v960
    %v1035 = vxor.u32 %v1034, 2147483648
    %v1036 = vmul.f32 %v1035, 1.442695
    %v1037 = vpow.pop %v1036
    %v1038 = vadd.f32 %v1037, 1.0
    %v1039 = vrcp.pop %v1038
    %v1040 = vmul.f32 1.0, %v1039
    %v1041 = vadd.f32 %v843, %v962
    %v1042 = vxor.u32 %v1041, 2147483648
    %v1043 = vmul.f32 %v1042, 1.442695
    %v1044 = vpow.pop %v1043
    %v1045 = vadd.f32 %v1044, 1.0
    %v1046 = vrcp.pop %v1045
    %v1047 = vmul.f32 1.0, %v1046
    %v1048 = vadd.f32 %v1031, %v399
    %v1049 = vmul.f32 %v1040, %v1048
    %v1050 = vadd.f32 %v844, %v1049
    %v1051 = vtanh.pop %v1050
    %v1052 = vsub.f32 1.0, %v1047
    %v1053 = vmul.f32 %v1052, %v1051
    %v1054 = vmul.f32 %v1047, %v836
    %v1055 = vadd.f32 %v1053, %v1054
    %s1056 = scalar_lea.vmem [#allocation4], 16
    %1057 = vst [vmem:[%s1056] sm:$0xff] %v1055
    %s1058 = smul.u32 3, 3
    %s1059 = smul.addr %s1058, 8
    %s1060 = scalar_lea.vmem [#allocation3], %s1059
    %v1061 = vld [vmem:[%s1060] sm:$0xff]
    %v1062 = vld [vmem:[%s1060 + $0x8] sm:$0xff]
    %v1063 = vld [vmem:[%s1060 + $0x10] sm:$0xff]
    %v1064 = vld [vmem:[#allocation5] sm:$0xff]
    %v1065 = vld [vmem:[#allocation5 + $0x8] sm:$0xff]
    %v1066 = vld [vmem:[#allocation5 + $0x10] sm:$0xff]
    %v1067 = vld [vmem:[#allocation5 + $0x18] sm:$0xff]
    %v1068 = vld [vmem:[#allocation5 + $0x20] sm:$0xff]
    %v1069 = vld [vmem:[#allocation5 + $0x28] sm:$0xff]
    %v1070 = vld [vmem:[#allocation5 + $0x30] sm:$0xff]
    %v1071 = vld [vmem:[#allocation5 + $0x38] sm:$0xff]
    %v1072 = vld [vmem:[#allocation5 + $0x40] sm:$0xff]
    %v1073 = vld [vmem:[#allocation5 + $0x48] sm:$0xff]
    %v1074 = vld [vmem:[#allocation5 + $0x50] sm:$0xff]
    %v1075 = vld [vmem:[#allocation5 + $0x58] sm:$0xff]
    %v1076 = vld [vmem:[#allocation5 + $0x60] sm:$0xff]
    %v1077 = vld [vmem:[#allocation5 + $0x68] sm:$0xff]
    %v1078 = vld [vmem:[#allocation5 + $0x70] sm:$0xff]
    %v1079 = vld [vmem:[#allocation5 + $0x78] sm:$0xff]
    %v1080 = vld [vmem:[#allocation5 + $0x80] sm:$0xff]
    %v1081 = vld [vmem:[#allocation5 + $0x88] sm:$0xff]
    %v1082 = vld [vmem:[#allocation5 + $0x90] sm:$0xff]
    %v1083 = vld [vmem:[#allocation5 + $0x98] sm:$0xff]
    %v1084 = vld [vmem:[#allocation5 + $0xa0] sm:$0xff]
    %v1085 = vld [vmem:[#allocation5 + $0xa8] sm:$0xff]
    %v1086 = vld [vmem:[#allocation5 + $0xb0] sm:$0xff]
    %v1087 = vld [vmem:[#allocation5 + $0xb8] sm:$0xff]
    %v1088 = vld [vmem:[#allocation5 + $0xc0] sm:$0xff]
    %v1089 = vld [vmem:[#allocation5 + $0xc8] sm:$0xff]
    %v1090 = vld [vmem:[#allocation5 + $0xd0] sm:$0xff]
    %v1091 = vld [vmem:[#allocation5 + $0xd8] sm:$0xff]
    %v1092 = vld [vmem:[#allocation5 + $0xe0] sm:$0xff]
    %v1093 = vld [vmem:[#allocation5 + $0xe8] sm:$0xff]
    %v1094 = vld [vmem:[#allocation5 + $0xf0] sm:$0xff]
    %v1095 = vld [vmem:[#allocation5 + $0xf8] sm:$0xff]
    %v1096 = vld [vmem:[#allocation5 + $0x100] sm:$0xff]
    %v1097 = vld [vmem:[#allocation5 + $0x108] sm:$0xff]
    %v1098 = vld [vmem:[#allocation5 + $0x110] sm:$0xff]
    %v1099 = vld [vmem:[#allocation5 + $0x118] sm:$0xff]
    %v1100 = vld [vmem:[#allocation5 + $0x120] sm:$0xff]
    %v1101 = vld [vmem:[#allocation5 + $0x128] sm:$0xff]
    %v1102 = vld [vmem:[#allocation5 + $0x130] sm:$0xff]
    %v1103 = vld [vmem:[#allocation5 + $0x138] sm:$0xff]
    %v1104 = vld [vmem:[#allocation5 + $0x140] sm:$0xff]
    %v1105 = vld [vmem:[#allocation5 + $0x148] sm:$0xff]
    %v1106 = vld [vmem:[#allocation5 + $0x150] sm:$0xff]
    %v1107 = vld [vmem:[#allocation5 + $0x158] sm:$0xff]
    %v1108 = vld [vmem:[#allocation5 + $0x160] sm:$0xff]
    %v1109 = vld [vmem:[#allocation5 + $0x168] sm:$0xff]
    %v1110 = vld [vmem:[#allocation5 + $0x170] sm:$0xff]
    %v1111 = vld [vmem:[#allocation5 + $0x178] sm:$0xff]
    %1112 = vmatprep.subr.mxu0 %v1065
    %1113 = vmatpush1.msra.mxu0 %v1064
    %1114 = vmatprep.subr.mxu0 %v1068
    %1115 = vmatpush1.msra.mxu0 %v1067
    %1116 = vmatprep.subr.mxu0 %v1071
    %1117 = vmatpush1.msra.mxu0 %v1070
    %1118 = vmatprep.subr.mxu0 %v1074
    %1119 = vmatpush1.msra.mxu0 %v1073
    %1120 = vmatprep.subr.mxu0 %v1077
    %1121 = vmatpush1.msra.mxu0 %v1076
    %1122 = vmatprep.subr.mxu0 %v1080
    %1123 = vmatpush1.msra.mxu0 %v1079
    %1124 = vmatprep.subr.mxu0 %v1083
    %1125 = vmatpush1.msra.mxu0 %v1082
    %1126 = vmatprep.subr.mxu0 %v1086
    %1127 = vmatpush1.msra.mxu0 %v1085
    %1128 = vmatprep.subr.mxu0 %v1089
    %1129 = vmatpush1.msra.mxu0 %v1088
    %1130 = vmatprep.subr.mxu0 %v1092
    %1131 = vmatpush1.msra.mxu0 %v1091
    %1132 = vmatprep.subr.mxu0 %v1095
    %1133 = vmatpush1.msra.mxu0 %v1094
    %1134 = vmatprep.subr.mxu0 %v1098
    %1135 = vmatpush1.msra.mxu0 %v1097
    %1136 = vmatprep.subr.mxu0 %v1101
    %1137 = vmatpush1.msra.mxu0 %v1100
    %1138 = vmatprep.subr.mxu0 %v1104
    %1139 = vmatpush1.msra.mxu0 %v1103
    %1140 = vmatprep.subr.mxu0 %v1107
    %1141 = vmatpush1.msra.mxu0 %v1106
    %1142 = vmatprep.subr.mxu0 %v1110
    %1143 = vmatpush1.msra.mxu0 %v1109
    %1144 = vmatprep.subr.mxu0 0.0
    %1145 = vmatpush1.msra.mxu0 0.0
    %1146 = vmatprep.subr.mxu0 0.0
    %1147 = vmatpush1.msra.mxu0 0.0
    %1148 = vmatprep.subr.mxu0 0.0
    %1149 = vmatpush1.msra.mxu0 0.0
    %1150 = vmatprep.subr.mxu0 0.0
    %1151 = vmatpush1.msra.mxu0 0.0
    %1152 = vmatprep.subr.mxu0 0.0
    %1153 = vmatpush1.msra.mxu0 0.0
    %1154 = vmatprep.subr.mxu0 0.0
    %1155 = vmatpush1.msra.mxu0 0.0
    %1156 = vmatprep.subr.mxu0 0.0
    %1157 = vmatpush1.msra.mxu0 0.0
    %1158 = vmatprep.subr.mxu0 0.0
    %1159 = vmatpush1.msra.mxu0 0.0
    %1160 = vmatprep.subr.mxu0 0.0
    %1161 = vmatpush1.msra.mxu0 0.0
    %1162 = vmatprep.subr.mxu0 0.0
    %1163 = vmatpush1.msra.mxu0 0.0
    %1164 = vmatprep.subr.mxu0 0.0
    %1165 = vmatpush1.msra.mxu0 0.0
    %1166 = vmatprep.subr.mxu0 0.0
    %1167 = vmatpush1.msra.mxu0 0.0
    %1168 = vmatprep.subr.mxu0 0.0
    %1169 = vmatpush1.msra.mxu0 0.0
    %1170 = vmatprep.subr.mxu0 0.0
    %1171 = vmatpush1.msra.mxu0 0.0
    %1172 = vmatprep.subr.mxu0 0.0
    %1173 = vmatpush1.msra.mxu0 0.0
    %1174 = vmatprep.subr.mxu0 0.0
    %1175 = vmatpush1.msra.mxu0 0.0
    %1176 = vmatprep.mubr.f32.mxu0 0.0
    %1177 = vmatmul.mubr.f32.gmra.mrb[0].mxu0 %v1055
    %v1178 = vpop.f32.mrb[0].mxu0
    %v1179 = vadd.f32 0.0, %v1178
    %v1180 = vpop.f32.mrb[0].mxu0
    %v1181 = vadd.f32 0.0, %v1180
    %1182 = vdwg.mxu0
    %1183 = vmatprep.subr.mxu0 0.0
    %1184 = vmatpush1.msra.mxu0 %v1066
    %1185 = vmatprep.subr.mxu0 0.0
    %1186 = vmatpush1.msra.mxu0 %v1069
    %1187 = vmatprep.subr.mxu0 0.0
    %1188 = vmatpush1.msra.mxu0 %v1072
    %1189 = vmatprep.subr.mxu0 0.0
    %1190 = vmatpush1.msra.mxu0 %v1075
    %1191 = vmatprep.subr.mxu0 0.0
    %1192 = vmatpush1.msra.mxu0 %v1078
    %1193 = vmatprep.subr.mxu0 0.0
    %1194 = vmatpush1.msra.mxu0 %v1081
    %1195 = vmatprep.subr.mxu0 0.0
    %1196 = vmatpush1.msra.mxu0 %v1084
    %1197 = vmatprep.subr.mxu0 0.0
    %1198 = vmatpush1.msra.mxu0 %v1087
    %1199 = vmatprep.subr.mxu0 0.0
    %1200 = vmatpush1.msra.mxu0 %v1090
    %1201 = vmatprep.subr.mxu0 0.0
    %1202 = vmatpush1.msra.mxu0 %v1093
    %1203 = vmatprep.subr.mxu0 0.0
    %1204 = vmatpush1.msra.mxu0 %v1096
    %1205 = vmatprep.subr.mxu0 0.0
    %1206 = vmatpush1.msra.mxu0 %v1099
    %1207 = vmatprep.subr.mxu0 0.0
    %1208 = vmatpush1.msra.mxu0 %v1102
    %1209 = vmatprep.subr.mxu0 0.0
    %1210 = vmatpush1.msra.mxu0 %v1105
    %1211 = vmatprep.subr.mxu0 0.0
    %1212 = vmatpush1.msra.mxu0 %v1108
    %1213 = vmatprep.subr.mxu0 0.0
    %1214 = vmatpush1.msra.mxu0 %v1111
    %1215 = vmatprep.subr.mxu0 0.0
    %1216 = vmatpush1.msra.mxu0 0.0
    %1217 = vmatprep.subr.mxu0 0.0
    %1218 = vmatpush1.msra.mxu0 0.0
    %1219 = vmatprep.subr.mxu0 0.0
    %1220 = vmatpush1.msra.mxu0 0.0
    %1221 = vmatprep.subr.mxu0 0.0
    %1222 = vmatpush1.msra.mxu0 0.0
    %1223 = vmatprep.subr.mxu0 0.0
    %1224 = vmatpush1.msra.mxu0 0.0
    %1225 = vmatprep.subr.mxu0 0.0
    %1226 = vmatpush1.msra.mxu0 0.0
    %1227 = vmatprep.subr.mxu0 0.0
    %1228 = vmatpush1.msra.mxu0 0.0
    %1229 = vmatprep.subr.mxu0 0.0
    %1230 = vmatpush1.msra.mxu0 0.0
    %1231 = vmatprep.subr.mxu0 0.0
    %1232 = vmatpush1.msra.mxu0 0.0
    %1233 = vmatprep.subr.mxu0 0.0
    %1234 = vmatpush1.msra.mxu0 0.0
    %1235 = vmatprep.subr.mxu0 0.0
    %1236 = vmatpush1.msra.mxu0 0.0
    %1237 = vmatprep.subr.mxu0 0.0
    %1238 = vmatpush1.msra.mxu0 0.0
    %1239 = vmatprep.subr.mxu0 0.0
    %1240 = vmatpush1.msra.mxu0 0.0
    %1241 = vmatprep.subr.mxu0 0.0
    %1242 = vmatpush1.msra.mxu0 0.0
    %1243 = vmatprep.subr.mxu0 0.0
    %1244 = vmatpush1.msra.mxu0 0.0
    %1245 = vmatprep.subr.mxu0 0.0
    %1246 = vmatpush1.msra.mxu0 0.0
    %1247 = vmatprep.mubr.f32.mxu0 0.0
    %1248 = vmatmul.mubr.f32.gmra.mrb[0].mxu0 %v1055
    %v1249 = vpop.f32.mrb[0].mxu0
    %v1250 = vadd.f32 0.0, %v1249
    %v1251 = vpop.f32.mrb[0].mxu0
    %1252 = vdwg.mxu0
    %v1253 = vadd.f32 %v1061, %v1179
    %v1254 = vxor.u32 %v1253, 2147483648
    %v1255 = vmul.f32 %v1254, 1.442695
    %v1256 = vpow.pop %v1255
    %v1257 = vadd.f32 %v1256, 1.0
    %v1258 = vrcp.pop %v1257
    %v1259 = vmul.f32 1.0, %v1258
    %v1260 = vadd.f32 %v1062, %v1181
    %v1261 = vxor.u32 %v1260, 2147483648
    %v1262 = vmul.f32 %v1261, 1.442695
    %v1263 = vpow.pop %v1262
    %v1264 = vadd.f32 %v1263, 1.0
    %v1265 = vrcp.pop %v1264
    %v1266 = vmul.f32 1.0, %v1265
    %v1267 = vadd.f32 %v1250, %v399
    %v1268 = vmul.f32 %v1259, %v1267
    %v1269 = vadd.f32 %v1063, %v1268
    %v1270 = vtanh.pop %v1269
    %v1271 = vsub.f32 1.0, %v1266
    %v1272 = vmul.f32 %v1271, %v1270
    %v1273 = vmul.f32 %v1266, %v1055
    %v1274 = vadd.f32 %v1272, %v1273
    %s1275 = scalar_lea.vmem [#allocation4], 24
    %1276 = vst [vmem:[%s1275] sm:$0xff] %v1274
    %s1277 = smul.u32 4, 3
    %s1278 = smul.addr %s1277, 8
    %s1279 = scalar_lea.vmem [#allocation3], %s1278
    %v1280 = vld [vmem:[%s1279] sm:$0xff]
    %v1281 = vld [vmem:[%s1279 + $0x8] sm:$0xff]
    %v1282 = vld [vmem:[%s1279 + $0x10] sm:$0xff]
    %v1283 = vld [vmem:[#allocation5] sm:$0xff]
    %v1284 = vld [vmem:[#allocation5 + $0x8] sm:$0xff]
    %v1285 = vld [vmem:[#allocation5 + $0x10] sm:$0xff]
    %v1286 = vld [vmem:[#allocation5 + $0x18] sm:$0xff]
    %v1287 = vld [vmem:[#allocation5 + $0x20] sm:$0xff]
    %v1288 = vld [vmem:[#allocation5 + $0x28] sm:$0xff]
    %v1289 = vld [vmem:[#allocation5 + $0x30] sm:$0xff]
    %v1290 = vld [vmem:[#allocation5 + $0x38] sm:$0xff]
    %v1291 = vld [vmem:[#allocation5 + $0x40] sm:$0xff]
    %v1292 = vld [vmem:[#allocation5 + $0x48] sm:$0xff]
    %v1293 = vld [vmem:[#allocation5 + $0x50] sm:$0xff]
    %v1294 = vld [vmem:[#allocation5 + $0x58] sm:$0xff]
    %v1295 = vld [vmem:[#allocation5 + $0x60] sm:$0xff]
    %v1296 = vld [vmem:[#allocation5 + $0x68] sm:$0xff]
    %v1297 = vld [vmem:[#allocation5 + $0x70] sm:$0xff]
    %v1298 = vld [vmem:[#allocation5 + $0x78] sm:$0xff]
    %v1299 = vld [vmem:[#allocation5 + $0x80] sm:$0xff]
    %v1300 = vld [vmem:[#allocation5 + $0x88] sm:$0xff]
    %v1301 = vld [vmem:[#allocation5 + $0x90] sm:$0xff]
    %v1302 = vld [vmem:[#allocation5 + $0x98] sm:$0xff]
    %v1303 = vld [vmem:[#allocation5 + $0xa0] sm:$0xff]
    %v1304 = vld [vmem:[#allocation5 + $0xa8] sm:$0xff]
    %v1305 = vld [vmem:[#allocation5 + $0xb0] sm:$0xff]
    %v1306 = vld [vmem:[#allocation5 + $0xb8] sm:$0xff]
    %v1307 = vld [vmem:[#allocation5 + $0xc0] sm:$0xff]
    %v1308 = vld [vmem:[#allocation5 + $0xc8] sm:$0xff]
    %v1309 = vld [vmem:[#allocation5 + $0xd0] sm:$0xff]
    %v1310 = vld [vmem:[#allocation5 + $0xd8] sm:$0xff]
    %v1311 = vld [vmem:[#allocation5 + $0xe0] sm:$0xff]
    %v1312 = vld [vmem:[#allocation5 + $0xe8] sm:$0xff]
    %v1313 = vld [vmem:[#allocation5 + $0xf0] sm:$0xff]
    %v1314 = vld [vmem:[#allocation5 + $0xf8] sm:$0xff]
    %v1315 = vld [vmem:[#allocation5 + $0x100] sm:$0xff]
    %v1316 = vld [vmem:[#allocation5 + $0x108] sm:$0xff]
    %v1317 = vld [vmem:[#allocation5 + $0x110] sm:$0xff]
    %v1318 = vld [vmem:[#allocation5 + $0x118] sm:$0xff]
    %v1319 = vld [vmem:[#allocation5 + $0x120] sm:$0xff]
    %v1320 = vld [vmem:[#allocation5 + $0x128] sm:$0xff]
    %v1321 = vld [vmem:[#allocation5 + $0x130] sm:$0xff]
    %v1322 = vld [vmem:[#allocation5 + $0x138] sm:$0xff]
    %v1323 = vld [vmem:[#allocation5 + $0x140] sm:$0xff]
    %v1324 = vld [vmem:[#allocation5 + $0x148] sm:$0xff]
    %v1325 = vld [vmem:[#allocation5 + $0x150] sm:$0xff]
    %v1326 = vld [vmem:[#allocation5 + $0x158] sm:$0xff]
    %v1327 = vld [vmem:[#allocation5 + $0x160] sm:$0xff]
    %v1328 = vld [vmem:[#allocation5 + $0x168] sm:$0xff]
    %v1329 = vld [vmem:[#allocation5 + $0x170] sm:$0xff]
    %v1330 = vld [vmem:[#allocation5 + $0x178] sm:$0xff]
    %1331 = vmatprep.subr.mxu0 %v1284
    %1332 = vmatpush1.msra.mxu0 %v1283
    %1333 = vmatprep.subr.mxu0 %v1287
    %1334 = vmatpush1.msra.mxu0 %v1286
    %1335 = vmatprep.subr.mxu0 %v1290
    %1336 = vmatpush1.msra.mxu0 %v1289
    %1337 = vmatprep.subr.mxu0 %v1293
    %1338 = vmatpush1.msra.mxu0 %v1292
    %1339 = vmatprep.subr.mxu0 %v1296
    %1340 = vmatpush1.msra.mxu0 %v1295
    %1341 = vmatprep.subr.mxu0 %v1299
    %1342 = vmatpush1.msra.mxu0 %v1298
    %1343 = vmatprep.subr.mxu0 %v1302
    %1344 = vmatpush1.msra.mxu0 %v1301
    %1345 = vmatprep.subr.mxu0 %v1305
    %1346 = vmatpush1.msra.mxu0 %v1304
    %1347 = vmatprep.subr.mxu0 %v1308
    %1348 = vmatpush1.msra.mxu0 %v1307
    %1349 = vmatprep.subr.mxu0 %v1311
    %1350 = vmatpush1.msra.mxu0 %v1310
    %1351 = vmatprep.subr.mxu0 %v1314
    %1352 = vmatpush1.msra.mxu0 %v1313
    %1353 = vmatprep.subr.mxu0 %v1317
    %1354 = vmatpush1.msra.mxu0 %v1316
    %1355 = vmatprep.subr.mxu0 %v1320
    %1356 = vmatpush1.msra.mxu0 %v1319
    %1357 = vmatprep.subr.mxu0 %v1323
    %1358 = vmatpush1.msra.mxu0 %v1322
    %1359 = vmatprep.subr.mxu0 %v1326
    %1360 = vmatpush1.msra.mxu0 %v1325
    %1361 = vmatprep.subr.mxu0 %v1329
    %1362 = vmatpush1.msra.mxu0 %v1328
    %1363 = vmatprep.subr.mxu0 0.0
    %1364 = vmatpush1.msra.mxu0 0.0
    %1365 = vmatprep.subr.mxu0 0.0
    %1366 = vmatpush1.msra.mxu0 0.0
    %1367 = vmatprep.subr.mxu0 0.0
    %1368 = vmatpush1.msra.mxu0 0.0
    %1369 = vmatprep.subr.mxu0 0.0
    %1370 = vmatpush1.msra.mxu0 0.0
    %1371 = vmatprep.subr.mxu0 0.0
    %1372 = vmatpush1.msra.mxu0 0.0
    %1373 = vmatprep.subr.mxu0 0.0
    %1374 = vmatpush1.msra.mxu0 0.0
    %1375 = vmatprep.subr.mxu0 0.0
    %1376 = vmatpush1.msra.mxu0 0.0
    %1377 = vmatprep.subr.mxu0 0.0
    %1378 = vmatpush1.msra.mxu0 0.0
    %1379 = vmatprep.subr.mxu0 0.0
    %1380 = vmatpush1.msra.mxu0 0.0
    %1381 = vmatprep.subr.mxu0 0.0
    %1382 = vmatpush1.msra.mxu0 0.0
    %1383 = vmatprep.subr.mxu0 0.0
    %1384 = vmatpush1.msra.mxu0 0.0
    %1385 = vmatprep.subr.mxu0 0.0
    %1386 = vmatpush1.msra.mxu0 0.0
    %1387 = vmatprep.subr.mxu0 0.0
    %1388 = vmatpush1.msra.mxu0 0.0
    %1389 = vmatprep.subr.mxu0 0.0
    %1390 = vmatpush1.msra.mxu0 0.0
    %1391 = vmatprep.subr.mxu0 0.0
    %1392 = vmatpush1.msra.mxu0 0.0
    %1393 = vmatprep.subr.mxu0 0.0
    %1394 = vmatpush1.msra.mxu0 0.0
    %1395 = vmatprep.mubr.f32.mxu0 0.0
    %1396 = vmatmul.mubr.f32.gmra.mrb[0].mxu0 %v1274
    %v1397 = vpop.f32.mrb[0].mxu0
    %v1398 = vadd.f32 0.0, %v1397
    %v1399 = vpop.f32.mrb[0].mxu0
    %v1400 = vadd.f32 0.0, %v1399
    %1401 = vdwg.mxu0
    %1402 = vmatprep.subr.mxu0 0.0
    %1403 = vmatpush1.msra.mxu0 %v1285
    %1404 = vmatprep.subr.mxu0 0.0
    %1405 = vmatpush1.msra.mxu0 %v1288
    %1406 = vmatprep.subr.mxu0 0.0
    %1407 = vmatpush1.msra.mxu0 %v1291
    %1408 = vmatprep.subr.mxu0 0.0
    %1409 = vmatpush1.msra.mxu0 %v1294
    %1410 = vmatprep.subr.mxu0 0.0
    %1411 = vmatpush1.msra.mxu0 %v1297
    %1412 = vmatprep.subr.mxu0 0.0
    %1413 = vmatpush1.msra.mxu0 %v1300
    %1414 = vmatprep.subr.mxu0 0.0
    %1415 = vmatpush1.msra.mxu0 %v1303
    %1416 = vmatprep.subr.mxu0 0.0
    %1417 = vmatpush1.msra.mxu0 %v1306
    %1418 = vmatprep.subr.mxu0 0.0
    %1419 = vmatpush1.msra.mxu0 %v1309
    %1420 = vmatprep.subr.mxu0 0.0
    %1421 = vmatpush1.msra.mxu0 %v1312
    %1422 = vmatprep.subr.mxu0 0.0
    %1423 = vmatpush1.msra.mxu0 %v1315
    %1424 = vmatprep.subr.mxu0 0.0
    %1425 = vmatpush1.msra.mxu0 %v1318
    %1426 = vmatprep.subr.mxu0 0.0
    %1427 = vmatpush1.msra.mxu0 %v1321
    %1428 = vmatprep.subr.mxu0 0.0
    %1429 = vmatpush1.msra.mxu0 %v1324
    %1430 = vmatprep.subr.mxu0 0.0
    %1431 = vmatpush1.msra.mxu0 %v1327
    %1432 = vmatprep.subr.mxu0 0.0
    %1433 = vmatpush1.msra.mxu0 %v1330
    %1434 = vmatprep.subr.mxu0 0.0
    %1435 = vmatpush1.msra.mxu0 0.0
    %1436 = vmatprep.subr.mxu0 0.0
    %1437 = vmatpush1.msra.mxu0 0.0
    %1438 = vmatprep.subr.mxu0 0.0
    %1439 = vmatpush1.msra.mxu0 0.0
    %1440 = vmatprep.subr.mxu0 0.0
    %1441 = vmatpush1.msra.mxu0 0.0
    %1442 = vmatprep.subr.mxu0 0.0
    %1443 = vmatpush1.msra.mxu0 0.0
    %1444 = vmatprep.subr.mxu0 0.0
    %1445 = vmatpush1.msra.mxu0 0.0
    %1446 = vmatprep.subr.mxu0 0.0
    %1447 = vmatpush1.msra.mxu0 0.0
    %1448 = vmatprep.subr.mxu0 0.0
    %1449 = vmatpush1.msra.mxu0 0.0
    %1450 = vmatprep.subr.mxu0 0.0
    %1451 = vmatpush1.msra.mxu0 0.0
    %1452 = vmatprep.subr.mxu0 0.0
    %1453 = vmatpush1.msra.mxu0 0.0
    %1454 = vmatprep.subr.mxu0 0.0
    %1455 = vmatpush1.msra.mxu0 0.0
    %1456 = vmatprep.subr.mxu0 0.0
    %1457 = vmatpush1.msra.mxu0 0.0
    %1458 = vmatprep.subr.mxu0 0.0
    %1459 = vmatpush1.msra.mxu0 0.0
    %1460 = vmatprep.subr.mxu0 0.0
    %1461 = vmatpush1.msra.mxu0 0.0
    %1462 = vmatprep.subr.mxu0 0.0
    %1463 = vmatpush1.msra.mxu0 0.0
    %1464 = vmatprep.subr.mxu0 0.0
    %1465 = vmatpush1.msra.mxu0 0.0
    %1466 = vmatprep.mubr.f32.mxu0 0.0
    %1467 = vmatmul.mubr.f32.gmra.mrb[0].mxu0 %v1274
    %v1468 = vpop.f32.mrb[0].mxu0
    %v1469 = vadd.f32 0.0, %v1468
    %v1470 = vpop.f32.mrb[0].mxu0
    %1471 = vdwg.mxu0
    %v1472 = vadd.f32 %v1280, %v1398
    %v1473 = vxor.u32 %v1472, 2147483648
    %v1474 = vmul.f32 %v1473, 1.442695
    %v1475 = vpow.pop %v1474
    %v1476 = vadd.f32 %v1475, 1.0
    %v1477 = vrcp.pop %v1476
    %v1478 = vmul.f32 1.0, %v1477
    %v1479 = vadd.f32 %v1281, %v1400
    %v1480 = vxor.u32 %v1479, 2147483648
    %v1481 = vmul.f32 %v1480, 1.442695
    %v1482 = vpow.pop %v1481
    %v1483 = vadd.f32 %v1482, 1.0
    %v1484 = vrcp.pop %v1483
    %v1485 = vmul.f32 1.0, %v1484
    %v1486 = vadd.f32 %v1469, %v399
    %v1487 = vmul.f32 %v1478, %v1486
    %v1488 = vadd.f32 %v1282, %v1487
    %v1489 = vtanh.pop %v1488
    %v1490 = vsub.f32 1.0, %v1485
    %v1491 = vmul.f32 %v1490, %v1489
    %v1492 = vmul.f32 %v1485, %v1274
    %v1493 = vadd.f32 %v1491, %v1492
    %s1494 = scalar_lea.vmem [#allocation4], 32
    %1495 = vst [vmem:[%s1494] sm:$0xff] %v1493
    %s1496 = smul.u32 5, 3
    %s1497 = smul.addr %s1496, 8
    %s1498 = scalar_lea.vmem [#allocation3], %s1497
    %v1499 = vld [vmem:[%s1498] sm:$0xff]
    %v1500 = vld [vmem:[%s1498 + $0x8] sm:$0xff]
    %v1501 = vld [vmem:[%s1498 + $0x10] sm:$0xff]
    %v1502 = vld [vmem:[#allocation5] sm:$0xff]
    %v1503 = vld [vmem:[#allocation5 + $0x8] sm:$0xff]
    %v1504 = vld [vmem:[#allocation5 + $0x10] sm:$0xff]
    %v1505 = vld [vmem:[#allocation5 + $0x18] sm:$0xff]
    %v1506 = vld [vmem:[#allocation5 + $0x20] sm:$0xff]
    %v1507 = vld [vmem:[#allocation5 + $0x28] sm:$0xff]
    %v1508 = vld [vmem:[#allocation5 + $0x30] sm:$0xff]
    %v1509 = vld [vmem:[#allocation5 + $0x38] sm:$0xff]
    %v1510 = vld [vmem:[#allocation5 + $0x40] sm:$0xff]
    %v1511 = vld [vmem:[#allocation5 + $0x48] sm:$0xff]
    %v1512 = vld [vmem:[#allocation5 + $0x50] sm:$0xff]
    %v1513 = vld [vmem:[#allocation5 + $0x58] sm:$0xff]
    %v1514 = vld [vmem:[#allocation5 + $0x60] sm:$0xff]
    %v1515 = vld [vmem:[#allocation5 + $0x68] sm:$0xff]
    %v1516 = vld [vmem:[#allocation5 + $0x70] sm:$0xff]
    %v1517 = vld [vmem:[#allocation5 + $0x78] sm:$0xff]
    %v1518 = vld [vmem:[#allocation5 + $0x80] sm:$0xff]
    %v1519 = vld [vmem:[#allocation5 + $0x88] sm:$0xff]
    %v1520 = vld [vmem:[#allocation5 + $0x90] sm:$0xff]
    %v1521 = vld [vmem:[#allocation5 + $0x98] sm:$0xff]
    %v1522 = vld [vmem:[#allocation5 + $0xa0] sm:$0xff]
    %v1523 = vld [vmem:[#allocation5 + $0xa8] sm:$0xff]
    %v1524 = vld [vmem:[#allocation5 + $0xb0] sm:$0xff]
    %v1525 = vld [vmem:[#allocation5 + $0xb8] sm:$0xff]
    %v1526 = vld [vmem:[#allocation5 + $0xc0] sm:$0xff]
    %v1527 = vld [vmem:[#allocation5 + $0xc8] sm:$0xff]
    %v1528 = vld [vmem:[#allocation5 + $0xd0] sm:$0xff]
    %v1529 = vld [vmem:[#allocation5 + $0xd8] sm:$0xff]
    %v1530 = vld [vmem:[#allocation5 + $0xe0] sm:$0xff]
    %v1531 = vld [vmem:[#allocation5 + $0xe8] sm:$0xff]
    %v1532 = vld [vmem:[#allocation5 + $0xf0] sm:$0xff]
    %v1533 = vld [vmem:[#allocation5 + $0xf8] sm:$0xff]
    %v1534 = vld [vmem:[#allocation5 + $0x100] sm:$0xff]
    %v1535 = vld [vmem:[#allocation5 + $0x108] sm:$0xff]
    %v1536 = vld [vmem:[#allocation5 + $0x110] sm:$0xff]
    %v1537 = vld [vmem:[#allocation5 + $0x118] sm:$0xff]
    %v1538 = vld [vmem:[#allocation5 + $0x120] sm:$0xff]
    %v1539 = vld [vmem:[#allocation5 + $0x128] sm:$0xff]
    %v1540 = vld [vmem:[#allocation5 + $0x130] sm:$0xff]
    %v1541 = vld [vmem:[#allocation5 + $0x138] sm:$0xff]
    %v1542 = vld [vmem:[#allocation5 + $0x140] sm:$0xff]
    %v1543 = vld [vmem:[#allocation5 + $0x148] sm:$0xff]
    %v1544 = vld [vmem:[#allocation5 + $0x150] sm:$0xff]
    %v1545 = vld [vmem:[#allocation5 + $0x158] sm:$0xff]
    %v1546 = vld [vmem:[#allocation5 + $0x160] sm:$0xff]
    %v1547 = vld [vmem:[#allocation5 + $0x168] sm:$0xff]
    %v1548 = vld [vmem:[#allocation5 + $0x170] sm:$0xff]
    %v1549 = vld [vmem:[#allocation5 + $0x178] sm:$0xff]
    %1550 = vmatprep.subr.mxu0 %v1503
    %1551 = vmatpush1.msra.mxu0 %v1502
    %1552 = vmatprep.subr.mxu0 %v1506
    %1553 = vmatpush1.msra.mxu0 %v1505
    %1554 = vmatprep.subr.mxu0 %v1509
    %1555 = vmatpush1.msra.mxu0 %v1508
    %1556 = vmatprep.subr.mxu0 %v1512
    %1557 = vmatpush1.msra.mxu0 %v1511
    %1558 = vmatprep.subr.mxu0 %v1515
    %1559 = vmatpush1.msra.mxu0 %v1514
    %1560 = vmatprep.subr.mxu0 %v1518
    %1561 = vmatpush1.msra.mxu0 %v1517
    %1562 = vmatprep.subr.mxu0 %v1521
    %1563 = vmatpush1.msra.mxu0 %v1520
    %1564 = vmatprep.subr.mxu0 %v1524
    %1565 = vmatpush1.msra.mxu0 %v1523
    %1566 = vmatprep.subr.mxu0 %v1527
    %1567 = vmatpush1.msra.mxu0 %v1526
    %1568 = vmatprep.subr.mxu0 %v1530
    %1569 = vmatpush1.msra.mxu0 %v1529
    %1570 = vmatprep.subr.mxu0 %v1533
    %1571 = vmatpush1.msra.mxu0 %v1532
    %1572 = vmatprep.subr.mxu0 %v1536
    %1573 = vmatpush1.msra.mxu0 %v1535
    %1574 = vmatprep.subr.mxu0 %v1539
    %1575 = vmatpush1.msra.mxu0 %v1538
    %1576 = vmatprep.subr.mxu0 %v1542
    %1577 = vmatpush1.msra.mxu0 %v1541
    %1578 = vmatprep.subr.mxu0 %v1545
    %1579 = vmatpush1.msra.mxu0 %v1544
    %1580 = vmatprep.subr.mxu0 %v1548
    %1581 = vmatpush1.msra.mxu0 %v1547
    %1582 = vmatprep.subr.mxu0 0.0
    %1583 = vmatpush1.msra.mxu0 0.0
    %1584 = vmatprep.subr.mxu0 0.0
    %1585 = vmatpush1.msra.mxu0 0.0
    %1586 = vmatprep.subr.mxu0 0.0
    %1587 = vmatpush1.msra.mxu0 0.0
    %1588 = vmatprep.subr.mxu0 0.0
    %1589 = vmatpush1.msra.mxu0 0.0
    %1590 = vmatprep.subr.mxu0 0.0
    %1591 = vmatpush1.msra.mxu0 0.0
    %1592 = vmatprep.subr.mxu0 0.0
    %1593 = vmatpush1.msra.mxu0 0.0
    %1594 = vmatprep.subr.mxu0 0.0
    %1595 = vmatpush1.msra.mxu0 0.0
    %1596 = vmatprep.subr.mxu0 0.0
    %1597 = vmatpush1.msra.mxu0 0.0
    %1598 = vmatprep.subr.mxu0 0.0
    %1599 = vmatpush1.msra.mxu0 0.0
    %1600 = vmatprep.subr.mxu0 0.0
    %1601 = vmatpush1.msra.mxu0 0.0
    %1602 = vmatprep.subr.mxu0 0.0
    %1603 = vmatpush1.msra.mxu0 0.0
    %1604 = vmatprep.subr.mxu0 0.0
    %1605 = vmatpush1.msra.mxu0 0.0
    %1606 = vmatprep.subr.mxu0 0.0
    %1607 = vmatpush1.msra.mxu0 0.0
    %1608 = vmatprep.subr.mxu0 0.0
    %1609 = vmatpush1.msra.mxu0 0.0
    %1610 = vmatprep.subr.mxu0 0.0
    %1611 = vmatpush1.msra.mxu0 0.0
    %1612 = vmatprep.subr.mxu0 0.0
    %1613 = vmatpush1.msra.mxu0 0.0
    %1614 = vmatprep.mubr.f32.mxu0 0.0
    %1615 = vmatmul.mubr.f32.gmra.mrb[0].mxu0 %v1493
    %v1616 = vpop.f32.mrb[0].mxu0
    %v1617 = vadd.f32 0.0, %v1616
    %v1618 = vpop.f32.mrb[0].mxu0
    %v1619 = vadd.f32 0.0, %v1618
    %1620 = vdwg.mxu0
    %1621 = vmatprep.subr.mxu0 0.0
    %1622 = vmatpush1.msra.mxu0 %v1504
    %1623 = vmatprep.subr.mxu0 0.0
    %1624 = vmatpush1.msra.mxu0 %v1507
    %1625 = vmatprep.subr.mxu0 0.0
    %1626 = vmatpush1.msra.mxu0 %v1510
    %1627 = vmatprep.subr.mxu0 0.0
    %1628 = vmatpush1.msra.mxu0 %v1513
    %1629 = vmatprep.subr.mxu0 0.0
    %1630 = vmatpush1.msra.mxu0 %v1516
    %1631 = vmatprep.subr.mxu0 0.0
    %1632 = vmatpush1.msra.mxu0 %v1519
    %1633 = vmatprep.subr.mxu0 0.0
    %1634 = vmatpush1.msra.mxu0 %v1522
    %1635 = vmatprep.subr.mxu0 0.0
    %1636 = vmatpush1.msra.mxu0 %v1525
    %1637 = vmatprep.subr.mxu0 0.0
    %1638 = vmatpush1.msra.mxu0 %v1528
    %1639 = vmatprep.subr.mxu0 0.0
    %1640 = vmatpush1.msra.mxu0 %v1531
    %1641 = vmatprep.subr.mxu0 0.0
    %1642 = vmatpush1.msra.mxu0 %v1534
    %1643 = vmatprep.subr.mxu0 0.0
    %1644 = vmatpush1.msra.mxu0 %v1537
    %1645 = vmatprep.subr.mxu0 0.0
    %1646 = vmatpush1.msra.mxu0 %v1540
    %1647 = vmatprep.subr.mxu0 0.0
    %1648 = vmatpush1.msra.mxu0 %v1543
    %1649 = vmatprep.subr.mxu0 0.0
    %1650 = vmatpush1.msra.mxu0 %v1546
    %1651 = vmatprep.subr.mxu0 0.0
    %1652 = vmatpush1.msra.mxu0 %v1549
    %1653 = vmatprep.subr.mxu0 0.0
    %1654 = vmatpush1.msra.mxu0 0.0
    %1655 = vmatprep.subr.mxu0 0.0
    %1656 = vmatpush1.msra.mxu0 0.0
    %1657 = vmatprep.subr.mxu0 0.0
    %1658 = vmatpush1.msra.mxu0 0.0
    %1659 = vmatprep.subr.mxu0 0.0
    %1660 = vmatpush1.msra.mxu0 0.0
    %1661 = vmatprep.subr.mxu0 0.0
    %1662 = vmatpush1.msra.mxu0 0.0
    %1663 = vmatprep.subr.mxu0 0.0
    %1664 = vmatpush1.msra.mxu0 0.0
    %1665 = vmatprep.subr.mxu0 0.0
    %1666 = vmatpush1.msra.mxu0 0.0
    %1667 = vmatprep.subr.mxu0 0.0
    %1668 = vmatpush1.msra.mxu0 0.0
    %1669 = vmatprep.subr.mxu0 0.0
    %1670 = vmatpush1.msra.mxu0 0.0
    %1671 = vmatprep.subr.mxu0 0.0
    %1672 = vmatpush1.msra.mxu0 0.0
    %1673 = vmatprep.subr.mxu0 0.0
    %1674 = vmatpush1.msra.mxu0 0.0
    %1675 = vmatprep.subr.mxu0 0.0
    %1676 = vmatpush1.msra.mxu0 0.0
    %1677 = vmatprep.subr.mxu0 0.0
    %1678 = vmatpush1.msra.mxu0 0.0
    %1679 = vmatprep.subr.mxu0 0.0
    %1680 = vmatpush1.msra.mxu0 0.0
    %1681 = vmatprep.subr.mxu0 0.0
    %1682 = vmatpush1.msra.mxu0 0.0
    %1683 = vmatprep.subr.mxu0 0.0
    %1684 = vmatpush1.msra.mxu0 0.0
    %1685 = vmatprep.mubr.f32.mxu0 0.0
    %1686 = vmatmul.mubr.f32.gmra.mrb[0].mxu0 %v1493
    %v1687 = vpop.f32.mrb[0].mxu0
    %v1688 = vadd.f32 0.0, %v1687
    %v1689 = vpop.f32.mrb[0].mxu0
    %1690 = vdwg.mxu0
    %v1691 = vadd.f32 %v1499, %v1617
    %v1692 = vxor.u32 %v1691, 2147483648
    %v1693 = vmul.f32 %v1692, 1.442695
    %v1694 = vpow.pop %v1693
    %v1695 = vadd.f32 %v1694, 1.0
    %v1696 = vrcp.pop %v1695
    %v1697 = vmul.f32 1.0, %v1696
    %v1698 = vadd.f32 %v1500, %v1619
    %v1699 = vxor.u32 %v1698, 2147483648
    %v1700 = vmul.f32 %v1699, 1.442695
    %v1701 = vpow.pop %v1700
    %v1702 = vadd.f32 %v1701, 1.0
    %v1703 = vrcp.pop %v1702
    %v1704 = vmul.f32 1.0, %v1703
    %v1705 = vadd.f32 %v1688, %v399
    %v1706 = vmul.f32 %v1697, %v1705
    %v1707 = vadd.f32 %v1501, %v1706
    %v1708 = vtanh.pop %v1707
    %v1709 = vsub.f32 1.0, %v1704
    %v1710 = vmul.f32 %v1709, %v1708
    %v1711 = vmul.f32 %v1704, %v1493
    %v1712 = vadd.f32 %v1710, %v1711
    %s1713 = scalar_lea.vmem [#allocation4], 40
    %1714 = vst [vmem:[%s1713] sm:$0xff] %v1712
    %s1715 = smul.u32 6, 3
    %s1716 = smul.addr %s1715, 8
    %s1717 = scalar_lea.vmem [#allocation3], %s1716
    %v1718 = vld [vmem:[%s1717] sm:$0xff]
    %v1719 = vld [vmem:[%s1717 + $0x8] sm:$0xff]
    %v1720 = vld [vmem:[%s1717 + $0x10] sm:$0xff]
    %v1721 = vld [vmem:[#allocation5] sm:$0xff]
    %v1722 = vld [vmem:[#allocation5 + $0x8] sm:$0xff]
    %v1723 = vld [vmem:[#allocation5 + $0x10] sm:$0xff]
    %v1724 = vld [vmem:[#allocation5 + $0x18] sm:$0xff]
    %v1725 = vld [vmem:[#allocation5 + $0x20] sm:$0xff]
    %v1726 = vld [vmem:[#allocation5 + $0x28] sm:$0xff]
    %v1727 = vld [vmem:[#allocation5 + $0x30] sm:$0xff]
    %v1728 = vld [vmem:[#allocation5 + $0x38] sm:$0xff]
    %v1729 = vld [vmem:[#allocation5 + $0x40] sm:$0xff]
    %v1730 = vld [vmem:[#allocation5 + $0x48] sm:$0xff]
    %v1731 = vld [vmem:[#allocation5 + $0x50] sm:$0xff]
    %v1732 = vld [vmem:[#allocation5 + $0x58] sm:$0xff]
    %v1733 = vld [vmem:[#allocation5 + $0x60] sm:$0xff]
    %v1734 = vld [vmem:[#allocation5 + $0x68] sm:$0xff]
    %v1735 = vld [vmem:[#allocation5 + $0x70] sm:$0xff]
    %v1736 = vld [vmem:[#allocation5 + $0x78] sm:$0xff]
    %v1737 = vld [vmem:[#allocation5 + $0x80] sm:$0xff]
    %v1738 = vld [vmem:[#allocation5 + $0x88] sm:$0xff]
    %v1739 = vld [vmem:[#allocation5 + $0x90] sm:$0xff]
    %v1740 = vld [vmem:[#allocation5 + $0x98] sm:$0xff]
    %v1741 = vld [vmem:[#allocation5 + $0xa0] sm:$0xff]
    %v1742 = vld [vmem:[#allocation5 + $0xa8] sm:$0xff]
    %v1743 = vld [vmem:[#allocation5 + $0xb0] sm:$0xff]
    %v1744 = vld [vmem:[#allocation5 + $0xb8] sm:$0xff]
    %v1745 = vld [vmem:[#allocation5 + $0xc0] sm:$0xff]
    %v1746 = vld [vmem:[#allocation5 + $0xc8] sm:$0xff]
    %v1747 = vld [vmem:[#allocation5 + $0xd0] sm:$0xff]
    %v1748 = vld [vmem:[#allocation5 + $0xd8] sm:$0xff]
    %v1749 = vld [vmem:[#allocation5 + $0xe0] sm:$0xff]
    %v1750 = vld [vmem:[#allocation5 + $0xe8] sm:$0xff]
    %v1751 = vld [vmem:[#allocation5 + $0xf0] sm:$0xff]
    %v1752 = vld [vmem:[#allocation5 + $0xf8] sm:$0xff]
    %v1753 = vld [vmem:[#allocation5 + $0x100] sm:$0xff]
    %v1754 = vld [vmem:[#allocation5 + $0x108] sm:$0xff]
    %v1755 = vld [vmem:[#allocation5 + $0x110] sm:$0xff]
    %v1756 = vld [vmem:[#allocation5 + $0x118] sm:$0xff]
    %v1757 = vld [vmem:[#allocation5 + $0x120] sm:$0xff]
    %v1758 = vld [vmem:[#allocation5 + $0x128] sm:$0xff]
    %v1759 = vld [vmem:[#allocation5 + $0x130] sm:$0xff]
    %v1760 = vld [vmem:[#allocation5 + $0x138] sm:$0xff]
    %v1761 = vld [vmem:[#allocation5 + $0x140] sm:$0xff]
    %v1762 = vld [vmem:[#allocation5 + $0x148] sm:$0xff]
    %v1763 = vld [vmem:[#allocation5 + $0x150] sm:$0xff]
    %v1764 = vld [vmem:[#allocation5 + $0x158] sm:$0xff]
    %v1765 = vld [vmem:[#allocation5 + $0x160] sm:$0xff]
    %v1766 = vld [vmem:[#allocation5 + $0x168] sm:$0xff]
    %v1767 = vld [vmem:[#allocation5 + $0x170] sm:$0xff]
    %v1768 = vld [vmem:[#allocation5 + $0x178] sm:$0xff]
    %1769 = vmatprep.subr.mxu0 %v1722
    %1770 = vmatpush1.msra.mxu0 %v1721
    %1771 = vmatprep.subr.mxu0 %v1725
    %1772 = vmatpush1.msra.mxu0 %v1724
    %1773 = vmatprep.subr.mxu0 %v1728
    %1774 = vmatpush1.msra.mxu0 %v1727
    %1775 = vmatprep.subr.mxu0 %v1731
    %1776 = vmatpush1.msra.mxu0 %v1730
    %1777 = vmatprep.subr.mxu0 %v1734
    %1778 = vmatpush1.msra.mxu0 %v1733
    %1779 = vmatprep.subr.mxu0 %v1737
    %1780 = vmatpush1.msra.mxu0 %v1736
    %1781 = vmatprep.subr.mxu0 %v1740
    %1782 = vmatpush1.msra.mxu0 %v1739
    %1783 = vmatprep.subr.mxu0 %v1743
    %1784 = vmatpush1.msra.mxu0 %v1742
    %1785 = vmatprep.subr.mxu0 %v1746
    %1786 = vmatpush1.msra.mxu0 %v1745
    %1787 = vmatprep.subr.mxu0 %v1749
    %1788 = vmatpush1.msra.mxu0 %v1748
    %1789 = vmatprep.subr.mxu0 %v1752
    %1790 = vmatpush1.msra.mxu0 %v1751
    %1791 = vmatprep.subr.mxu0 %v1755
    %1792 = vmatpush1.msra.mxu0 %v1754
    %1793 = vmatprep.subr.mxu0 %v1758
    %1794 = vmatpush1.msra.mxu0 %v1757
    %1795 = vmatprep.subr.mxu0 %v1761
    %1796 = vmatpush1.msra.mxu0 %v1760
    %1797 = vmatprep.subr.mxu0 %v1764
    %1798 = vmatpush1.msra.mxu0 %v1763
    %1799 = vmatprep.subr.mxu0 %v1767
    %1800 = vmatpush1.msra.mxu0 %v1766
    %1801 = vmatprep.subr.mxu0 0.0
    %1802 = vmatpush1.msra.mxu0 0.0
    %1803 = vmatprep.subr.mxu0 0.0
    %1804 = vmatpush1.msra.mxu0 0.0
    %1805 = vmatprep.subr.mxu0 0.0
    %1806 = vmatpush1.msra.mxu0 0.0
    %1807 = vmatprep.subr.mxu0 0.0
    %1808 = vmatpush1.msra.mxu0 0.0
    %1809 = vmatprep.subr.mxu0 0.0
    %1810 = vmatpush1.msra.mxu0 0.0
    %1811 = vmatprep.subr.mxu0 0.0
    %1812 = vmatpush1.msra.mxu0 0.0
    %1813 = vmatprep.subr.mxu0 0.0
    %1814 = vmatpush1.msra.mxu0 0.0
    %1815 = vmatprep.subr.mxu0 0.0
    %1816 = vmatpush1.msra.mxu0 0.0
    %1817 = vmatprep.subr.mxu0 0.0
    %1818 = vmatpush1.msra.mxu0 0.0
    %1819 = vmatprep.subr.mxu0 0.0
    %1820 = vmatpush1.msra.mxu0 0.0
    %1821 = vmatprep.subr.mxu0 0.0
    %1822 = vmatpush1.msra.mxu0 0.0
    %1823 = vmatprep.subr.mxu0 0.0
    %1824 = vmatpush1.msra.mxu0 0.0
    %1825 = vmatprep.subr.mxu0 0.0
    %1826 = vmatpush1.msra.mxu0 0.0
    %1827 = vmatprep.subr.mxu0 0.0
    %1828 = vmatpush1.msra.mxu0 0.0
    %1829 = vmatprep.subr.mxu0 0.0
    %1830 = vmatpush1.msra.mxu0 0.0
    %1831 = vmatprep.subr.mxu0 0.0
    %1832 = vmatpush1.msra.mxu0 0.0
    %1833 = vmatprep.mubr.f32.mxu0 0.0
    %1834 = vmatmul.mubr.f32.gmra.mrb[0].mxu0 %v1712
    %v1835 = vpop.f32.mrb[0].mxu0
    %v1836 = vadd.f32 0.0, %v1835
    %v1837 = vpop.f32.mrb[0].mxu0
    %v1838 = vadd.f32 0.0, %v1837
    %1839 = vdwg.mxu0
    %1840 = vmatprep.subr.mxu0 0.0
    %1841 = vmatpush1.msra.mxu0 %v1723
    %1842 = vmatprep.subr.mxu0 0.0
    %1843 = vmatpush1.msra.mxu0 %v1726
    %1844 = vmatprep.subr.mxu0 0.0
    %1845 = vmatpush1.msra.mxu0 %v1729
    %1846 = vmatprep.subr.mxu0 0.0
    %1847 = vmatpush1.msra.mxu0 %v1732
    %1848 = vmatprep.subr.mxu0 0.0
    %1849 = vmatpush1.msra.mxu0 %v1735
    %1850 = vmatprep.subr.mxu0 0.0
    %1851 = vmatpush1.msra.mxu0 %v1738
    %1852 = vmatprep.subr.mxu0 0.0
    %1853 = vmatpush1.msra.mxu0 %v1741
    %1854 = vmatprep.subr.mxu0 0.0
    %1855 = vmatpush1.msra.mxu0 %v1744
    %1856 = vmatprep.subr.mxu0 0.0
    %1857 = vmatpush1.msra.mxu0 %v1747
    %1858 = vmatprep.subr.mxu0 0.0
    %1859 = vmatpush1.msra.mxu0 %v1750
    %1860 = vmatprep.subr.mxu0 0.0
    %1861 = vmatpush1.msra.mxu0 %v1753
    %1862 = vmatprep.subr.mxu0 0.0
    %1863 = vmatpush1.msra.mxu0 %v1756
    %1864 = vmatprep.subr.mxu0 0.0
    %1865 = vmatpush1.msra.mxu0 %v1759
    %1866 = vmatprep.subr.mxu0 0.0
    %1867 = vmatpush1.msra.mxu0 %v1762
    %1868 = vmatprep.subr.mxu0 0.0
    %1869 = vmatpush1.msra.mxu0 %v1765
    %1870 = vmatprep.subr.mxu0 0.0
    %1871 = vmatpush1.msra.mxu0 %v1768
    %1872 = vmatprep.subr.mxu0 0.0
    %1873 = vmatpush1.msra.mxu0 0.0
    %1874 = vmatprep.subr.mxu0 0.0
    %1875 = vmatpush1.msra.mxu0 0.0
    %1876 = vmatprep.subr.mxu0 0.0
    %1877 = vmatpush1.msra.mxu0 0.0
    %1878 = vmatprep.subr.mxu0 0.0
    %1879 = vmatpush1.msra.mxu0 0.0
    %1880 = vmatprep.subr.mxu0 0.0
    %1881 = vmatpush1.msra.mxu0 0.0
    %1882 = vmatprep.subr.mxu0 0.0
    %1883 = vmatpush1.msra.mxu0 0.0
    %1884 = vmatprep.subr.mxu0 0.0
    %1885 = vmatpush1.msra.mxu0 0.0
    %1886 = vmatprep.subr.mxu0 0.0
    %1887 = vmatpush1.msra.mxu0 0.0
    %1888 = vmatprep.subr.mxu0 0.0
    %1889 = vmatpush1.msra.mxu0 0.0
    %1890 = vmatprep.subr.mxu0 0.0
    %1891 = vmatpush1.msra.mxu0 0.0
    %1892 = vmatprep.subr.mxu0 0.0
    %1893 = vmatpush1.msra.mxu0 0.0
    %1894 = vmatprep.subr.mxu0 0.0
    %1895 = vmatpush1.msra.mxu0 0.0
    %1896 = vmatprep.subr.mxu0 0.0
    %1897 = vmatpush1.msra.mxu0 0.0
    %1898 = vmatprep.subr.mxu0 0.0
    %1899 = vmatpush1.msra.mxu0 0.0
    %1900 = vmatprep.subr.mxu0 0.0
    %1901 = vmatpush1.msra.mxu0 0.0
    %1902 = vmatprep.subr.mxu0 0.0
    %1903 = vmatpush1.msra.mxu0 0.0
    %1904 = vmatprep.mubr.f32.mxu0 0.0
    %1905 = vmatmul.mubr.f32.gmra.mrb[0].mxu0 %v1712
    %v1906 = vpop.f32.mrb[0].mxu0
    %v1907 = vadd.f32 0.0, %v1906
    %v1908 = vpop.f32.mrb[0].mxu0
    %1909 = vdwg.mxu0
    %v1910 = vadd.f32 %v1718, %v1836
    %v1911 = vxor.u32 %v1910, 2147483648
    %v1912 = vmul.f32 %v1911, 1.442695
    %v1913 = vpow.pop %v1912
    %v1914 = vadd.f32 %v1913, 1.0
    %v1915 = vrcp.pop %v1914
    %v1916 = vmul.f32 1.0, %v1915
    %v1917 = vadd.f32 %v1719, %v1838
    %v1918 = vxor.u32 %v1917, 2147483648
    %v1919 = vmul.f32 %v1918, 1.442695
    %v1920 = vpow.pop %v1919
    %v1921 = vadd.f32 %v1920, 1.0
    %v1922 = vrcp.pop %v1921
    %v1923 = vmul.f32 1.0, %v1922
    %v1924 = vadd.f32 %v1907, %v399
    %v1925 = vmul.f32 %v1916, %v1924
    %v1926 = vadd.f32 %v1720, %v1925
    %v1927 = vtanh.pop %v1926
    %v1928 = vsub.f32 1.0, %v1923
    %v1929 = vmul.f32 %v1928, %v1927
    %v1930 = vmul.f32 %v1923, %v1712
    %v1931 = vadd.f32 %v1929, %v1930
    %s1932 = scalar_lea.vmem [#allocation4], 48
    %1933 = vst [vmem:[%s1932] sm:$0xff] %v1931
    %s1934 = smul.u32 7, 3
    %s1935 = smul.addr %s1934, 8
    %s1936 = scalar_lea.vmem [#allocation3], %s1935
    %v1937 = vld [vmem:[%s1936] sm:$0xff]
    %v1938 = vld [vmem:[%s1936 + $0x8] sm:$0xff]
    %v1939 = vld [vmem:[%s1936 + $0x10] sm:$0xff]
    %v1940 = vld [vmem:[#allocation5] sm:$0xff]
    %v1941 = vld [vmem:[#allocation5 + $0x8] sm:$0xff]
    %v1942 = vld [vmem:[#allocation5 + $0x10] sm:$0xff]
    %v1943 = vld [vmem:[#allocation5 + $0x18] sm:$0xff]
    %v1944 = vld [vmem:[#allocation5 + $0x20] sm:$0xff]
    %v1945 = vld [vmem:[#allocation5 + $0x28] sm:$0xff]
    %v1946 = vld [vmem:[#allocation5 + $0x30] sm:$0xff]
    %v1947 = vld [vmem:[#allocation5 + $0x38] sm:$0xff]
    %v1948 = vld [vmem:[#allocation5 + $0x40] sm:$0xff]
    %v1949 = vld [vmem:[#allocation5 + $0x48] sm:$0xff]
    %v1950 = vld [vmem:[#allocation5 + $0x50] sm:$0xff]
    %v1951 = vld [vmem:[#allocation5 + $0x58] sm:$0xff]
    %v1952 = vld [vmem:[#allocation5 + $0x60] sm:$0xff]
    %v1953 = vld [vmem:[#allocation5 + $0x68] sm:$0xff]
    %v1954 = vld [vmem:[#allocation5 + $0x70] sm:$0xff]
    %v1955 = vld [vmem:[#allocation5 + $0x78] sm:$0xff]
    %v1956 = vld [vmem:[#allocation5 + $0x80] sm:$0xff]
    %v1957 = vld [vmem:[#allocation5 + $0x88] sm:$0xff]
    %v1958 = vld [vmem:[#allocation5 + $0x90] sm:$0xff]
    %v1959 = vld [vmem:[#allocation5 + $0x98] sm:$0xff]
    %v1960 = vld [vmem:[#allocation5 + $0xa0] sm:$0xff]
    %v1961 = vld [vmem:[#allocation5 + $0xa8] sm:$0xff]
    %v1962 = vld [vmem:[#allocation5 + $0xb0] sm:$0xff]
    %v1963 = vld [vmem:[#allocation5 + $0xb8] sm:$0xff]
    %v1964 = vld [vmem:[#allocation5 + $0xc0] sm:$0xff]
    %v1965 = vld [vmem:[#allocation5 + $0xc8] sm:$0xff]
    %v1966 = vld [vmem:[#allocation5 + $0xd0] sm:$0xff]
    %v1967 = vld [vmem:[#allocation5 + $0xd8] sm:$0xff]
    %v1968 = vld [vmem:[#allocation5 + $0xe0] sm:$0xff]
    %v1969 = vld [vmem:[#allocation5 + $0xe8] sm:$0xff]
    %v1970 = vld [vmem:[#allocation5 + $0xf0] sm:$0xff]
    %v1971 = vld [vmem:[#allocation5 + $0xf8] sm:$0xff]
    %v1972 = vld [vmem:[#allocation5 + $0x100] sm:$0xff]
    %v1973 = vld [vmem:[#allocation5 + $0x108] sm:$0xff]
    %v1974 = vld [vmem:[#allocation5 + $0x110] sm:$0xff]
    %v1975 = vld [vmem:[#allocation5 + $0x118] sm:$0xff]
    %v1976 = vld [vmem:[#allocation5 + $0x120] sm:$0xff]
    %v1977 = vld [vmem:[#allocation5 + $0x128] sm:$0xff]
    %v1978 = vld [vmem:[#allocation5 + $0x130] sm:$0xff]
    %v1979 = vld [vmem:[#allocation5 + $0x138] sm:$0xff]
    %v1980 = vld [vmem:[#allocation5 + $0x140] sm:$0xff]
    %v1981 = vld [vmem:[#allocation5 + $0x148] sm:$0xff]
    %v1982 = vld [vmem:[#allocation5 + $0x150] sm:$0xff]
    %v1983 = vld [vmem:[#allocation5 + $0x158] sm:$0xff]
    %v1984 = vld [vmem:[#allocation5 + $0x160] sm:$0xff]
    %v1985 = vld [vmem:[#allocation5 + $0x168] sm:$0xff]
    %v1986 = vld [vmem:[#allocation5 + $0x170] sm:$0xff]
    %v1987 = vld [vmem:[#allocation5 + $0x178] sm:$0xff]
    %1988 = vmatprep.subr.mxu0 %v1941
    %1989 = vmatpush1.msra.mxu0 %v1940
    %1990 = vmatprep.subr.mxu0 %v1944
    %1991 = vmatpush1.msra.mxu0 %v1943
    %1992 = vmatprep.subr.mxu0 %v1947
    %1993 = vmatpush1.msra.mxu0 %v1946
    %1994 = vmatprep.subr.mxu0 %v1950
    %1995 = vmatpush1.msra.mxu0 %v1949
    %1996 = vmatprep.subr.mxu0 %v1953
    %1997 = vmatpush1.msra.mxu0 %v1952
    %1998 = vmatprep.subr.mxu0 %v1956
    %1999 = vmatpush1.msra.mxu0 %v1955
    %2000 = vmatprep.subr.mxu0 %v1959
    %2001 = vmatpush1.msra.mxu0 %v1958
    %2002 = vmatprep.subr.mxu0 %v1962
    %2003 = vmatpush1.msra.mxu0 %v1961
    %2004 = vmatprep.subr.mxu0 %v1965
    %2005 = vmatpush1.msra.mxu0 %v1964
    %2006 = vmatprep.subr.mxu0 %v1968
    %2007 = vmatpush1.msra.mxu0 %v1967
    %2008 = vmatprep.subr.mxu0 %v1971
    %2009 = vmatpush1.msra.mxu0 %v1970
    %2010 = vmatprep.subr.mxu0 %v1974
    %2011 = vmatpush1.msra.mxu0 %v1973
    %2012 = vmatprep.subr.mxu0 %v1977
    %2013 = vmatpush1.msra.mxu0 %v1976
    %2014 = vmatprep.subr.mxu0 %v1980
    %2015 = vmatpush1.msra.mxu0 %v1979
    %2016 = vmatprep.subr.mxu0 %v1983
    %2017 = vmatpush1.msra.mxu0 %v1982
    %2018 = vmatprep.subr.mxu0 %v1986
    %2019 = vmatpush1.msra.mxu0 %v1985
    %2020 = vmatprep.subr.mxu0 0.0
    %2021 = vmatpush1.msra.mxu0 0.0
    %2022 = vmatprep.subr.mxu0 0.0
    %2023 = vmatpush1.msra.mxu0 0.0
    %2024 = vmatprep.subr.mxu0 0.0
    %2025 = vmatpush1.msra.mxu0 0.0
    %2026 = vmatprep.subr.mxu0 0.0
    %2027 = vmatpush1.msra.mxu0 0.0
    %2028 = vmatprep.subr.mxu0 0.0
    %2029 = vmatpush1.msra.mxu0 0.0
    %2030 = vmatprep.subr.mxu0 0.0
    %2031 = vmatpush1.msra.mxu0 0.0
    %2032 = vmatprep.subr.mxu0 0.0
    %2033 = vmatpush1.msra.mxu0 0.0
    %2034 = vmatprep.subr.mxu0 0.0
    %2035 = vmatpush1.msra.mxu0 0.0
    %2036 = vmatprep.subr.mxu0 0.0
    %2037 = vmatpush1.msra.mxu0 0.0
    %2038 = vmatprep.subr.mxu0 0.0
    %2039 = vmatpush1.msra.mxu0 0.0
    %2040 = vmatprep.subr.mxu0 0.0
    %2041 = vmatpush1.msra.mxu0 0.0
    %2042 = vmatprep.subr.mxu0 0.0
    %2043 = vmatpush1.msra.mxu0 0.0
    %2044 = vmatprep.subr.mxu0 0.0
    %2045 = vmatpush1.msra.mxu0 0.0
    %2046 = vmatprep.subr.mxu0 0.0
    %2047 = vmatpush1.msra.mxu0 0.0
    %2048 = vmatprep.subr.mxu0 0.0
    %2049 = vmatpush1.msra.mxu0 0.0
    %2050 = vmatprep.subr.mxu0 0.0
    %2051 = vmatpush1.msra.mxu0 0.0
    %2052 = vmatprep.mubr.f32.mxu0 0.0
    %2053 = vmatmul.mubr.f32.gmra.mrb[0].mxu0 %v1931
    %v2054 = vpop.f32.mrb[0].mxu0
    %v2055 = vadd.f32 0.0, %v2054
    %v2056 = vpop.f32.mrb[0].mxu0
    %v2057 = vadd.f32 0.0, %v2056
    %2058 = vdwg.mxu0
    %2059 = vmatprep.subr.mxu0 0.0
    %2060 = vmatpush1.msra.mxu0 %v1942
    %2061 = vmatprep.subr.mxu0 0.0
    %2062 = vmatpush1.msra.mxu0 %v1945
    %2063 = vmatprep.subr.mxu0 0.0
    %2064 = vmatpush1.msra.mxu0 %v1948
    %2065 = vmatprep.subr.mxu0 0.0
    %2066 = vmatpush1.msra.mxu0 %v1951
    %2067 = vmatprep.subr.mxu0 0.0
    %2068 = vmatpush1.msra.mxu0 %v1954
    %2069 = vmatprep.subr.mxu0 0.0
    %2070 = vmatpush1.msra.mxu0 %v1957
    %2071 = vmatprep.subr.mxu0 0.0
    %2072 = vmatpush1.msra.mxu0 %v1960
    %2073 = vmatprep.subr.mxu0 0.0
    %2074 = vmatpush1.msra.mxu0 %v1963
    %2075 = vmatprep.subr.mxu0 0.0
    %2076 = vmatpush1.msra.mxu0 %v1966
    %2077 = vmatprep.subr.mxu0 0.0
    %2078 = vmatpush1.msra.mxu0 %v1969
    %2079 = vmatprep.subr.mxu0 0.0
    %2080 = vmatpush1.msra.mxu0 %v1972
    %2081 = vmatprep.subr.mxu0 0.0
    %2082 = vmatpush1.msra.mxu0 %v1975
    %2083 = vmatprep.subr.mxu0 0.0
    %2084 = vmatpush1.msra.mxu0 %v1978
    %2085 = vmatprep.subr.mxu0 0.0
    %2086 = vmatpush1.msra.mxu0 %v1981
    %2087 = vmatprep.subr.mxu0 0.0
    %2088 = vmatpush1.msra.mxu0 %v1984
    %2089 = vmatprep.subr.mxu0 0.0
    %2090 = vmatpush1.msra.mxu0 %v1987
    %2091 = vmatprep.subr.mxu0 0.0
    %2092 = vmatpush1.msra.mxu0 0.0
    %2093 = vmatprep.subr.mxu0 0.0
    %2094 = vmatpush1.msra.mxu0 0.0
    %2095 = vmatprep.subr.mxu0 0.0
    %2096 = vmatpush1.msra.mxu0 0.0
    %2097 = vmatprep.subr.mxu0 0.0
    %2098 = vmatpush1.msra.mxu0 0.0
    %2099 = vmatprep.subr.mxu0 0.0
    %2100 = vmatpush1.msra.mxu0 0.0
    %2101 = vmatprep.subr.mxu0 0.0
    %2102 = vmatpush1.msra.mxu0 0.0
    %2103 = vmatprep.subr.mxu0 0.0
    %2104 = vmatpush1.msra.mxu0 0.0
    %2105 = vmatprep.subr.mxu0 0.0
    %2106 = vmatpush1.msra.mxu0 0.0
    %2107 = vmatprep.subr.mxu0 0.0
    %2108 = vmatpush1.msra.mxu0 0.0
    %2109 = vmatprep.subr.mxu0 0.0
    %2110 = vmatpush1.msra.mxu0 0.0
    %2111 = vmatprep.subr.mxu0 0.0
    %2112 = vmatpush1.msra.mxu0 0.0
    %2113 = vmatprep.subr.mxu0 0.0
    %2114 = vmatpush1.msra.mxu0 0.0
    %2115 = vmatprep.subr.mxu0 0.0
    %2116 = vmatpush1.msra.mxu0 0.0
    %2117 = vmatprep.subr.mxu0 0.0
    %2118 = vmatpush1.msra.mxu0 0.0
    %2119 = vmatprep.subr.mxu0 0.0
    %2120 = vmatpush1.msra.mxu0 0.0
    %2121 = vmatprep.subr.mxu0 0.0
    %2122 = vmatpush1.msra.mxu0 0.0
    %2123 = vmatprep.mubr.f32.mxu0 0.0
    %2124 = vmatmul.mubr.f32.gmra.mrb[0].mxu0 %v1931
    %v2125 = vpop.f32.mrb[0].mxu0
    %v2126 = vadd.f32 0.0, %v2125
    %v2127 = vpop.f32.mrb[0].mxu0
    %2128 = vdwg.mxu0
    %v2129 = vadd.f32 %v1937, %v2055
    %v2130 = vxor.u32 %v2129, 2147483648
    %v2131 = vmul.f32 %v2130, 1.442695
    %v2132 = vpow.pop %v2131
    %v2133 = vadd.f32 %v2132, 1.0
    %v2134 = vrcp.pop %v2133
    %v2135 = vmul.f32 1.0, %v2134
    %v2136 = vadd.f32 %v1938, %v2057
    %v2137 = vxor.u32 %v2136, 2147483648
    %v2138 = vmul.f32 %v2137, 1.442695
    %v2139 = vpow.pop %v2138
    %v2140 = vadd.f32 %v2139, 1.0
    %v2141 = vrcp.pop %v2140
    %v2142 = vmul.f32 1.0, %v2141
    %v2143 = vadd.f32 %v2126, %v399
    %v2144 = vmul.f32 %v2135, %v2143
    %v2145 = vadd.f32 %v1939, %v2144
    %v2146 = vtanh.pop %v2145
    %v2147 = vsub.f32 1.0, %v2142
    %v2148 = vmul.f32 %v2147, %v2146
    %v2149 = vmul.f32 %v2142, %v1931
    %v2150 = vadd.f32 %v2148, %v2149
    %s2151 = scalar_lea.vmem [#allocation4], 56
    %2152 = vst [vmem:[%s2151] sm:$0xff] %v2150
    %2153 = vst [vmem:[#allocation2] sm:$0xff] %v2150
    %v2154 = vld [vmem:[#allocation4] sm:$0xff]
    %v2155 = vld [vmem:[#allocation4 + $0x8] sm:$0xff]
    %v2156 = vld [vmem:[#allocation4 + $0x10] sm:$0xff]
    %v2157 = vld [vmem:[#allocation4 + $0x18] sm:$0xff]
    %v2158 = vld [vmem:[#allocation4 + $0x20] sm:$0xff]
    %v2159 = vld [vmem:[#allocation4 + $0x28] sm:$0xff]
    %v2160 = vld [vmem:[#allocation4 + $0x30] sm:$0xff]
    %v2161 = vld [vmem:[#allocation4 + $0x38] sm:$0xff]
    %v2162 = vld [vmem:[#allocation7] sm:$0xff]
    %v2163 = vld [vmem:[#allocation7 + $0x8] sm:$0xff]
    %v2164 = vld [vmem:[#allocation7 + $0x10] sm:$0xff]
    %v2165 = vld [vmem:[#allocation7 + $0x18] sm:$0xff]
    %v2166 = vld [vmem:[#allocation7 + $0x20] sm:$0xff]
    %v2167 = vld [vmem:[#allocation7 + $0x28] sm:$0xff]
    %v2168 = vld [vmem:[#allocation7 + $0x30] sm:$0xff]
    %v2169 = vld [vmem:[#allocation7 + $0x38] sm:$0xff]
    %v2170 = vld [vmem:[#allocation7 + $0x40] sm:$0xff]
    %v2171 = vld [vmem:[#allocation7 + $0x48] sm:$0xff]
    %v2172 = vld [vmem:[#allocation7 + $0x50] sm:$0xff]
    %v2173 = vld [vmem:[#allocation7 + $0x58] sm:$0xff]
    %v2174 = vld [vmem:[#allocation7 + $0x60] sm:$0xff]
    %v2175 = vld [vmem:[#allocation7 + $0x68] sm:$0xff]
    %v2176 = vld [vmem:[#allocation7 + $0x70] sm:$0xff]
    %v2177 = vld [vmem:[#allocation7 + $0x78] sm:$0xff]
    %v2178 = vld [vmem:[#allocation7 + $0x80] sm:$0xff]
    %v2179 = vld [vmem:[#allocation7 + $0x88] sm:$0xff]
    %v2180 = vld [vmem:[#allocation7 + $0x90] sm:$0xff]
    %v2181 = vld [vmem:[#allocation7 + $0x98] sm:$0xff]
    %v2182 = vld [vmem:[#allocation7 + $0xa0] sm:$0xff]
    %v2183 = vld [vmem:[#allocation7 + $0xa8] sm:$0xff]
    %v2184 = vld [vmem:[#allocation7 + $0xb0] sm:$0xff]
    %v2185 = vld [vmem:[#allocation7 + $0xb8] sm:$0xff]
    %v2186 = vld [vmem:[#allocation7 + $0xc0] sm:$0xff]
    %v2187 = vld [vmem:[#allocation7 + $0xc8] sm:$0xff]
    %v2188 = vld [vmem:[#allocation7 + $0xd0] sm:$0xff]
    %v2189 = vld [vmem:[#allocation7 + $0xd8] sm:$0xff]
    %v2190 = vld [vmem:[#allocation7 + $0xe0] sm:$0xff]
    %v2191 = vld [vmem:[#allocation7 + $0xe8] sm:$0xff]
    %v2192 = vld [vmem:[#allocation7 + $0xf0] sm:$0xff]
    %v2193 = vld [vmem:[#allocation7 + $0xf8] sm:$0xff]
    %v2194 = vld [vmem:[#allocation7 + $0x100] sm:$0xff]
    %v2195 = vld [vmem:[#allocation7 + $0x108] sm:$0xff]
    %v2196 = vld [vmem:[#allocation7 + $0x110] sm:$0xff]
    %v2197 = vld [vmem:[#allocation7 + $0x118] sm:$0xff]
    %v2198 = vld [vmem:[#allocation7 + $0x120] sm:$0xff]
    %v2199 = vld [vmem:[#allocation7 + $0x128] sm:$0xff]
    %v2200 = vld [vmem:[#allocation7 + $0x130] sm:$0xff]
    %v2201 = vld [vmem:[#allocation7 + $0x138] sm:$0xff]
    %v2202 = vld [vmem:[#allocation7 + $0x140] sm:$0xff]
    %v2203 = vld [vmem:[#allocation7 + $0x148] sm:$0xff]
    %v2204 = vld [vmem:[#allocation7 + $0x150] sm:$0xff]
    %v2205 = vld [vmem:[#allocation7 + $0x158] sm:$0xff]
    %v2206 = vld [vmem:[#allocation7 + $0x160] sm:$0xff]
    %v2207 = vld [vmem:[#allocation7 + $0x168] sm:$0xff]
    %v2208 = vld [vmem:[#allocation7 + $0x170] sm:$0xff]
    %v2209 = vld [vmem:[#allocation7 + $0x178] sm:$0xff]
    %v2210 = vld [vmem:[%s6] sm:$0x7]
    %v2212 = vlaneseq
    %v2213 = vshrl.u32 %v2212, 7
    %v2214 = vsub.s32 0, %v2213
    %v2215 = vrot.slane %v2210, %v2214
    %v2216 = vlaneseq
    %v2217 = vshrl.u32 %v2216, 7
    %v2218 = vsub.s32 1, %v2217
    %v2219 = vrot.slane %v2210, %v2218
    %v2220 = vlaneseq
    %v2221 = vshrl.u32 %v2220, 7
    %v2222 = vsub.s32 2, %v2221
    %v2223 = vrot.slane %v2210, %v2222
    %2227 = vmatprep.subr.mxu0 %v2163
    %2228 = vmatpush1.msra.mxu0 %v2162
    %2229 = vmatprep.subr.mxu0 %v2166
    %2230 = vmatpush1.msra.mxu0 %v2165
    %2231 = vmatprep.subr.mxu0 %v2169
    %2232 = vmatpush1.msra.mxu0 %v2168
    %2233 = vmatprep.subr.mxu0 %v2172
    %2234 = vmatpush1.msra.mxu0 %v2171
    %2235 = vmatprep.subr.mxu0 %v2175
    %2236 = vmatpush1.msra.mxu0 %v2174
    %2237 = vmatprep.subr.mxu0 %v2178
    %2238 = vmatpush1.msra.mxu0 %v2177
    %2239 = vmatprep.subr.mxu0 %v2181
    %2240 = vmatpush1.msra.mxu0 %v2180
    %2241 = vmatprep.subr.mxu0 %v2184
    %2242 = vmatpush1.msra.mxu0 %v2183
    %2243 = vmatprep.subr.mxu0 %v2187
    %2244 = vmatpush1.msra.mxu0 %v2186
    %2245 = vmatprep.subr.mxu0 %v2190
    %2246 = vmatpush1.msra.mxu0 %v2189
    %2247 = vmatprep.subr.mxu0 %v2193
    %2248 = vmatpush1.msra.mxu0 %v2192
    %2249 = vmatprep.subr.mxu0 %v2196
    %2250 = vmatpush1.msra.mxu0 %v2195
    %2251 = vmatprep.subr.mxu0 %v2199
    %2252 = vmatpush1.msra.mxu0 %v2198
    %2253 = vmatprep.subr.mxu0 %v2202
    %2254 = vmatpush1.msra.mxu0 %v2201
    %2255 = vmatprep.subr.mxu0 %v2205
    %2256 = vmatpush1.msra.mxu0 %v2204
    %2257 = vmatprep.subr.mxu0 %v2208
    %2258 = vmatpush1.msra.mxu0 %v2207
    %2259 = vmatprep.subr.mxu0 0.0
    %2260 = vmatpush1.msra.mxu0 0.0
    %2261 = vmatprep.subr.mxu0 0.0
    %2262 = vmatpush1.msra.mxu0 0.0
    %2263 = vmatprep.subr.mxu0 0.0
    %2264 = vmatpush1.msra.mxu0 0.0
    %2265 = vmatprep.subr.mxu0 0.0
    %2266 = vmatpush1.msra.mxu0 0.0
    %2267 = vmatprep.subr.mxu0 0.0
    %2268 = vmatpush1.msra.mxu0 0.0
    %2269 = vmatprep.subr.mxu0 0.0
    %2270 = vmatpush1.msra.mxu0 0.0
    %2271 = vmatprep.subr.mxu0 0.0
    %2272 = vmatpush1.msra.mxu0 0.0
    %2273 = vmatprep.subr.mxu0 0.0
    %2274 = vmatpush1.msra.mxu0 0.0
    %2275 = vmatprep.subr.mxu0 0.0
    %2276 = vmatpush1.msra.mxu0 0.0
    %2277 = vmatprep.subr.mxu0 0.0
    %2278 = vmatpush1.msra.mxu0 0.0
    %2279 = vmatprep.subr.mxu0 0.0
    %2280 = vmatpush1.msra.mxu0 0.0
    %2281 = vmatprep.subr.mxu0 0.0
    %2282 = vmatpush1.msra.mxu0 0.0
    %2283 = vmatprep.subr.mxu0 0.0
    %2284 = vmatpush1.msra.mxu0 0.0
    %2285 = vmatprep.subr.mxu0 0.0
    %2286 = vmatpush1.msra.mxu0 0.0
    %2287 = vmatprep.subr.mxu0 0.0
    %2288 = vmatpush1.msra.mxu0 0.0
    %2289 = vmatprep.subr.mxu0 0.0
    %2290 = vmatpush1.msra.mxu0 0.0
    %2291 = vmatprep.mubr.f32.mxu0 0.0
    %2292 = vmatmul.mubr.f32.gmra.mrb[0].mxu0 %v2154
    %v2293 = vpop.f32.mrb[0].mxu0
    %v2294 = vadd.f32 %v2215, %v2293
    %v2295 = vpop.f32.mrb[0].mxu0
    %v2296 = vadd.f32 %v2219, %v2295
    %2297 = vmatprep.mubr.f32.mxu0 0.0
    %2298 = vmatmul.mubr.f32.gmra.mrb[0].mxu0 %v2155
    %v2299 = vpop.f32.mrb[0].mxu0
    %v2300 = vadd.f32 %v2215, %v2299
    %v2301 = vpop.f32.mrb[0].mxu0
    %v2302 = vadd.f32 %v2219, %v2301
    %2303 = vmatprep.mubr.f32.mxu0 0.0
    %2304 = vmatmul.mubr.f32.gmra.mrb[0].mxu0 %v2156
    %v2305 = vpop.f32.mrb[0].mxu0
    %v2306 = vadd.f32 %v2215, %v2305
    %v2307 = vpop.f32.mrb[0].mxu0
    %v2308 = vadd.f32 %v2219, %v2307
    %2309 = vmatprep.mubr.f32.mxu0 0.0
    %2310 = vmatmul.mubr.f32.gmra.mrb[0].mxu0 %v2157
    %v2311 = vpop.f32.mrb[0].mxu0
    %v2312 = vadd.f32 %v2215, %v2311
    %v2313 = vpop.f32.mrb[0].mxu0
    %v2314 = vadd.f32 %v2219, %v2313
    %2315 = vmatprep.mubr.f32.mxu0 0.0
    %2316 = vmatmul.mubr.f32.gmra.mrb[0].mxu0 %v2158
    %v2317 = vpop.f32.mrb[0].mxu0
    %v2318 = vadd.f32 %v2215, %v2317
    %v2319 = vpop.f32.mrb[0].mxu0
    %v2320 = vadd.f32 %v2219, %v2319
    %2321 = vmatprep.mubr.f32.mxu0 0.0
    %2322 = vmatmul.mubr.f32.gmra.mrb[0].mxu0 %v2159
    %v2323 = vpop.f32.mrb[0].mxu0
    %v2324 = vadd.f32 %v2215, %v2323
    %v2325 = vpop.f32.mrb[0].mxu0
    %v2326 = vadd.f32 %v2219, %v2325
    %2327 = vmatprep.mubr.f32.mxu0 0.0
    %2328 = vmatmul.mubr.f32.gmra.mrb[0].mxu0 %v2160
    %v2329 = vpop.f32.mrb[0].mxu0
    %v2330 = vadd.f32 %v2215, %v2329
    %v2331 = vpop.f32.mrb[0].mxu0
    %v2332 = vadd.f32 %v2219, %v2331
    %2333 = vmatprep.mubr.f32.mxu0 0.0
    %2334 = vmatmul.mubr.f32.gmra.mrb[0].mxu0 %v2161
    %v2335 = vpop.f32.mrb[0].mxu0
    %v2336 = vadd.f32 %v2215, %v2335
    %v2337 = vpop.f32.mrb[0].mxu0
    %v2338 = vadd.f32 %v2219, %v2337
    %2339 = vdwg.mxu0
    %2340 = vmatprep.subr.mxu0 0.0
    %2341 = vmatpush1.msra.mxu0 %v2164
    %2342 = vmatprep.subr.mxu0 0.0
    %2343 = vmatpush1.msra.mxu0 %v2167
    %2344 = vmatprep.subr.mxu0 0.0
    %2345 = vmatpush1.msra.mxu0 %v2170
    %2346 = vmatprep.subr.mxu0 0.0
    %2347 = vmatpush1.msra.mxu0 %v2173
    %2348 = vmatprep.subr.mxu0 0.0
    %2349 = vmatpush1.msra.mxu0 %v2176
    %2350 = vmatprep.subr.mxu0 0.0
    %2351 = vmatpush1.msra.mxu0 %v2179
    %2352 = vmatprep.subr.mxu0 0.0
    %2353 = vmatpush1.msra.mxu0 %v2182
    %2354 = vmatprep.subr.mxu0 0.0
    %2355 = vmatpush1.msra.mxu0 %v2185
    %2356 = vmatprep.subr.mxu0 0.0
    %2357 = vmatpush1.msra.mxu0 %v2188
    %2358 = vmatprep.subr.mxu0 0.0
    %2359 = vmatpush1.msra.mxu0 %v2191
    %2360 = vmatprep.subr.mxu0 0.0
    %2361 = vmatpush1.msra.mxu0 %v2194
    %2362 = vmatprep.subr.mxu0 0.0
    %2363 = vmatpush1.msra.mxu0 %v2197
    %2364 = vmatprep.subr.mxu0 0.0
    %2365 = vmatpush1.msra.mxu0 %v2200
    %2366 = vmatprep.subr.mxu0 0.0
    %2367 = vmatpush1.msra.mxu0 %v2203
    %2368 = vmatprep.subr.mxu0 0.0
    %2369 = vmatpush1.msra.mxu0 %v2206
    %2370 = vmatprep.subr.mxu0 0.0
    %2371 = vmatpush1.msra.mxu0 %v2209
    %2372 = vmatprep.subr.mxu0 0.0
    %2373 = vmatpush1.msra.mxu0 0.0
    %2374 = vmatprep.subr.mxu0 0.0
    %2375 = vmatpush1.msra.mxu0 0.0
    %2376 = vmatprep.subr.mxu0 0.0
    %2377 = vmatpush1.msra.mxu0 0.0
    %2378 = vmatprep.subr.mxu0 0.0
    %2379 = vmatpush1.msra.mxu0 0.0
    %2380 = vmatprep.subr.mxu0 0.0
    %2381 = vmatpush1.msra.mxu0 0.0
    %2382 = vmatprep.subr.mxu0 0.0
    %2383 = vmatpush1.msra.mxu0 0.0
    %2384 = vmatprep.subr.mxu0 0.0
    %2385 = vmatpush1.msra.mxu0 0.0
    %2386 = vmatprep.subr.mxu0 0.0
    %2387 = vmatpush1.msra.mxu0 0.0
    %2388 = vmatprep.subr.mxu0 0.0
    %2389 = vmatpush1.msra.mxu0 0.0
    %2390 = vmatprep.subr.mxu0 0.0
    %2391 = vmatpush1.msra.mxu0 0.0
    %2392 = vmatprep.subr.mxu0 0.0
    %2393 = vmatpush1.msra.mxu0 0.0
    %2394 = vmatprep.subr.mxu0 0.0
    %2395 = vmatpush1.msra.mxu0 0.0
    %2396 = vmatprep.subr.mxu0 0.0
    %2397 = vmatpush1.msra.mxu0 0.0
    %2398 = vmatprep.subr.mxu0 0.0
    %2399 = vmatpush1.msra.mxu0 0.0
    %2400 = vmatprep.subr.mxu0 0.0
    %2401 = vmatpush1.msra.mxu0 0.0
    %2402 = vmatprep.subr.mxu0 0.0
    %2403 = vmatpush1.msra.mxu0 0.0
    %2404 = vmatprep.mubr.f32.mxu0 0.0
    %2405 = vmatmul.mubr.f32.gmra.mrb[0].mxu0 %v2154
    %v2406 = vpop.f32.mrb[0].mxu0
    %v2407 = vadd.f32 %v2223, %v2406
    %v2408 = vpop.f32.mrb[0].mxu0
    %2409 = vmatprep.mubr.f32.mxu0 0.0
    %2410 = vmatmul.mubr.f32.gmra.mrb[0].mxu0 %v2155
    %v2411 = vpop.f32.mrb[0].mxu0
    %v2412 = vadd.f32 %v2223, %v2411
    %v2413 = vpop.f32.mrb[0].mxu0
    %2414 = vmatprep.mubr.f32.mxu0 0.0
    %2415 = vmatmul.mubr.f32.gmra.mrb[0].mxu0 %v2156
    %v2416 = vpop.f32.mrb[0].mxu0
    %v2417 = vadd.f32 %v2223, %v2416
    %v2418 = vpop.f32.mrb[0].mxu0
    %2419 = vmatprep.mubr.f32.mxu0 0.0
    %2420 = vmatmul.mubr.f32.gmra.mrb[0].mxu0 %v2157
    %v2421 = vpop.f32.mrb[0].mxu0
    %v2422 = vadd.f32 %v2223, %v2421
    %v2423 = vpop.f32.mrb[0].mxu0
    %2424 = vmatprep.mubr.f32.mxu0 0.0
    %2425 = vmatmul.mubr.f32.gmra.mrb[0].mxu0 %v2158
    %v2426 = vpop.f32.mrb[0].mxu0
    %v2427 = vadd.f32 %v2223, %v2426
    %v2428 = vpop.f32.mrb[0].mxu0
    %2429 = vmatprep.mubr.f32.mxu0 0.0
    %2430 = vmatmul.mubr.f32.gmra.mrb[0].mxu0 %v2159
    %v2431 = vpop.f32.mrb[0].mxu0
    %v2432 = vadd.f32 %v2223, %v2431
    %v2433 = vpop.f32.mrb[0].mxu0
    %2434 = vmatprep.mubr.f32.mxu0 0.0
    %2435 = vmatmul.mubr.f32.gmra.mrb[0].mxu0 %v2160
    %v2436 = vpop.f32.mrb[0].mxu0
    %v2437 = vadd.f32 %v2223, %v2436
    %v2438 = vpop.f32.mrb[0].mxu0
    %2439 = vmatprep.mubr.f32.mxu0 0.0
    %2440 = vmatmul.mubr.f32.gmra.mrb[0].mxu0 %v2161
    %v2441 = vpop.f32.mrb[0].mxu0
    %v2442 = vadd.f32 %v2223, %v2441
    %v2443 = vpop.f32.mrb[0].mxu0
    %2444 = vdwg.mxu0
    %2445 = vst [vmem:[#allocation3] sm:$0xff] %v2294
    %2446 = vst [vmem:[#allocation3 + $0x8] sm:$0xff] %v2296
    %2447 = vst [vmem:[#allocation3 + $0x10] sm:$0xff] %v2407
    %2448 = vst [vmem:[#allocation3 + $0x18] sm:$0xff] %v2300
    %2449 = vst [vmem:[#allocation3 + $0x20] sm:$0xff] %v2302
    %2450 = vst [vmem:[#allocation3 + $0x28] sm:$0xff] %v2412
    %2451 = vst [vmem:[#allocation3 + $0x30] sm:$0xff] %v2306
    %2452 = vst [vmem:[#allocation3 + $0x38] sm:$0xff] %v2308
    %2453 = vst [vmem:[#allocation3 + $0x40] sm:$0xff] %v2417
    %2454 = vst [vmem:[#allocation3 + $0x48] sm:$0xff] %v2312
    %2455 = vst [vmem:[#allocation3 + $0x50] sm:$0xff] %v2314
    %2456 = vst [vmem:[#allocation3 + $0x58] sm:$0xff] %v2422
    %2457 = vst [vmem:[#allocation3 + $0x60] sm:$0xff] %v2318
    %2458 = vst [vmem:[#allocation3 + $0x68] sm:$0xff] %v2320
    %2459 = vst [vmem:[#allocation3 + $0x70] sm:$0xff] %v2427
    %2460 = vst [vmem:[#allocation3 + $0x78] sm:$0xff] %v2324
    %2461 = vst [vmem:[#allocation3 + $0x80] sm:$0xff] %v2326
    %2462 = vst [vmem:[#allocation3 + $0x88] sm:$0xff] %v2432
    %2463 = vst [vmem:[#allocation3 + $0x90] sm:$0xff] %v2330
    %2464 = vst [vmem:[#allocation3 + $0x98] sm:$0xff] %v2332
    %2465 = vst [vmem:[#allocation3 + $0xa0] sm:$0xff] %v2437
    %2466 = vst [vmem:[#allocation3 + $0xa8] sm:$0xff] %v2336
    %2467 = vst [vmem:[#allocation3 + $0xb0] sm:$0xff] %v2338
    %2468 = vst [vmem:[#allocation3 + $0xb8] sm:$0xff] %v2442
    %v2469 = vld [vmem:[%s7] sm:$0x1]
    %v2471 = vlaneseq
    %v2472 = vshrl.u32 %v2471, 7
    %v2473 = vsub.s32 0, %v2472
    %v2474 = vrot.slane %v2469, %v2473
    %s2476 = scalar_lea.vmem [#allocation2], 8
    %v2477 = vld [vmem:[%s2476] sm:$0xff]
    %v2478 = vld [vmem:[%s404] sm:$0xff]
    %v2479 = vld [vmem:[%s404 + $0x8] sm:$0xff]
    %v2480 = vld [vmem:[%s404 + $0x10] sm:$0xff]
    %v2481 = vld [vmem:[#allocation9] sm:$0xff]
    %v2482 = vld [vmem:[#allocation9 + $0x8] sm:$0xff]
    %v2483 = vld [vmem:[#allocation9 + $0x10] sm:$0xff]
    %v2484 = vld [vmem:[#allocation9 + $0x18] sm:$0xff]
    %v2485 = vld [vmem:[#allocation9 + $0x20] sm:$0xff]
    %v2486 = vld [vmem:[#allocation9 + $0x28] sm:$0xff]
    %v2487 = vld [vmem:[#allocation9 + $0x30] sm:$0xff]
    %v2488 = vld [vmem:[#allocation9 + $0x38] sm:$0xff]
    %v2489 = vld [vmem:[#allocation9 + $0x40] sm:$0xff]
    %v2490 = vld [vmem:[#allocation9 + $0x48] sm:$0xff]
    %v2491 = vld [vmem:[#allocation9 + $0x50] sm:$0xff]
    %v2492 = vld [vmem:[#allocation9 + $0x58] sm:$0xff]
    %v2493 = vld [vmem:[#allocation9 + $0x60] sm:$0xff]
    %v2494 = vld [vmem:[#allocation9 + $0x68] sm:$0xff]
    %v2495 = vld [vmem:[#allocation9 + $0x70] sm:$0xff]
    %v2496 = vld [vmem:[#allocation9 + $0x78] sm:$0xff]
    %v2497 = vld [vmem:[#allocation9 + $0x80] sm:$0xff]
    %v2498 = vld [vmem:[#allocation9 + $0x88] sm:$0xff]
    %v2499 = vld [vmem:[#allocation9 + $0x90] sm:$0xff]
    %v2500 = vld [vmem:[#allocation9 + $0x98] sm:$0xff]
    %v2501 = vld [vmem:[#allocation9 + $0xa0] sm:$0xff]
    %v2502 = vld [vmem:[#allocation9 + $0xa8] sm:$0xff]
    %v2503 = vld [vmem:[#allocation9 + $0xb0] sm:$0xff]
    %v2504 = vld [vmem:[#allocation9 + $0xb8] sm:$0xff]
    %v2505 = vld [vmem:[#allocation9 + $0xc0] sm:$0xff]
    %v2506 = vld [vmem:[#allocation9 + $0xc8] sm:$0xff]
    %v2507 = vld [vmem:[#allocation9 + $0xd0] sm:$0xff]
    %v2508 = vld [vmem:[#allocation9 + $0xd8] sm:$0xff]
    %v2509 = vld [vmem:[#allocation9 + $0xe0] sm:$0xff]
    %v2510 = vld [vmem:[#allocation9 + $0xe8] sm:$0xff]
    %v2511 = vld [vmem:[#allocation9 + $0xf0] sm:$0xff]
    %v2512 = vld [vmem:[#allocation9 + $0xf8] sm:$0xff]
    %v2513 = vld [vmem:[#allocation9 + $0x100] sm:$0xff]
    %v2514 = vld [vmem:[#allocation9 + $0x108] sm:$0xff]
    %v2515 = vld [vmem:[#allocation9 + $0x110] sm:$0xff]
    %v2516 = vld [vmem:[#allocation9 + $0x118] sm:$0xff]
    %v2517 = vld [vmem:[#allocation9 + $0x120] sm:$0xff]
    %v2518 = vld [vmem:[#allocation9 + $0x128] sm:$0xff]
    %v2519 = vld [vmem:[#allocation9 + $0x130] sm:$0xff]
    %v2520 = vld [vmem:[#allocation9 + $0x138] sm:$0xff]
    %v2521 = vld [vmem:[#allocation9 + $0x140] sm:$0xff]
    %v2522 = vld [vmem:[#allocation9 + $0x148] sm:$0xff]
    %v2523 = vld [vmem:[#allocation9 + $0x150] sm:$0xff]
    %v2524 = vld [vmem:[#allocation9 + $0x158] sm:$0xff]
    %v2525 = vld [vmem:[#allocation9 + $0x160] sm:$0xff]
    %v2526 = vld [vmem:[#allocation9 + $0x168] sm:$0xff]
    %v2527 = vld [vmem:[#allocation9 + $0x170] sm:$0xff]
    %v2528 = vld [vmem:[#allocation9 + $0x178] sm:$0xff]
    %2529 = vmatprep.subr.mxu0 %v2482
    %2530 = vmatpush1.msra.mxu0 %v2481
    %2531 = vmatprep.subr.mxu0 %v2485
    %2532 = vmatpush1.msra.mxu0 %v2484
    %2533 = vmatprep.subr.mxu0 %v2488
    %2534 = vmatpush1.msra.mxu0 %v2487
    %2535 = vmatprep.subr.mxu0 %v2491
    %2536 = vmatpush1.msra.mxu0 %v2490
    %2537 = vmatprep.subr.mxu0 %v2494
    %2538 = vmatpush1.msra.mxu0 %v2493
    %2539 = vmatprep.subr.mxu0 %v2497
    %2540 = vmatpush1.msra.mxu0 %v2496
    %2541 = vmatprep.subr.mxu0 %v2500
    %2542 = vmatpush1.msra.mxu0 %v2499
    %2543 = vmatprep.subr.mxu0 %v2503
    %2544 = vmatpush1.msra.mxu0 %v2502
    %2545 = vmatprep.subr.mxu0 %v2506
    %2546 = vmatpush1.msra.mxu0 %v2505
    %2547 = vmatprep.subr.mxu0 %v2509
    %2548 = vmatpush1.msra.mxu0 %v2508
    %2549 = vmatprep.subr.mxu0 %v2512
    %2550 = vmatpush1.msra.mxu0 %v2511
    %2551 = vmatprep.subr.mxu0 %v2515
    %2552 = vmatpush1.msra.mxu0 %v2514
    %2553 = vmatprep.subr.mxu0 %v2518
    %2554 = vmatpush1.msra.mxu0 %v2517
    %2555 = vmatprep.subr.mxu0 %v2521
    %2556 = vmatpush1.msra.mxu0 %v2520
    %2557 = vmatprep.subr.mxu0 %v2524
    %2558 = vmatpush1.msra.mxu0 %v2523
    %2559 = vmatprep.subr.mxu0 %v2527
    %2560 = vmatpush1.msra.mxu0 %v2526
    %2561 = vmatprep.subr.mxu0 0.0
    %2562 = vmatpush1.msra.mxu0 0.0
    %2563 = vmatprep.subr.mxu0 0.0
    %2564 = vmatpush1.msra.mxu0 0.0
    %2565 = vmatprep.subr.mxu0 0.0
    %2566 = vmatpush1.msra.mxu0 0.0
    %2567 = vmatprep.subr.mxu0 0.0
    %2568 = vmatpush1.msra.mxu0 0.0
    %2569 = vmatprep.subr.mxu0 0.0
    %2570 = vmatpush1.msra.mxu0 0.0
    %2571 = vmatprep.subr.mxu0 0.0
    %2572 = vmatpush1.msra.mxu0 0.0
    %2573 = vmatprep.subr.mxu0 0.0
    %2574 = vmatpush1.msra.mxu0 0.0
    %2575 = vmatprep.subr.mxu0 0.0
    %2576 = vmatpush1.msra.mxu0 0.0
    %2577 = vmatprep.subr.mxu0 0.0
    %2578 = vmatpush1.msra.mxu0 0.0
    %2579 = vmatprep.subr.mxu0 0.0
    %2580 = vmatpush1.msra.mxu0 0.0
    %2581 = vmatprep.subr.mxu0 0.0
    %2582 = vmatpush1.msra.mxu0 0.0
    %2583 = vmatprep.subr.mxu0 0.0
    %2584 = vmatpush1.msra.mxu0 0.0
    %2585 = vmatprep.subr.mxu0 0.0
    %2586 = vmatpush1.msra.mxu0 0.0
    %2587 = vmatprep.subr.mxu0 0.0
    %2588 = vmatpush1.msra.mxu0 0.0
    %2589 = vmatprep.subr.mxu0 0.0
    %2590 = vmatpush1.msra.mxu0 0.0
    %2591 = vmatprep.subr.mxu0 0.0
    %2592 = vmatpush1.msra.mxu0 0.0
    %2593 = vmatprep.mubr.f32.mxu0 0.0
    %2594 = vmatmul.mubr.f32.gmra.mrb[0].mxu0 %v2477
    %v2595 = vpop.f32.mrb[0].mxu0
    %v2596 = vadd.f32 0.0, %v2595
    %v2597 = vpop.f32.mrb[0].mxu0
    %v2598 = vadd.f32 0.0, %v2597
    %2599 = vdwg.mxu0
    %2600 = vmatprep.subr.mxu0 0.0
    %2601 = vmatpush1.msra.mxu0 %v2483
    %2602 = vmatprep.subr.mxu0 0.0
    %2603 = vmatpush1.msra.mxu0 %v2486
    %2604 = vmatprep.subr.mxu0 0.0
    %2605 = vmatpush1.msra.mxu0 %v2489
    %2606 = vmatprep.subr.mxu0 0.0
    %2607 = vmatpush1.msra.mxu0 %v2492
    %2608 = vmatprep.subr.mxu0 0.0
    %2609 = vmatpush1.msra.mxu0 %v2495
    %2610 = vmatprep.subr.mxu0 0.0
    %2611 = vmatpush1.msra.mxu0 %v2498
    %2612 = vmatprep.subr.mxu0 0.0
    %2613 = vmatpush1.msra.mxu0 %v2501
    %2614 = vmatprep.subr.mxu0 0.0
    %2615 = vmatpush1.msra.mxu0 %v2504
    %2616 = vmatprep.subr.mxu0 0.0
    %2617 = vmatpush1.msra.mxu0 %v2507
    %2618 = vmatprep.subr.mxu0 0.0
    %2619 = vmatpush1.msra.mxu0 %v2510
    %2620 = vmatprep.subr.mxu0 0.0
    %2621 = vmatpush1.msra.mxu0 %v2513
    %2622 = vmatprep.subr.mxu0 0.0
    %2623 = vmatpush1.msra.mxu0 %v2516
    %2624 = vmatprep.subr.mxu0 0.0
    %2625 = vmatpush1.msra.mxu0 %v2519
    %2626 = vmatprep.subr.mxu0 0.0
    %2627 = vmatpush1.msra.mxu0 %v2522
    %2628 = vmatprep.subr.mxu0 0.0
    %2629 = vmatpush1.msra.mxu0 %v2525
    %2630 = vmatprep.subr.mxu0 0.0
    %2631 = vmatpush1.msra.mxu0 %v2528
    %2632 = vmatprep.subr.mxu0 0.0
    %2633 = vmatpush1.msra.mxu0 0.0
    %2634 = vmatprep.subr.mxu0 0.0
    %2635 = vmatpush1.msra.mxu0 0.0
    %2636 = vmatprep.subr.mxu0 0.0
    %2637 = vmatpush1.msra.mxu0 0.0
    %2638 = vmatprep.subr.mxu0 0.0
    %2639 = vmatpush1.msra.mxu0 0.0
    %2640 = vmatprep.subr.mxu0 0.0
    %2641 = vmatpush1.msra.mxu0 0.0
    %2642 = vmatprep.subr.mxu0 0.0
    %2643 = vmatpush1.msra.mxu0 0.0
    %2644 = vmatprep.subr.mxu0 0.0
    %2645 = vmatpush1.msra.mxu0 0.0
    %2646 = vmatprep.subr.mxu0 0.0
    %2647 = vmatpush1.msra.mxu0 0.0
    %2648 = vmatprep.subr.mxu0 0.0
    %2649 = vmatpush1.msra.mxu0 0.0
    %2650 = vmatprep.subr.mxu0 0.0
    %2651 = vmatpush1.msra.mxu0 0.0
    %2652 = vmatprep.subr.mxu0 0.0
    %2653 = vmatpush1.msra.mxu0 0.0
    %2654 = vmatprep.subr.mxu0 0.0
    %2655 = vmatpush1.msra.mxu0 0.0
    %2656 = vmatprep.subr.mxu0 0.0
    %2657 = vmatpush1.msra.mxu0 0.0
    %2658 = vmatprep.subr.mxu0 0.0
    %2659 = vmatpush1.msra.mxu0 0.0
    %2660 = vmatprep.subr.mxu0 0.0
    %2661 = vmatpush1.msra.mxu0 0.0
    %2662 = vmatprep.subr.mxu0 0.0
    %2663 = vmatpush1.msra.mxu0 0.0
    %2664 = vmatprep.mubr.f32.mxu0 0.0
    %2665 = vmatmul.mubr.f32.gmra.mrb[0].mxu0 %v2477
    %v2666 = vpop.f32.mrb[0].mxu0
    %v2667 = vadd.f32 0.0, %v2666
    %v2668 = vpop.f32.mrb[0].mxu0
    %2669 = vdwg.mxu0
    %v2670 = vadd.f32 %v2478, %v2596
    %v2671 = vxor.u32 %v2670, 2147483648
    %v2672 = vmul.f32 %v2671, 1.442695
    %v2673 = vpow.pop %v2672
    %v2674 = vadd.f32 %v2673, 1.0
    %v2675 = vrcp.pop %v2674
    %v2676 = vmul.f32 1.0, %v2675
    %v2677 = vadd.f32 %v2479, %v2598
    %v2678 = vxor.u32 %v2677, 2147483648
    %v2679 = vmul.f32 %v2678, 1.442695
    %v2680 = vpow.pop %v2679
    %v2681 = vadd.f32 %v2680, 1.0
    %v2682 = vrcp.pop %v2681
    %v2683 = vmul.f32 1.0, %v2682
    %v2684 = vadd.f32 %v2667, %v2474
    %v2685 = vmul.f32 %v2676, %v2684
    %v2686 = vadd.f32 %v2480, %v2685
    %v2687 = vtanh.pop %v2686
    %v2688 = vsub.f32 1.0, %v2683
    %v2689 = vmul.f32 %v2688, %v2687
    %v2690 = vmul.f32 %v2683, %v2477
    %v2691 = vadd.f32 %v2689, %v2690
    %v2692 = vld [vmem:[%s622] sm:$0xff]
    %v2693 = vld [vmem:[%s622 + $0x8] sm:$0xff]
    %v2694 = vld [vmem:[%s622 + $0x10] sm:$0xff]
    %2695 = vmatprep.subr.mxu0 %v2482
    %2696 = vmatpush1.msra.mxu0 %v2481
    %2697 = vmatprep.subr.mxu0 %v2485
    %2698 = vmatpush1.msra.mxu0 %v2484
    %2699 = vmatprep.subr.mxu0 %v2488
    %2700 = vmatpush1.msra.mxu0 %v2487
    %2701 = vmatprep.subr.mxu0 %v2491
    %2702 = vmatpush1.msra.mxu0 %v2490
    %2703 = vmatprep.subr.mxu0 %v2494
    %2704 = vmatpush1.msra.mxu0 %v2493
    %2705 = vmatprep.subr.mxu0 %v2497
    %2706 = vmatpush1.msra.mxu0 %v2496
    %2707 = vmatprep.subr.mxu0 %v2500
    %2708 = vmatpush1.msra.mxu0 %v2499
    %2709 = vmatprep.subr.mxu0 %v2503
    %2710 = vmatpush1.msra.mxu0 %v2502
    %2711 = vmatprep.subr.mxu0 %v2506
    %2712 = vmatpush1.msra.mxu0 %v2505
    %2713 = vmatprep.subr.mxu0 %v2509
    %2714 = vmatpush1.msra.mxu0 %v2508
    %2715 = vmatprep.subr.mxu0 %v2512
    %2716 = vmatpush1.msra.mxu0 %v2511
    %2717 = vmatprep.subr.mxu0 %v2515
    %2718 = vmatpush1.msra.mxu0 %v2514
    %2719 = vmatprep.subr.mxu0 %v2518
    %2720 = vmatpush1.msra.mxu0 %v2517
    %2721 = vmatprep.subr.mxu0 %v2521
    %2722 = vmatpush1.msra.mxu0 %v2520
    %2723 = vmatprep.subr.mxu0 %v2524
    %2724 = vmatpush1.msra.mxu0 %v2523
    %2725 = vmatprep.subr.mxu0 %v2527
    %2726 = vmatpush1.msra.mxu0 %v2526
    %2727 = vmatprep.subr.mxu0 0.0
    %2728 = vmatpush1.msra.mxu0 0.0
    %2729 = vmatprep.subr.mxu0 0.0
    %2730 = vmatpush1.msra.mxu0 0.0
    %2731 = vmatprep.subr.mxu0 0.0
    %2732 = vmatpush1.msra.mxu0 0.0
    %2733 = vmatprep.subr.mxu0 0.0
    %2734 = vmatpush1.msra.mxu0 0.0
    %2735 = vmatprep.subr.mxu0 0.0
    %2736 = vmatpush1.msra.mxu0 0.0
    %2737 = vmatprep.subr.mxu0 0.0
    %2738 = vmatpush1.msra.mxu0 0.0
    %2739 = vmatprep.subr.mxu0 0.0
    %2740 = vmatpush1.msra.mxu0 0.0
    %2741 = vmatprep.subr.mxu0 0.0
    %2742 = vmatpush1.msra.mxu0 0.0
    %2743 = vmatprep.subr.mxu0 0.0
    %2744 = vmatpush1.msra.mxu0 0.0
    %2745 = vmatprep.subr.mxu0 0.0
    %2746 = vmatpush1.msra.mxu0 0.0
    %2747 = vmatprep.subr.mxu0 0.0
    %2748 = vmatpush1.msra.mxu0 0.0
    %2749 = vmatprep.subr.mxu0 0.0
    %2750 = vmatpush1.msra.mxu0 0.0
    %2751 = vmatprep.subr.mxu0 0.0
    %2752 = vmatpush1.msra.mxu0 0.0
    %2753 = vmatprep.subr.mxu0 0.0
    %2754 = vmatpush1.msra.mxu0 0.0
    %2755 = vmatprep.subr.mxu0 0.0
    %2756 = vmatpush1.msra.mxu0 0.0
    %2757 = vmatprep.subr.mxu0 0.0
    %2758 = vmatpush1.msra.mxu0 0.0
    %2759 = vmatprep.mubr.f32.mxu0 0.0
    %2760 = vmatmul.mubr.f32.gmra.mrb[0].mxu0 %v2691
    %v2761 = vpop.f32.mrb[0].mxu0
    %v2762 = vadd.f32 0.0, %v2761
    %v2763 = vpop.f32.mrb[0].mxu0
    %v2764 = vadd.f32 0.0, %v2763
    %2765 = vdwg.mxu0
    %2766 = vmatprep.subr.mxu0 0.0
    %2767 = vmatpush1.msra.mxu0 %v2483
    %2768 = vmatprep.subr.mxu0 0.0
    %2769 = vmatpush1.msra.mxu0 %v2486
    %2770 = vmatprep.subr.mxu0 0.0
    %2771 = vmatpush1.msra.mxu0 %v2489
    %2772 = vmatprep.subr.mxu0 0.0
    %2773 = vmatpush1.msra.mxu0 %v2492
    %2774 = vmatprep.subr.mxu0 0.0
    %2775 = vmatpush1.msra.mxu0 %v2495
    %2776 = vmatprep.subr.mxu0 0.0
    %2777 = vmatpush1.msra.mxu0 %v2498
    %2778 = vmatprep.subr.mxu0 0.0
    %2779 = vmatpush1.msra.mxu0 %v2501
    %2780 = vmatprep.subr.mxu0 0.0
    %2781 = vmatpush1.msra.mxu0 %v2504
    %2782 = vmatprep.subr.mxu0 0.0
    %2783 = vmatpush1.msra.mxu0 %v2507
    %2784 = vmatprep.subr.mxu0 0.0
    %2785 = vmatpush1.msra.mxu0 %v2510
    %2786 = vmatprep.subr.mxu0 0.0
    %2787 = vmatpush1.msra.mxu0 %v2513
    %2788 = vmatprep.subr.mxu0 0.0
    %2789 = vmatpush1.msra.mxu0 %v2516
    %2790 = vmatprep.subr.mxu0 0.0
    %2791 = vmatpush1.msra.mxu0 %v2519
    %2792 = vmatprep.subr.mxu0 0.0
    %2793 = vmatpush1.msra.mxu0 %v2522
    %2794 = vmatprep.subr.mxu0 0.0
    %2795 = vmatpush1.msra.mxu0 %v2525
    %2796 = vmatprep.subr.mxu0 0.0
    %2797 = vmatpush1.msra.mxu0 %v2528
    %2798 = vmatprep.subr.mxu0 0.0
    %2799 = vmatpush1.msra.mxu0 0.0
    %2800 = vmatprep.subr.mxu0 0.0
    %2801 = vmatpush1.msra.mxu0 0.0
    %2802 = vmatprep.subr.mxu0 0.0
    %2803 = vmatpush1.msra.mxu0 0.0
    %2804 = vmatprep.subr.mxu0 0.0
    %2805 = vmatpush1.msra.mxu0 0.0
    %2806 = vmatprep.subr.mxu0 0.0
    %2807 = vmatpush1.msra.mxu0 0.0
    %2808 = vmatprep.subr.mxu0 0.0
    %2809 = vmatpush1.msra.mxu0 0.0
    %2810 = vmatprep.subr.mxu0 0.0
    %2811 = vmatpush1.msra.mxu0 0.0
    %2812 = vmatprep.subr.mxu0 0.0
    %2813 = vmatpush1.msra.mxu0 0.0
    %2814 = vmatprep.subr.mxu0 0.0
    %2815 = vmatpush1.msra.mxu0 0.0
    %2816 = vmatprep.subr.mxu0 0.0
    %2817 = vmatpush1.msra.mxu0 0.0
    %2818 = vmatprep.subr.mxu0 0.0
    %2819 = vmatpush1.msra.mxu0 0.0
    %2820 = vmatprep.subr.mxu0 0.0
    %2821 = vmatpush1.msra.mxu0 0.0
    %2822 = vmatprep.subr.mxu0 0.0
    %2823 = vmatpush1.msra.mxu0 0.0
    %2824 = vmatprep.subr.mxu0 0.0
    %2825 = vmatpush1.msra.mxu0 0.0
    %2826 = vmatprep.subr.mxu0 0.0
    %2827 = vmatpush1.msra.mxu0 0.0
    %2828 = vmatprep.subr.mxu0 0.0
    %2829 = vmatpush1.msra.mxu0 0.0
    %2830 = vmatprep.mubr.f32.mxu0 0.0
    %2831 = vmatmul.mubr.f32.gmra.mrb[0].mxu0 %v2691
    %v2832 = vpop.f32.mrb[0].mxu0
    %v2833 = vadd.f32 0.0, %v2832
    %v2834 = vpop.f32.mrb[0].mxu0
    %2835 = vdwg.mxu0
    %v2836 = vadd.f32 %v2692, %v2762
    %v2837 = vxor.u32 %v2836, 2147483648
    %v2838 = vmul.f32 %v2837, 1.442695
    %v2839 = vpow.pop %v2838
    %v2840 = vadd.f32 %v2839, 1.0
    %v2841 = vrcp.pop %v2840
    %v2842 = vmul.f32 1.0, %v2841
    %v2843 = vadd.f32 %v2693, %v2764
    %v2844 = vxor.u32 %v2843, 2147483648
    %v2845 = vmul.f32 %v2844, 1.442695
    %v2846 = vpow.pop %v2845
    %v2847 = vadd.f32 %v2846, 1.0
    %v2848 = vrcp.pop %v2847
    %v2849 = vmul.f32 1.0, %v2848
    %v2850 = vadd.f32 %v2833, %v2474
    %v2851 = vmul.f32 %v2842, %v2850
    %v2852 = vadd.f32 %v2694, %v2851
    %v2853 = vtanh.pop %v2852
    %v2854 = vsub.f32 1.0, %v2849
    %v2855 = vmul.f32 %v2854, %v2853
    %v2856 = vmul.f32 %v2849, %v2691
    %v2857 = vadd.f32 %v2855, %v2856
    %v2858 = vld [vmem:[%s841] sm:$0xff]
    %v2859 = vld [vmem:[%s841 + $0x8] sm:$0xff]
    %v2860 = vld [vmem:[%s841 + $0x10] sm:$0xff]
    %2861 = vmatprep.subr.mxu0 %v2482
    %2862 = vmatpush1.msra.mxu0 %v2481
    %2863 = vmatprep.subr.mxu0 %v2485
    %2864 = vmatpush1.msra.mxu0 %v2484
    %2865 = vmatprep.subr.mxu0 %v2488
    %2866 = vmatpush1.msra.mxu0 %v2487
    %2867 = vmatprep.subr.mxu0 %v2491
    %2868 = vmatpush1.msra.mxu0 %v2490
    %2869 = vmatprep.subr.mxu0 %v2494
    %2870 = vmatpush1.msra.mxu0 %v2493
    %2871 = vmatprep.subr.mxu0 %v2497
    %2872 = vmatpush1.msra.mxu0 %v2496
    %2873 = vmatprep.subr.mxu0 %v2500
    %2874 = vmatpush1.msra.mxu0 %v2499
    %2875 = vmatprep.subr.mxu0 %v2503
    %2876 = vmatpush1.msra.mxu0 %v2502
    %2877 = vmatprep.subr.mxu0 %v2506
    %2878 = vmatpush1.msra.mxu0 %v2505
    %2879 = vmatprep.subr.mxu0 %v2509
    %2880 = vmatpush1.msra.mxu0 %v2508
    %2881 = vmatprep.subr.mxu0 %v2512
    %2882 = vmatpush1.msra.mxu0 %v2511
    %2883 = vmatprep.subr.mxu0 %v2515
    %2884 = vmatpush1.msra.mxu0 %v2514
    %2885 = vmatprep.subr.mxu0 %v2518
    %2886 = vmatpush1.msra.mxu0 %v2517
    %2887 = vmatprep.subr.mxu0 %v2521
    %2888 = vmatpush1.msra.mxu0 %v2520
    %2889 = vmatprep.subr.mxu0 %v2524
    %2890 = vmatpush1.msra.mxu0 %v2523
    %2891 = vmatprep.subr.mxu0 %v2527
    %2892 = vmatpush1.msra.mxu0 %v2526
    %2893 = vmatprep.subr.mxu0 0.0
    %2894 = vmatpush1.msra.mxu0 0.0
    %2895 = vmatprep.subr.mxu0 0.0
    %2896 = vmatpush1.msra.mxu0 0.0
    %2897 = vmatprep.subr.mxu0 0.0
    %2898 = vmatpush1.msra.mxu0 0.0
    %2899 = vmatprep.subr.mxu0 0.0
    %2900 = vmatpush1.msra.mxu0 0.0
    %2901 = vmatprep.subr.mxu0 0.0
    %2902 = vmatpush1.msra.mxu0 0.0
    %2903 = vmatprep.subr.mxu0 0.0
    %2904 = vmatpush1.msra.mxu0 0.0
    %2905 = vmatprep.subr.mxu0 0.0
    %2906 = vmatpush1.msra.mxu0 0.0
    %2907 = vmatprep.subr.mxu0 0.0
    %2908 = vmatpush1.msra.mxu0 0.0
    %2909 = vmatprep.subr.mxu0 0.0
    %2910 = vmatpush1.msra.mxu0 0.0
    %2911 = vmatprep.subr.mxu0 0.0
    %2912 = vmatpush1.msra.mxu0 0.0
    %2913 = vmatprep.subr.mxu0 0.0
    %2914 = vmatpush1.msra.mxu0 0.0
    %2915 = vmatprep.subr.mxu0 0.0
    %2916 = vmatpush1.msra.mxu0 0.0
    %2917 = vmatprep.subr.mxu0 0.0
    %2918 = vmatpush1.msra.mxu0 0.0
    %2919 = vmatprep.subr.mxu0 0.0
    %2920 = vmatpush1.msra.mxu0 0.0
    %2921 = vmatprep.subr.mxu0 0.0
    %2922 = vmatpush1.msra.mxu0 0.0
    %2923 = vmatprep.subr.mxu0 0.0
    %2924 = vmatpush1.msra.mxu0 0.0
    %2925 = vmatprep.mubr.f32.mxu0 0.0
    %2926 = vmatmul.mubr.f32.gmra.mrb[0].mxu0 %v2857
    %v2927 = vpop.f32.mrb[0].mxu0
    %v2928 = vadd.f32 0.0, %v2927
    %v2929 = vpop.f32.mrb[0].mxu0
    %v2930 = vadd.f32 0.0, %v2929
    %2931 = vdwg.mxu0
    %2932 = vmatprep.subr.mxu0 0.0
    %2933 = vmatpush1.msra.mxu0 %v2483
    %2934 = vmatprep.subr.mxu0 0.0
    %2935 = vmatpush1.msra.mxu0 %v2486
    %2936 = vmatprep.subr.mxu0 0.0
    %2937 = vmatpush1.msra.mxu0 %v2489
    %2938 = vmatprep.subr.mxu0 0.0
    %2939 = vmatpush1.msra.mxu0 %v2492
    %2940 = vmatprep.subr.mxu0 0.0
    %2941 = vmatpush1.msra.mxu0 %v2495
    %2942 = vmatprep.subr.mxu0 0.0
    %2943 = vmatpush1.msra.mxu0 %v2498
    %2944 = vmatprep.subr.mxu0 0.0
    %2945 = vmatpush1.msra.mxu0 %v2501
    %2946 = vmatprep.subr.mxu0 0.0
    %2947 = vmatpush1.msra.mxu0 %v2504
    %2948 = vmatprep.subr.mxu0 0.0
    %2949 = vmatpush1.msra.mxu0 %v2507
    %2950 = vmatprep.subr.mxu0 0.0
    %2951 = vmatpush1.msra.mxu0 %v2510
    %2952 = vmatprep.subr.mxu0 0.0
    %2953 = vmatpush1.msra.mxu0 %v2513
    %2954 = vmatprep.subr.mxu0 0.0
    %2955 = vmatpush1.msra.mxu0 %v2516
    %2956 = vmatprep.subr.mxu0 0.0
    %2957 = vmatpush1.msra.mxu0 %v2519
    %2958 = vmatprep.subr.mxu0 0.0
    %2959 = vmatpush1.msra.mxu0 %v2522
    %2960 = vmatprep.subr.mxu0 0.0
    %2961 = vmatpush1.msra.mxu0 %v2525
    %2962 = vmatprep.subr.mxu0 0.0
    %2963 = vmatpush1.msra.mxu0 %v2528
    %2964 = vmatprep.subr.mxu0 0.0
    %2965 = vmatpush1.msra.mxu0 0.0
    %2966 = vmatprep.subr.mxu0 0.0
    %2967 = vmatpush1.msra.mxu0 0.0
    %2968 = vmatprep.subr.mxu0 0.0
    %2969 = vmatpush1.msra.mxu0 0.0
    %2970 = vmatprep.subr.mxu0 0.0
    %2971 = vmatpush1.msra.mxu0 0.0
    %2972 = vmatprep.subr.mxu0 0.0
    %2973 = vmatpush1.msra.mxu0 0.0
    %2974 = vmatprep.subr.mxu0 0.0
    %2975 = vmatpush1.msra.mxu0 0.0
    %2976 = vmatprep.subr.mxu0 0.0
    %2977 = vmatpush1.msra.mxu0 0.0
    %2978 = vmatprep.subr.mxu0 0.0
    %2979 = vmatpush1.msra.mxu0 0.0
    %2980 = vmatprep.subr.mxu0 0.0
    %2981 = vmatpush1.msra.mxu0 0.0
    %2982 = vmatprep.subr.mxu0 0.0
    %2983 = vmatpush1.msra.mxu0 0.0
    %2984 = vmatprep.subr.mxu0 0.0
    %2985 = vmatpush1.msra.mxu0 0.0
    %2986 = vmatprep.subr.mxu0 0.0
    %2987 = vmatpush1.msra.mxu0 0.0
    %2988 = vmatprep.subr.mxu0 0.0
    %2989 = vmatpush1.msra.mxu0 0.0
    %2990 = vmatprep.subr.mxu0 0.0
    %2991 = vmatpush1.msra.mxu0 0.0
    %2992 = vmatprep.subr.mxu0 0.0
    %2993 = vmatpush1.msra.mxu0 0.0
    %2994 = vmatprep.subr.mxu0 0.0
    %2995 = vmatpush1.msra.mxu0 0.0
    %2996 = vmatprep.mubr.f32.mxu0 0.0
    %2997 = vmatmul.mubr.f32.gmra.mrb[0].mxu0 %v2857
    %v2998 = vpop.f32.mrb[0].mxu0
    %v2999 = vadd.f32 0.0, %v2998
    %v3000 = vpop.f32.mrb[0].mxu0
    %3001 = vdwg.mxu0
    %v3002 = vadd.f32 %v2858, %v2928
    %v3003 = vxor.u32 %v3002, 2147483648
    %v3004 = vmul.f32 %v3003, 1.442695
    %v3005 = vpow.pop %v3004
    %v3006 = vadd.f32 %v3005, 1.0
    %v3007 = vrcp.pop %v3006
    %v3008 = vmul.f32 1.0, %v3007
    %v3009 = vadd.f32 %v2859, %v2930
    %v3010 = vxor.u32 %v3009, 2147483648
    %v3011 = vmul.f32 %v3010, 1.442695
    %v3012 = vpow.pop %v3011
    %v3013 = vadd.f32 %v3012, 1.0
    %v3014 = vrcp.pop %v3013
    %v3015 = vmul.f32 1.0, %v3014
    %v3016 = vadd.f32 %v2999, %v2474
    %v3017 = vmul.f32 %v3008, %v3016
    %v3018 = vadd.f32 %v2860, %v3017
    %v3019 = vtanh.pop %v3018
    %v3020 = vsub.f32 1.0, %v3015
    %v3021 = vmul.f32 %v3020, %v3019
    %v3022 = vmul.f32 %v3015, %v2857
    %v3023 = vadd.f32 %v3021, %v3022
    %v3024 = vld [vmem:[%s1060] sm:$0xff]
    %v3025 = vld [vmem:[%s1060 + $0x8] sm:$0xff]
    %v3026 = vld [vmem:[%s1060 + $0x10] sm:$0xff]
    %3027 = vmatprep.subr.mxu0 %v2482
    %3028 = vmatpush1.msra.mxu0 %v2481
    %3029 = vmatprep.subr.mxu0 %v2485
    %3030 = vmatpush1.msra.mxu0 %v2484
    %3031 = vmatprep.subr.mxu0 %v2488
    %3032 = vmatpush1.msra.mxu0 %v2487
    %3033 = vmatprep.subr.mxu0 %v2491
    %3034 = vmatpush1.msra.mxu0 %v2490
    %3035 = vmatprep.subr.mxu0 %v2494
    %3036 = vmatpush1.msra.mxu0 %v2493
    %3037 = vmatprep.subr.mxu0 %v2497
    %3038 = vmatpush1.msra.mxu0 %v2496
    %3039 = vmatprep.subr.mxu0 %v2500
    %3040 = vmatpush1.msra.mxu0 %v2499
    %3041 = vmatprep.subr.mxu0 %v2503
    %3042 = vmatpush1.msra.mxu0 %v2502
    %3043 = vmatprep.subr.mxu0 %v2506
    %3044 = vmatpush1.msra.mxu0 %v2505
    %3045 = vmatprep.subr.mxu0 %v2509
    %3046 = vmatpush1.msra.mxu0 %v2508
    %3047 = vmatprep.subr.mxu0 %v2512
    %3048 = vmatpush1.msra.mxu0 %v2511
    %3049 = vmatprep.subr.mxu0 %v2515
    %3050 = vmatpush1.msra.mxu0 %v2514
    %3051 = vmatprep.subr.mxu0 %v2518
    %3052 = vmatpush1.msra.mxu0 %v2517
    %3053 = vmatprep.subr.mxu0 %v2521
    %3054 = vmatpush1.msra.mxu0 %v2520
    %3055 = vmatprep.subr.mxu0 %v2524
    %3056 = vmatpush1.msra.mxu0 %v2523
    %3057 = vmatprep.subr.mxu0 %v2527
    %3058 = vmatpush1.msra.mxu0 %v2526
    %3059 = vmatprep.subr.mxu0 0.0
    %3060 = vmatpush1.msra.mxu0 0.0
    %3061 = vmatprep.subr.mxu0 0.0
    %3062 = vmatpush1.msra.mxu0 0.0
    %3063 = vmatprep.subr.mxu0 0.0
    %3064 = vmatpush1.msra.mxu0 0.0
    %3065 = vmatprep.subr.mxu0 0.0
    %3066 = vmatpush1.msra.mxu0 0.0
    %3067 = vmatprep.subr.mxu0 0.0
    %3068 = vmatpush1.msra.mxu0 0.0
    %3069 = vmatprep.subr.mxu0 0.0
    %3070 = vmatpush1.msra.mxu0 0.0
    %3071 = vmatprep.subr.mxu0 0.0
    %3072 = vmatpush1.msra.mxu0 0.0
    %3073 = vmatprep.subr.mxu0 0.0
    %3074 = vmatpush1.msra.mxu0 0.0
    %3075 = vmatprep.subr.mxu0 0.0
    %3076 = vmatpush1.msra.mxu0 0.0
    %3077 = vmatprep.subr.mxu0 0.0
    %3078 = vmatpush1.msra.mxu0 0.0
    %3079 = vmatprep.subr.mxu0 0.0
    %3080 = vmatpush1.msra.mxu0 0.0
    %3081 = vmatprep.subr.mxu0 0.0
    %3082 = vmatpush1.msra.mxu0 0.0
    %3083 = vmatprep.subr.mxu0 0.0
    %3084 = vmatpush1.msra.mxu0 0.0
    %3085 = vmatprep.subr.mxu0 0.0
    %3086 = vmatpush1.msra.mxu0 0.0
    %3087 = vmatprep.subr.mxu0 0.0
    %3088 = vmatpush1.msra.mxu0 0.0
    %3089 = vmatprep.subr.mxu0 0.0
    %3090 = vmatpush1.msra.mxu0 0.0
    %3091 = vmatprep.mubr.f32.mxu0 0.0
    %3092 = vmatmul.mubr.f32.gmra.mrb[0].mxu0 %v3023
    %v3093 = vpop.f32.mrb[0].mxu0
    %v3094 = vadd.f32 0.0, %v3093
    %v3095 = vpop.f32.mrb[0].mxu0
    %v3096 = vadd.f32 0.0, %v3095
    %3097 = vdwg.mxu0
    %3098 = vmatprep.subr.mxu0 0.0
    %3099 = vmatpush1.msra.mxu0 %v2483
    %3100 = vmatprep.subr.mxu0 0.0
    %3101 = vmatpush1.msra.mxu0 %v2486
    %3102 = vmatprep.subr.mxu0 0.0
    %3103 = vmatpush1.msra.mxu0 %v2489
    %3104 = vmatprep.subr.mxu0 0.0
    %3105 = vmatpush1.msra.mxu0 %v2492
    %3106 = vmatprep.subr.mxu0 0.0
    %3107 = vmatpush1.msra.mxu0 %v2495
    %3108 = vmatprep.subr.mxu0 0.0
    %3109 = vmatpush1.msra.mxu0 %v2498
    %3110 = vmatprep.subr.mxu0 0.0
    %3111 = vmatpush1.msra.mxu0 %v2501
    %3112 = vmatprep.subr.mxu0 0.0
    %3113 = vmatpush1.msra.mxu0 %v2504
    %3114 = vmatprep.subr.mxu0 0.0
    %3115 = vmatpush1.msra.mxu0 %v2507
    %3116 = vmatprep.subr.mxu0 0.0
    %3117 = vmatpush1.msra.mxu0 %v2510
    %3118 = vmatprep.subr.mxu0 0.0
    %3119 = vmatpush1.msra.mxu0 %v2513
    %3120 = vmatprep.subr.mxu0 0.0
    %3121 = vmatpush1.msra.mxu0 %v2516
    %3122 = vmatprep.subr.mxu0 0.0
    %3123 = vmatpush1.msra.mxu0 %v2519
    %3124 = vmatprep.subr.mxu0 0.0
    %3125 = vmatpush1.msra.mxu0 %v2522
    %3126 = vmatprep.subr.mxu0 0.0
    %3127 = vmatpush1.msra.mxu0 %v2525
    %3128 = vmatprep.subr.mxu0 0.0
    %3129 = vmatpush1.msra.mxu0 %v2528
    %3130 = vmatprep.subr.mxu0 0.0
    %3131 = vmatpush1.msra.mxu0 0.0
    %3132 = vmatprep.subr.mxu0 0.0
    %3133 = vmatpush1.msra.mxu0 0.0
    %3134 = vmatprep.subr.mxu0 0.0
    %3135 = vmatpush1.msra.mxu0 0.0
    %3136 = vmatprep.subr.mxu0 0.0
    %3137 = vmatpush1.msra.mxu0 0.0
    %3138 = vmatprep.subr.mxu0 0.0
    %3139 = vmatpush1.msra.mxu0 0.0
    %3140 = vmatprep.subr.mxu0 0.0
    %3141 = vmatpush1.msra.mxu0 0.0
    %3142 = vmatprep.subr.mxu0 0.0
    %3143 = vmatpush1.msra.mxu0 0.0
    %3144 = vmatprep.subr.mxu0 0.0
    %3145 = vmatpush1.msra.mxu0 0.0
    %3146 = vmatprep.subr.mxu0 0.0
    %3147 = vmatpush1.msra.mxu0 0.0
    %3148 = vmatprep.subr.mxu0 0.0
    %3149 = vmatpush1.msra.mxu0 0.0
    %3150 = vmatprep.subr.mxu0 0.0
    %3151 = vmatpush1.msra.mxu0 0.0
    %3152 = vmatprep.subr.mxu0 0.0
    %3153 = vmatpush1.msra.mxu0 0.0
    %3154 = vmatprep.subr.mxu0 0.0
    %3155 = vmatpush1.msra.mxu0 0.0
    %3156 = vmatprep.subr.mxu0 0.0
    %3157 = vmatpush1.msra.mxu0 0.0
    %3158 = vmatprep.subr.mxu0 0.0
    %3159 = vmatpush1.msra.mxu0 0.0
    %3160 = vmatprep.subr.mxu0 0.0
    %3161 = vmatpush1.msra.mxu0 0.0
    %3162 = vmatprep.mubr.f32.mxu0 0.0
    %3163 = vmatmul.mubr.f32.gmra.mrb[0].mxu0 %v3023
    %v3164 = vpop.f32.mrb[0].mxu0
    %v3165 = vadd.f32 0.0, %v3164
    %v3166 = vpop.f32.mrb[0].mxu0
    %3167 = vdwg.mxu0
    %v3168 = vadd.f32 %v3024, %v3094
    %v3169 = vxor.u32 %v3168, 2147483648
    %v3170 = vmul.f32 %v3169, 1.442695
    %v3171 = vpow.pop %v3170
    %v3172 = vadd.f32 %v3171, 1.0
    %v3173 = vrcp.pop %v3172
    %v3174 = vmul.f32 1.0, %v3173
    %v3175 = vadd.f32 %v3025, %v3096
    %v3176 = vxor.u32 %v3175, 2147483648
    %v3177 = vmul.f32 %v3176, 1.442695
    %v3178 = vpow.pop %v3177
    %v3179 = vadd.f32 %v3178, 1.0
    %v3180 = vrcp.pop %v3179
    %v3181 = vmul.f32 1.0, %v3180
    %v3182 = vadd.f32 %v3165, %v2474
    %v3183 = vmul.f32 %v3174, %v3182
    %v3184 = vadd.f32 %v3026, %v3183
    %v3185 = vtanh.pop %v3184
    %v3186 = vsub.f32 1.0, %v3181
    %v3187 = vmul.f32 %v3186, %v3185
    %v3188 = vmul.f32 %v3181, %v3023
    %v3189 = vadd.f32 %v3187, %v3188
    %v3190 = vld [vmem:[%s1279] sm:$0xff]
    %v3191 = vld [vmem:[%s1279 + $0x8] sm:$0xff]
    %v3192 = vld [vmem:[%s1279 + $0x10] sm:$0xff]
    %3193 = vmatprep.subr.mxu0 %v2482
    %3194 = vmatpush1.msra.mxu0 %v2481
    %3195 = vmatprep.subr.mxu0 %v2485
    %3196 = vmatpush1.msra.mxu0 %v2484
    %3197 = vmatprep.subr.mxu0 %v2488
    %3198 = vmatpush1.msra.mxu0 %v2487
    %3199 = vmatprep.subr.mxu0 %v2491
    %3200 = vmatpush1.msra.mxu0 %v2490
    %3201 = vmatprep.subr.mxu0 %v2494
    %3202 = vmatpush1.msra.mxu0 %v2493
    %3203 = vmatprep.subr.mxu0 %v2497
    %3204 = vmatpush1.msra.mxu0 %v2496
    %3205 = vmatprep.subr.mxu0 %v2500
    %3206 = vmatpush1.msra.mxu0 %v2499
    %3207 = vmatprep.subr.mxu0 %v2503
    %3208 = vmatpush1.msra.mxu0 %v2502
    %3209 = vmatprep.subr.mxu0 %v2506
    %3210 = vmatpush1.msra.mxu0 %v2505
    %3211 = vmatprep.subr.mxu0 %v2509
    %3212 = vmatpush1.msra.mxu0 %v2508
    %3213 = vmatprep.subr.mxu0 %v2512
    %3214 = vmatpush1.msra.mxu0 %v2511
    %3215 = vmatprep.subr.mxu0 %v2515
    %3216 = vmatpush1.msra.mxu0 %v2514
    %3217 = vmatprep.subr.mxu0 %v2518
    %3218 = vmatpush1.msra.mxu0 %v2517
    %3219 = vmatprep.subr.mxu0 %v2521
    %3220 = vmatpush1.msra.mxu0 %v2520
    %3221 = vmatprep.subr.mxu0 %v2524
    %3222 = vmatpush1.msra.mxu0 %v2523
    %3223 = vmatprep.subr.mxu0 %v2527
    %3224 = vmatpush1.msra.mxu0 %v2526
    %3225 = vmatprep.subr.mxu0 0.0
    %3226 = vmatpush1.msra.mxu0 0.0
    %3227 = vmatprep.subr.mxu0 0.0
    %3228 = vmatpush1.msra.mxu0 0.0
    %3229 = vmatprep.subr.mxu0 0.0
    %3230 = vmatpush1.msra.mxu0 0.0
    %3231 = vmatprep.subr.mxu0 0.0
    %3232 = vmatpush1.msra.mxu0 0.0
    %3233 = vmatprep.subr.mxu0 0.0
    %3234 = vmatpush1.msra.mxu0 0.0
    %3235 = vmatprep.subr.mxu0 0.0
    %3236 = vmatpush1.msra.mxu0 0.0
    %3237 = vmatprep.subr.mxu0 0.0
    %3238 = vmatpush1.msra.mxu0 0.0
    %3239 = vmatprep.subr.mxu0 0.0
    %3240 = vmatpush1.msra.mxu0 0.0
    %3241 = vmatprep.subr.mxu0 0.0
    %3242 = vmatpush1.msra.mxu0 0.0
    %3243 = vmatprep.subr.mxu0 0.0
    %3244 = vmatpush1.msra.mxu0 0.0
    %3245 = vmatprep.subr.mxu0 0.0
    %3246 = vmatpush1.msra.mxu0 0.0
    %3247 = vmatprep.subr.mxu0 0.0
    %3248 = vmatpush1.msra.mxu0 0.0
    %3249 = vmatprep.subr.mxu0 0.0
    %3250 = vmatpush1.msra.mxu0 0.0
    %3251 = vmatprep.subr.mxu0 0.0
    %3252 = vmatpush1.msra.mxu0 0.0
    %3253 = vmatprep.subr.mxu0 0.0
    %3254 = vmatpush1.msra.mxu0 0.0
    %3255 = vmatprep.subr.mxu0 0.0
    %3256 = vmatpush1.msra.mxu0 0.0
    %3257 = vmatprep.mubr.f32.mxu0 0.0
    %3258 = vmatmul.mubr.f32.gmra.mrb[0].mxu0 %v3189
    %v3259 = vpop.f32.mrb[0].mxu0
    %v3260 = vadd.f32 0.0, %v3259
    %v3261 = vpop.f32.mrb[0].mxu0
    %v3262 = vadd.f32 0.0, %v3261
    %3263 = vdwg.mxu0
    %3264 = vmatprep.subr.mxu0 0.0
    %3265 = vmatpush1.msra.mxu0 %v2483
    %3266 = vmatprep.subr.mxu0 0.0
    %3267 = vmatpush1.msra.mxu0 %v2486
    %3268 = vmatprep.subr.mxu0 0.0
    %3269 = vmatpush1.msra.mxu0 %v2489
    %3270 = vmatprep.subr.mxu0 0.0
    %3271 = vmatpush1.msra.mxu0 %v2492
    %3272 = vmatprep.subr.mxu0 0.0
    %3273 = vmatpush1.msra.mxu0 %v2495
    %3274 = vmatprep.subr.mxu0 0.0
    %3275 = vmatpush1.msra.mxu0 %v2498
    %3276 = vmatprep.subr.mxu0 0.0
    %3277 = vmatpush1.msra.mxu0 %v2501
    %3278 = vmatprep.subr.mxu0 0.0
    %3279 = vmatpush1.msra.mxu0 %v2504
    %3280 = vmatprep.subr.mxu0 0.0
    %3281 = vmatpush1.msra.mxu0 %v2507
    %3282 = vmatprep.subr.mxu0 0.0
    %3283 = vmatpush1.msra.mxu0 %v2510
    %3284 = vmatprep.subr.mxu0 0.0
    %3285 = vmatpush1.msra.mxu0 %v2513
    %3286 = vmatprep.subr.mxu0 0.0
    %3287 = vmatpush1.msra.mxu0 %v2516
    %3288 = vmatprep.subr.mxu0 0.0
    %3289 = vmatpush1.msra.mxu0 %v2519
    %3290 = vmatprep.subr.mxu0 0.0
    %3291 = vmatpush1.msra.mxu0 %v2522
    %3292 = vmatprep.subr.mxu0 0.0
    %3293 = vmatpush1.msra.mxu0 %v2525
    %3294 = vmatprep.subr.mxu0 0.0
    %3295 = vmatpush1.msra.mxu0 %v2528
    %3296 = vmatprep.subr.mxu0 0.0
    %3297 = vmatpush1.msra.mxu0 0.0
    %3298 = vmatprep.subr.mxu0 0.0
    %3299 = vmatpush1.msra.mxu0 0.0
    %3300 = vmatprep.subr.mxu0 0.0
    %3301 = vmatpush1.msra.mxu0 0.0
    %3302 = vmatprep.subr.mxu0 0.0
    %3303 = vmatpush1.msra.mxu0 0.0
    %3304 = vmatprep.subr.mxu0 0.0
    %3305 = vmatpush1.msra.mxu0 0.0
    %3306 = vmatprep.subr.mxu0 0.0
    %3307 = vmatpush1.msra.mxu0 0.0
    %3308 = vmatprep.subr.mxu0 0.0
    %3309 = vmatpush1.msra.mxu0 0.0
    %3310 = vmatprep.subr.mxu0 0.0
    %3311 = vmatpush1.msra.mxu0 0.0
    %3312 = vmatprep.subr.mxu0 0.0
    %3313 = vmatpush1.msra.mxu0 0.0
    %3314 = vmatprep.subr.mxu0 0.0
    %3315 = vmatpush1.msra.mxu0 0.0
    %3316 = vmatprep.subr.mxu0 0.0
    %3317 = vmatpush1.msra.mxu0 0.0
    %3318 = vmatprep.subr.mxu0 0.0
    %3319 = vmatpush1.msra.mxu0 0.0
    %3320 = vmatprep.subr.mxu0 0.0
    %3321 = vmatpush1.msra.mxu0 0.0
    %3322 = vmatprep.subr.mxu0 0.0
    %3323 = vmatpush1.msra.mxu0 0.0
    %3324 = vmatprep.subr.mxu0 0.0
    %3325 = vmatpush1.msra.mxu0 0.0
    %3326 = vmatprep.subr.mxu0 0.0
    %3327 = vmatpush1.msra.mxu0 0.0
    %3328 = vmatprep.mubr.f32.mxu0 0.0
    %3329 = vmatmul.mubr.f32.gmra.mrb[0].mxu0 %v3189
    %v3330 = vpop.f32.mrb[0].mxu0
    %v3331 = vadd.f32 0.0, %v3330
    %v3332 = vpop.f32.mrb[0].mxu0
    %3333 = vdwg.mxu0
    %v3334 = vadd.f32 %v3190, %v3260
    %v3335 = vxor.u32 %v3334, 2147483648
    %v3336 = vmul.f32 %v3335, 1.442695
    %v3337 = vpow.pop %v3336
    %v3338 = vadd.f32 %v3337, 1.0
    %v3339 = vrcp.pop %v3338
    %v3340 = vmul.f32 1.0, %v3339
    %v3341 = vadd.f32 %v3191, %v3262
    %v3342 = vxor.u32 %v3341, 2147483648
    %v3343 = vmul.f32 %v3342, 1.442695
    %v3344 = vpow.pop %v3343
    %v3345 = vadd.f32 %v3344, 1.0
    %v3346 = vrcp.pop %v3345
    %v3347 = vmul.f32 1.0, %v3346
    %v3348 = vadd.f32 %v3331, %v2474
    %v3349 = vmul.f32 %v3340, %v3348
    %v3350 = vadd.f32 %v3192, %v3349
    %v3351 = vtanh.pop %v3350
    %v3352 = vsub.f32 1.0, %v3347
    %v3353 = vmul.f32 %v3352, %v3351
    %v3354 = vmul.f32 %v3347, %v3189
    %v3355 = vadd.f32 %v3353, %v3354
    %v3356 = vld [vmem:[%s1498] sm:$0xff]
    %v3357 = vld [vmem:[%s1498 + $0x8] sm:$0xff]
    %v3358 = vld [vmem:[%s1498 + $0x10] sm:$0xff]
    %3359 = vmatprep.subr.mxu0 %v2482
    %3360 = vmatpush1.msra.mxu0 %v2481
    %3361 = vmatprep.subr.mxu0 %v2485
    %3362 = vmatpush1.msra.mxu0 %v2484
    %3363 = vmatprep.subr.mxu0 %v2488
    %3364 = vmatpush1.msra.mxu0 %v2487
    %3365 = vmatprep.subr.mxu0 %v2491
    %3366 = vmatpush1.msra.mxu0 %v2490
    %3367 = vmatprep.subr.mxu0 %v2494
    %3368 = vmatpush1.msra.mxu0 %v2493
    %3369 = vmatprep.subr.mxu0 %v2497
    %3370 = vmatpush1.msra.mxu0 %v2496
    %3371 = vmatprep.subr.mxu0 %v2500
    %3372 = vmatpush1.msra.mxu0 %v2499
    %3373 = vmatprep.subr.mxu0 %v2503
    %3374 = vmatpush1.msra.mxu0 %v2502
    %3375 = vmatprep.subr.mxu0 %v2506
    %3376 = vmatpush1.msra.mxu0 %v2505
    %3377 = vmatprep.subr.mxu0 %v2509
    %3378 = vmatpush1.msra.mxu0 %v2508
    %3379 = vmatprep.subr.mxu0 %v2512
    %3380 = vmatpush1.msra.mxu0 %v2511
    %3381 = vmatprep.subr.mxu0 %v2515
    %3382 = vmatpush1.msra.mxu0 %v2514
    %3383 = vmatprep.subr.mxu0 %v2518
    %3384 = vmatpush1.msra.mxu0 %v2517
    %3385 = vmatprep.subr.mxu0 %v2521
    %3386 = vmatpush1.msra.mxu0 %v2520
    %3387 = vmatprep.subr.mxu0 %v2524
    %3388 = vmatpush1.msra.mxu0 %v2523
    %3389 = vmatprep.subr.mxu0 %v2527
    %3390 = vmatpush1.msra.mxu0 %v2526
    %3391 = vmatprep.subr.mxu0 0.0
    %3392 = vmatpush1.msra.mxu0 0.0
    %3393 = vmatprep.subr.mxu0 0.0
    %3394 = vmatpush1.msra.mxu0 0.0
    %3395 = vmatprep.subr.mxu0 0.0
    %3396 = vmatpush1.msra.mxu0 0.0
    %3397 = vmatprep.subr.mxu0 0.0
    %3398 = vmatpush1.msra.mxu0 0.0
    %3399 = vmatprep.subr.mxu0 0.0
    %3400 = vmatpush1.msra.mxu0 0.0
    %3401 = vmatprep.subr.mxu0 0.0
    %3402 = vmatpush1.msra.mxu0 0.0
    %3403 = vmatprep.subr.mxu0 0.0
    %3404 = vmatpush1.msra.mxu0 0.0
    %3405 = vmatprep.subr.mxu0 0.0
    %3406 = vmatpush1.msra.mxu0 0.0
    %3407 = vmatprep.subr.mxu0 0.0
    %3408 = vmatpush1.msra.mxu0 0.0
    %3409 = vmatprep.subr.mxu0 0.0
    %3410 = vmatpush1.msra.mxu0 0.0
    %3411 = vmatprep.subr.mxu0 0.0
    %3412 = vmatpush1.msra.mxu0 0.0
    %3413 = vmatprep.subr.mxu0 0.0
    %3414 = vmatpush1.msra.mxu0 0.0
    %3415 = vmatprep.subr.mxu0 0.0
    %3416 = vmatpush1.msra.mxu0 0.0
    %3417 = vmatprep.subr.mxu0 0.0
    %3418 = vmatpush1.msra.mxu0 0.0
    %3419 = vmatprep.subr.mxu0 0.0
    %3420 = vmatpush1.msra.mxu0 0.0
    %3421 = vmatprep.subr.mxu0 0.0
    %3422 = vmatpush1.msra.mxu0 0.0
    %3423 = vmatprep.mubr.f32.mxu0 0.0
    %3424 = vmatmul.mubr.f32.gmra.mrb[0].mxu0 %v3355
    %v3425 = vpop.f32.mrb[0].mxu0
    %v3426 = vadd.f32 0.0, %v3425
    %v3427 = vpop.f32.mrb[0].mxu0
    %v3428 = vadd.f32 0.0, %v3427
    %3429 = vdwg.mxu0
    %3430 = vmatprep.subr.mxu0 0.0
    %3431 = vmatpush1.msra.mxu0 %v2483
    %3432 = vmatprep.subr.mxu0 0.0
    %3433 = vmatpush1.msra.mxu0 %v2486
    %3434 = vmatprep.subr.mxu0 0.0
    %3435 = vmatpush1.msra.mxu0 %v2489
    %3436 = vmatprep.subr.mxu0 0.0
    %3437 = vmatpush1.msra.mxu0 %v2492
    %3438 = vmatprep.subr.mxu0 0.0
    %3439 = vmatpush1.msra.mxu0 %v2495
    %3440 = vmatprep.subr.mxu0 0.0
    %3441 = vmatpush1.msra.mxu0 %v2498
    %3442 = vmatprep.subr.mxu0 0.0
    %3443 = vmatpush1.msra.mxu0 %v2501
    %3444 = vmatprep.subr.mxu0 0.0
    %3445 = vmatpush1.msra.mxu0 %v2504
    %3446 = vmatprep.subr.mxu0 0.0
    %3447 = vmatpush1.msra.mxu0 %v2507
    %3448 = vmatprep.subr.mxu0 0.0
    %3449 = vmatpush1.msra.mxu0 %v2510
    %3450 = vmatprep.subr.mxu0 0.0
    %3451 = vmatpush1.msra.mxu0 %v2513
    %3452 = vmatprep.subr.mxu0 0.0
    %3453 = vmatpush1.msra.mxu0 %v2516
    %3454 = vmatprep.subr.mxu0 0.0
    %3455 = vmatpush1.msra.mxu0 %v2519
    %3456 = vmatprep.subr.mxu0 0.0
    %3457 = vmatpush1.msra.mxu0 %v2522
    %3458 = vmatprep.subr.mxu0 0.0
    %3459 = vmatpush1.msra.mxu0 %v2525
    %3460 = vmatprep.subr.mxu0 0.0
    %3461 = vmatpush1.msra.mxu0 %v2528
    %3462 = vmatprep.subr.mxu0 0.0
    %3463 = vmatpush1.msra.mxu0 0.0
    %3464 = vmatprep.subr.mxu0 0.0
    %3465 = vmatpush1.msra.mxu0 0.0
    %3466 = vmatprep.subr.mxu0 0.0
    %3467 = vmatpush1.msra.mxu0 0.0
    %3468 = vmatprep.subr.mxu0 0.0
    %3469 = vmatpush1.msra.mxu0 0.0
    %3470 = vmatprep.subr.mxu0 0.0
    %3471 = vmatpush1.msra.mxu0 0.0
    %3472 = vmatprep.subr.mxu0 0.0
    %3473 = vmatpush1.msra.mxu0 0.0
    %3474 = vmatprep.subr.mxu0 0.0
    %3475 = vmatpush1.msra.mxu0 0.0
    %3476 = vmatprep.subr.mxu0 0.0
    %3477 = vmatpush1.msra.mxu0 0.0
    %3478 = vmatprep.subr.mxu0 0.0
    %3479 = vmatpush1.msra.mxu0 0.0
    %3480 = vmatprep.subr.mxu0 0.0
    %3481 = vmatpush1.msra.mxu0 0.0
    %3482 = vmatprep.subr.mxu0 0.0
    %3483 = vmatpush1.msra.mxu0 0.0
    %3484 = vmatprep.subr.mxu0 0.0
    %3485 = vmatpush1.msra.mxu0 0.0
    %3486 = vmatprep.subr.mxu0 0.0
    %3487 = vmatpush1.msra.mxu0 0.0
    %3488 = vmatprep.subr.mxu0 0.0
    %3489 = vmatpush1.msra.mxu0 0.0
    %3490 = vmatprep.subr.mxu0 0.0
    %3491 = vmatpush1.msra.mxu0 0.0
    %3492 = vmatprep.subr.mxu0 0.0
    %3493 = vmatpush1.msra.mxu0 0.0
    %3494 = vmatprep.mubr.f32.mxu0 0.0
    %3495 = vmatmul.mubr.f32.gmra.mrb[0].mxu0 %v3355
    %v3496 = vpop.f32.mrb[0].mxu0
    %v3497 = vadd.f32 0.0, %v3496
    %v3498 = vpop.f32.mrb[0].mxu0
    %3499 = vdwg.mxu0
    %v3500 = vadd.f32 %v3356, %v3426
    %v3501 = vxor.u32 %v3500, 2147483648
    %v3502 = vmul.f32 %v3501, 1.442695
    %v3503 = vpow.pop %v3502
    %v3504 = vadd.f32 %v3503, 1.0
    %v3505 = vrcp.pop %v3504
    %v3506 = vmul.f32 1.0, %v3505
    %v3507 = vadd.f32 %v3357, %v3428
    %v3508 = vxor.u32 %v3507, 2147483648
    %v3509 = vmul.f32 %v3508, 1.442695
    %v3510 = vpow.pop %v3509
    %v3511 = vadd.f32 %v3510, 1.0
    %v3512 = vrcp.pop %v3511
    %v3513 = vmul.f32 1.0, %v3512
    %v3514 = vadd.f32 %v3497, %v2474
    %v3515 = vmul.f32 %v3506, %v3514
    %v3516 = vadd.f32 %v3358, %v3515
    %v3517 = vtanh.pop %v3516
    %v3518 = vsub.f32 1.0, %v3513
    %v3519 = vmul.f32 %v3518, %v3517
    %v3520 = vmul.f32 %v3513, %v3355
    %v3521 = vadd.f32 %v3519, %v3520
    %v3522 = vld [vmem:[%s1717] sm:$0xff]
    %v3523 = vld [vmem:[%s1717 + $0x8] sm:$0xff]
    %v3524 = vld [vmem:[%s1717 + $0x10] sm:$0xff]
    %3525 = vmatprep.subr.mxu0 %v2482
    %3526 = vmatpush1.msra.mxu0 %v2481
    %3527 = vmatprep.subr.mxu0 %v2485
    %3528 = vmatpush1.msra.mxu0 %v2484
    %3529 = vmatprep.subr.mxu0 %v2488
    %3530 = vmatpush1.msra.mxu0 %v2487
    %3531 = vmatprep.subr.mxu0 %v2491
    %3532 = vmatpush1.msra.mxu0 %v2490
    %3533 = vmatprep.subr.mxu0 %v2494
    %3534 = vmatpush1.msra.mxu0 %v2493
    %3535 = vmatprep.subr.mxu0 %v2497
    %3536 = vmatpush1.msra.mxu0 %v2496
    %3537 = vmatprep.subr.mxu0 %v2500
    %3538 = vmatpush1.msra.mxu0 %v2499
    %3539 = vmatprep.subr.mxu0 %v2503
    %3540 = vmatpush1.msra.mxu0 %v2502
    %3541 = vmatprep.subr.mxu0 %v2506
    %3542 = vmatpush1.msra.mxu0 %v2505
    %3543 = vmatprep.subr.mxu0 %v2509
    %3544 = vmatpush1.msra.mxu0 %v2508
    %3545 = vmatprep.subr.mxu0 %v2512
    %3546 = vmatpush1.msra.mxu0 %v2511
    %3547 = vmatprep.subr.mxu0 %v2515
    %3548 = vmatpush1.msra.mxu0 %v2514
    %3549 = vmatprep.subr.mxu0 %v2518
    %3550 = vmatpush1.msra.mxu0 %v2517
    %3551 = vmatprep.subr.mxu0 %v2521
    %3552 = vmatpush1.msra.mxu0 %v2520
    %3553 = vmatprep.subr.mxu0 %v2524
    %3554 = vmatpush1.msra.mxu0 %v2523
    %3555 = vmatprep.subr.mxu0 %v2527
    %3556 = vmatpush1.msra.mxu0 %v2526
    %3557 = vmatprep.subr.mxu0 0.0
    %3558 = vmatpush1.msra.mxu0 0.0
    %3559 = vmatprep.subr.mxu0 0.0
    %3560 = vmatpush1.msra.mxu0 0.0
    %3561 = vmatprep.subr.mxu0 0.0
    %3562 = vmatpush1.msra.mxu0 0.0
    %3563 = vmatprep.subr.mxu0 0.0
    %3564 = vmatpush1.msra.mxu0 0.0
    %3565 = vmatprep.subr.mxu0 0.0
    %3566 = vmatpush1.msra.mxu0 0.0
    %3567 = vmatprep.subr.mxu0 0.0
    %3568 = vmatpush1.msra.mxu0 0.0
    %3569 = vmatprep.subr.mxu0 0.0
    %3570 = vmatpush1.msra.mxu0 0.0
    %3571 = vmatprep.subr.mxu0 0.0
    %3572 = vmatpush1.msra.mxu0 0.0
    %3573 = vmatprep.subr.mxu0 0.0
    %3574 = vmatpush1.msra.mxu0 0.0
    %3575 = vmatprep.subr.mxu0 0.0
    %3576 = vmatpush1.msra.mxu0 0.0
    %3577 = vmatprep.subr.mxu0 0.0
    %3578 = vmatpush1.msra.mxu0 0.0
    %3579 = vmatprep.subr.mxu0 0.0
    %3580 = vmatpush1.msra.mxu0 0.0
    %3581 = vmatprep.subr.mxu0 0.0
    %3582 = vmatpush1.msra.mxu0 0.0
    %3583 = vmatprep.subr.mxu0 0.0
    %3584 = vmatpush1.msra.mxu0 0.0
    %3585 = vmatprep.subr.mxu0 0.0
    %3586 = vmatpush1.msra.mxu0 0.0
    %3587 = vmatprep.subr.mxu0 0.0
    %3588 = vmatpush1.msra.mxu0 0.0
    %3589 = vmatprep.mubr.f32.mxu0 0.0
    %3590 = vmatmul.mubr.f32.gmra.mrb[0].mxu0 %v3521
    %v3591 = vpop.f32.mrb[0].mxu0
    %v3592 = vadd.f32 0.0, %v3591
    %v3593 = vpop.f32.mrb[0].mxu0
    %v3594 = vadd.f32 0.0, %v3593
    %3595 = vdwg.mxu0
    %3596 = vmatprep.subr.mxu0 0.0
    %3597 = vmatpush1.msra.mxu0 %v2483
    %3598 = vmatprep.subr.mxu0 0.0
    %3599 = vmatpush1.msra.mxu0 %v2486
    %3600 = vmatprep.subr.mxu0 0.0
    %3601 = vmatpush1.msra.mxu0 %v2489
    %3602 = vmatprep.subr.mxu0 0.0
    %3603 = vmatpush1.msra.mxu0 %v2492
    %3604 = vmatprep.subr.mxu0 0.0
    %3605 = vmatpush1.msra.mxu0 %v2495
    %3606 = vmatprep.subr.mxu0 0.0
    %3607 = vmatpush1.msra.mxu0 %v2498
    %3608 = vmatprep.subr.mxu0 0.0
    %3609 = vmatpush1.msra.mxu0 %v2501
    %3610 = vmatprep.subr.mxu0 0.0
    %3611 = vmatpush1.msra.mxu0 %v2504
    %3612 = vmatprep.subr.mxu0 0.0
    %3613 = vmatpush1.msra.mxu0 %v2507
    %3614 = vmatprep.subr.mxu0 0.0
    %3615 = vmatpush1.msra.mxu0 %v2510
    %3616 = vmatprep.subr.mxu0 0.0
    %3617 = vmatpush1.msra.mxu0 %v2513
    %3618 = vmatprep.subr.mxu0 0.0
    %3619 = vmatpush1.msra.mxu0 %v2516
    %3620 = vmatprep.subr.mxu0 0.0
    %3621 = vmatpush1.msra.mxu0 %v2519
    %3622 = vmatprep.subr.mxu0 0.0
    %3623 = vmatpush1.msra.mxu0 %v2522
    %3624 = vmatprep.subr.mxu0 0.0
    %3625 = vmatpush1.msra.mxu0 %v2525
    %3626 = vmatprep.subr.mxu0 0.0
    %3627 = vmatpush1.msra.mxu0 %v2528
    %3628 = vmatprep.subr.mxu0 0.0
    %3629 = vmatpush1.msra.mxu0 0.0
    %3630 = vmatprep.subr.mxu0 0.0
    %3631 = vmatpush1.msra.mxu0 0.0
    %3632 = vmatprep.subr.mxu0 0.0
    %3633 = vmatpush1.msra.mxu0 0.0
    %3634 = vmatprep.subr.mxu0 0.0
    %3635 = vmatpush1.msra.mxu0 0.0
    %3636 = vmatprep.subr.mxu0 0.0
    %3637 = vmatpush1.msra.mxu0 0.0
    %3638 = vmatprep.subr.mxu0 0.0
    %3639 = vmatpush1.msra.mxu0 0.0
    %3640 = vmatprep.subr.mxu0 0.0
    %3641 = vmatpush1.msra.mxu0 0.0
    %3642 = vmatprep.subr.mxu0 0.0
    %3643 = vmatpush1.msra.mxu0 0.0
    %3644 = vmatprep.subr.mxu0 0.0
    %3645 = vmatpush1.msra.mxu0 0.0
    %3646 = vmatprep.subr.mxu0 0.0
    %3647 = vmatpush1.msra.mxu0 0.0
    %3648 = vmatprep.subr.mxu0 0.0
    %3649 = vmatpush1.msra.mxu0 0.0
    %3650 = vmatprep.subr.mxu0 0.0
    %3651 = vmatpush1.msra.mxu0 0.0
    %3652 = vmatprep.subr.mxu0 0.0
    %3653 = vmatpush1.msra.mxu0 0.0
    %3654 = vmatprep.subr.mxu0 0.0
    %3655 = vmatpush1.msra.mxu0 0.0
    %3656 = vmatprep.subr.mxu0 0.0
    %3657 = vmatpush1.msra.mxu0 0.0
    %3658 = vmatprep.subr.mxu0 0.0
    %3659 = vmatpush1.msra.mxu0 0.0
    %3660 = vmatprep.mubr.f32.mxu0 0.0
    %3661 = vmatmul.mubr.f32.gmra.mrb[0].mxu0 %v3521
    %v3662 = vpop.f32.mrb[0].mxu0
    %v3663 = vadd.f32 0.0, %v3662
    %v3664 = vpop.f32.mrb[0].mxu0
    %3665 = vdwg.mxu0
    %v3666 = vadd.f32 %v3522, %v3592
    %v3667 = vxor.u32 %v3666, 2147483648
    %v3668 = vmul.f32 %v3667, 1.442695
    %v3669 = vpow.pop %v3668
    %v3670 = vadd.f32 %v3669, 1.0
    %v3671 = vrcp.pop %v3670
    %v3672 = vmul.f32 1.0, %v3671
    %v3673 = vadd.f32 %v3523, %v3594
    %v3674 = vxor.u32 %v3673, 2147483648
    %v3675 = vmul.f32 %v3674, 1.442695
    %v3676 = vpow.pop %v3675
    %v3677 = vadd.f32 %v3676, 1.0
    %v3678 = vrcp.pop %v3677
    %v3679 = vmul.f32 1.0, %v3678
    %v3680 = vadd.f32 %v3663, %v2474
    %v3681 = vmul.f32 %v3672, %v3680
    %v3682 = vadd.f32 %v3524, %v3681
    %v3683 = vtanh.pop %v3682
    %v3684 = vsub.f32 1.0, %v3679
    %v3685 = vmul.f32 %v3684, %v3683
    %v3686 = vmul.f32 %v3679, %v3521
    %v3687 = vadd.f32 %v3685, %v3686
    %v3688 = vld [vmem:[%s1936] sm:$0xff]
    %v3689 = vld [vmem:[%s1936 + $0x8] sm:$0xff]
    %v3690 = vld [vmem:[%s1936 + $0x10] sm:$0xff]
    %3691 = vmatprep.subr.mxu0 %v2482
    %3692 = vmatpush1.msra.mxu0 %v2481
    %3693 = vmatprep.subr.mxu0 %v2485
    %3694 = vmatpush1.msra.mxu0 %v2484
    %3695 = vmatprep.subr.mxu0 %v2488
    %3696 = vmatpush1.msra.mxu0 %v2487
    %3697 = vmatprep.subr.mxu0 %v2491
    %3698 = vmatpush1.msra.mxu0 %v2490
    %3699 = vmatprep.subr.mxu0 %v2494
    %3700 = vmatpush1.msra.mxu0 %v2493
    %3701 = vmatprep.subr.mxu0 %v2497
    %3702 = vmatpush1.msra.mxu0 %v2496
    %3703 = vmatprep.subr.mxu0 %v2500
    %3704 = vmatpush1.msra.mxu0 %v2499
    %3705 = vmatprep.subr.mxu0 %v2503
    %3706 = vmatpush1.msra.mxu0 %v2502
    %3707 = vmatprep.subr.mxu0 %v2506
    %3708 = vmatpush1.msra.mxu0 %v2505
    %3709 = vmatprep.subr.mxu0 %v2509
    %3710 = vmatpush1.msra.mxu0 %v2508
    %3711 = vmatprep.subr.mxu0 %v2512
    %3712 = vmatpush1.msra.mxu0 %v2511
    %3713 = vmatprep.subr.mxu0 %v2515
    %3714 = vmatpush1.msra.mxu0 %v2514
    %3715 = vmatprep.subr.mxu0 %v2518
    %3716 = vmatpush1.msra.mxu0 %v2517
    %3717 = vmatprep.subr.mxu0 %v2521
    %3718 = vmatpush1.msra.mxu0 %v2520
    %3719 = vmatprep.subr.mxu0 %v2524
    %3720 = vmatpush1.msra.mxu0 %v2523
    %3721 = vmatprep.subr.mxu0 %v2527
    %3722 = vmatpush1.msra.mxu0 %v2526
    %3723 = vmatprep.subr.mxu0 0.0
    %3724 = vmatpush1.msra.mxu0 0.0
    %3725 = vmatprep.subr.mxu0 0.0
    %3726 = vmatpush1.msra.mxu0 0.0
    %3727 = vmatprep.subr.mxu0 0.0
    %3728 = vmatpush1.msra.mxu0 0.0
    %3729 = vmatprep.subr.mxu0 0.0
    %3730 = vmatpush1.msra.mxu0 0.0
    %3731 = vmatprep.subr.mxu0 0.0
    %3732 = vmatpush1.msra.mxu0 0.0
    %3733 = vmatprep.subr.mxu0 0.0
    %3734 = vmatpush1.msra.mxu0 0.0
    %3735 = vmatprep.subr.mxu0 0.0
    %3736 = vmatpush1.msra.mxu0 0.0
    %3737 = vmatprep.subr.mxu0 0.0
    %3738 = vmatpush1.msra.mxu0 0.0
    %3739 = vmatprep.subr.mxu0 0.0
    %3740 = vmatpush1.msra.mxu0 0.0
    %3741 = vmatprep.subr.mxu0 0.0
    %3742 = vmatpush1.msra.mxu0 0.0
    %3743 = vmatprep.subr.mxu0 0.0
    %3744 = vmatpush1.msra.mxu0 0.0
    %3745 = vmatprep.subr.mxu0 0.0
    %3746 = vmatpush1.msra.mxu0 0.0
    %3747 = vmatprep.subr.mxu0 0.0
    %3748 = vmatpush1.msra.mxu0 0.0
    %3749 = vmatprep.subr.mxu0 0.0
    %3750 = vmatpush1.msra.mxu0 0.0
    %3751 = vmatprep.subr.mxu0 0.0
    %3752 = vmatpush1.msra.mxu0 0.0
    %3753 = vmatprep.subr.mxu0 0.0
    %3754 = vmatpush1.msra.mxu0 0.0
    %3755 = vmatprep.mubr.f32.mxu0 0.0
    %3756 = vmatmul.mubr.f32.gmra.mrb[0].mxu0 %v3687
    %v3757 = vpop.f32.mrb[0].mxu0
    %v3758 = vadd.f32 0.0, %v3757
    %v3759 = vpop.f32.mrb[0].mxu0
    %v3760 = vadd.f32 0.0, %v3759
    %3761 = vdwg.mxu0
    %3762 = vmatprep.subr.mxu0 0.0
    %3763 = vmatpush1.msra.mxu0 %v2483
    %3764 = vmatprep.subr.mxu0 0.0
    %3765 = vmatpush1.msra.mxu0 %v2486
    %3766 = vmatprep.subr.mxu0 0.0
    %3767 = vmatpush1.msra.mxu0 %v2489
    %3768 = vmatprep.subr.mxu0 0.0
    %3769 = vmatpush1.msra.mxu0 %v2492
    %3770 = vmatprep.subr.mxu0 0.0
    %3771 = vmatpush1.msra.mxu0 %v2495
    %3772 = vmatprep.subr.mxu0 0.0
    %3773 = vmatpush1.msra.mxu0 %v2498
    %3774 = vmatprep.subr.mxu0 0.0
    %3775 = vmatpush1.msra.mxu0 %v2501
    %3776 = vmatprep.subr.mxu0 0.0
    %3777 = vmatpush1.msra.mxu0 %v2504
    %3778 = vmatprep.subr.mxu0 0.0
    %3779 = vmatpush1.msra.mxu0 %v2507
    %3780 = vmatprep.subr.mxu0 0.0
    %3781 = vmatpush1.msra.mxu0 %v2510
    %3782 = vmatprep.subr.mxu0 0.0
    %3783 = vmatpush1.msra.mxu0 %v2513
    %3784 = vmatprep.subr.mxu0 0.0
    %3785 = vmatpush1.msra.mxu0 %v2516
    %3786 = vmatprep.subr.mxu0 0.0
    %3787 = vmatpush1.msra.mxu0 %v2519
    %3788 = vmatprep.subr.mxu0 0.0
    %3789 = vmatpush1.msra.mxu0 %v2522
    %3790 = vmatprep.subr.mxu0 0.0
    %3791 = vmatpush1.msra.mxu0 %v2525
    %3792 = vmatprep.subr.mxu0 0.0
    %3793 = vmatpush1.msra.mxu0 %v2528
    %3794 = vmatprep.subr.mxu0 0.0
    %3795 = vmatpush1.msra.mxu0 0.0
    %3796 = vmatprep.subr.mxu0 0.0
    %3797 = vmatpush1.msra.mxu0 0.0
    %3798 = vmatprep.subr.mxu0 0.0
    %3799 = vmatpush1.msra.mxu0 0.0
    %3800 = vmatprep.subr.mxu0 0.0
    %3801 = vmatpush1.msra.mxu0 0.0
    %3802 = vmatprep.subr.mxu0 0.0
    %3803 = vmatpush1.msra.mxu0 0.0
    %3804 = vmatprep.subr.mxu0 0.0
    %3805 = vmatpush1.msra.mxu0 0.0
    %3806 = vmatprep.subr.mxu0 0.0
    %3807 = vmatpush1.msra.mxu0 0.0
    %3808 = vmatprep.subr.mxu0 0.0
    %3809 = vmatpush1.msra.mxu0 0.0
    %3810 = vmatprep.subr.mxu0 0.0
    %3811 = vmatpush1.msra.mxu0 0.0
    %3812 = vmatprep.subr.mxu0 0.0
    %3813 = vmatpush1.msra.mxu0 0.0
    %3814 = vmatprep.subr.mxu0 0.0
    %3815 = vmatpush1.msra.mxu0 0.0
    %3816 = vmatprep.subr.mxu0 0.0
    %3817 = vmatpush1.msra.mxu0 0.0
    %3818 = vmatprep.subr.mxu0 0.0
    %3819 = vmatpush1.msra.mxu0 0.0
    %3820 = vmatprep.subr.mxu0 0.0
    %3821 = vmatpush1.msra.mxu0 0.0
    %3822 = vmatprep.subr.mxu0 0.0
    %3823 = vmatpush1.msra.mxu0 0.0
    %3824 = vmatprep.subr.mxu0 0.0
    %3825 = vmatpush1.msra.mxu0 0.0
    %3826 = vmatprep.mubr.f32.mxu0 0.0
    %3827 = vmatmul.mubr.f32.gmra.mrb[0].mxu0 %v3687
    %v3828 = vpop.f32.mrb[0].mxu0
    %v3829 = vadd.f32 0.0, %v3828
    %v3830 = vpop.f32.mrb[0].mxu0
    %3831 = vdwg.mxu0
    %v3832 = vadd.f32 %v3688, %v3758
    %v3833 = vxor.u32 %v3832, 2147483648
    %v3834 = vmul.f32 %v3833, 1.442695
    %v3835 = vpow.pop %v3834
    %v3836 = vadd.f32 %v3835, 1.0
    %v3837 = vrcp.pop %v3836
    %v3838 = vmul.f32 1.0, %v3837
    %v3839 = vadd.f32 %v3689, %v3760
    %v3840 = vxor.u32 %v3839, 2147483648
    %v3841 = vmul.f32 %v3840, 1.442695
    %v3842 = vpow.pop %v3841
    %v3843 = vadd.f32 %v3842, 1.0
    %v3844 = vrcp.pop %v3843
    %v3845 = vmul.f32 1.0, %v3844
    %v3846 = vadd.f32 %v3829, %v2474
    %v3847 = vmul.f32 %v3838, %v3846
    %v3848 = vadd.f32 %v3690, %v3847
    %v3849 = vtanh.pop %v3848
    %v3850 = vsub.f32 1.0, %v3845
    %v3851 = vmul.f32 %v3850, %v3849
    %v3852 = vmul.f32 %v3845, %v3687
    %v3853 = vadd.f32 %v3851, %v3852
    %3854 = vst [vmem:[%s2476] sm:$0xff] %v3853
    // Predicated region
    $region62: #{gru_motion_classifier_forward.1} parent=1 // pred_check
      %p3855 = pneg %p90
    $region63: #{gru_motion_classifier_forward.1} parent=1 // pred_check_branch
      %3857 = sbr.rel (%p3855) target = $region65
    $region64: #{gru_motion_classifier_forward.1} parent=1 // pred_region
      %v3858 = vld [vmem:[%s2476] sm:$0xff]
      %v3859 = vld [vmem:[#allocation10] sm:$0xff]
      %v3860 = vld [vmem:[#allocation10 + $0x8] sm:$0xff]
      %v3861 = vld [vmem:[#allocation10 + $0x10] sm:$0xff]
      %v3862 = vld [vmem:[#allocation10 + $0x18] sm:$0xff]
      %v3863 = vld [vmem:[#allocation10 + $0x20] sm:$0xff]
      %v3864 = vld [vmem:[#allocation10 + $0x28] sm:$0xff]
      %v3865 = vld [vmem:[#allocation10 + $0x30] sm:$0xff]
      %v3866 = vld [vmem:[#allocation10 + $0x38] sm:$0xff]
      %v3867 = vld [vmem:[#allocation10 + $0x40] sm:$0xff]
      %v3868 = vld [vmem:[#allocation10 + $0x48] sm:$0xff]
      %v3869 = vld [vmem:[#allocation10 + $0x50] sm:$0xff]
      %v3870 = vld [vmem:[#allocation10 + $0x58] sm:$0xff]
      %v3871 = vld [vmem:[#allocation10 + $0x60] sm:$0xff]
      %v3872 = vld [vmem:[#allocation10 + $0x68] sm:$0xff]
      %v3873 = vld [vmem:[#allocation10 + $0x70] sm:$0xff]
      %v3874 = vld [vmem:[#allocation10 + $0x78] sm:$0xff]
      %v3875 = vld [vmem:[%s9] sm:$0x1]
      %v3877 = vlaneseq
      %v3878 = vshrl.u32 %v3877, 7
      %v3879 = vsub.s32 0, %v3878
      %v3880 = vrot.slane %v3875, %v3879
      %3882 = vmatprep.subr.mxu0 0.0
      %3883 = vmatpush1.msra.mxu0 %v3859
      %3884 = vmatprep.subr.mxu0 0.0
      %3885 = vmatpush1.msra.mxu0 %v3860
      %3886 = vmatprep.subr.mxu0 0.0
      %3887 = vmatpush1.msra.mxu0 %v3861
      %3888 = vmatprep.subr.mxu0 0.0
      %3889 = vmatpush1.msra.mxu0 %v3862
      %3890 = vmatprep.subr.mxu0 0.0
      %3891 = vmatpush1.msra.mxu0 %v3863
      %3892 = vmatprep.subr.mxu0 0.0
      %3893 = vmatpush1.msra.mxu0 %v3864
      %3894 = vmatprep.subr.mxu0 0.0
      %3895 = vmatpush1.msra.mxu0 %v3865
      %3896 = vmatprep.subr.mxu0 0.0
      %3897 = vmatpush1.msra.mxu0 %v3866
      %3898 = vmatprep.subr.mxu0 0.0
      %3899 = vmatpush1.msra.mxu0 %v3867
      %3900 = vmatprep.subr.mxu0 0.0
      %3901 = vmatpush1.msra.mxu0 %v3868
      %3902 = vmatprep.subr.mxu0 0.0
      %3903 = vmatpush1.msra.mxu0 %v3869
      %3904 = vmatprep.subr.mxu0 0.0
      %3905 = vmatpush1.msra.mxu0 %v3870
      %3906 = vmatprep.subr.mxu0 0.0
      %3907 = vmatpush1.msra.mxu0 %v3871
      %3908 = vmatprep.subr.mxu0 0.0
      %3909 = vmatpush1.msra.mxu0 %v3872
      %3910 = vmatprep.subr.mxu0 0.0
      %3911 = vmatpush1.msra.mxu0 %v3873
      %3912 = vmatprep.subr.mxu0 0.0
      %3913 = vmatpush1.msra.mxu0 %v3874
      %3914 = vmatprep.subr.mxu0 0.0
      %3915 = vmatpush1.msra.mxu0 0.0
      %3916 = vmatprep.subr.mxu0 0.0
      %3917 = vmatpush1.msra.mxu0 0.0
      %3918 = vmatprep.subr.mxu0 0.0
      %3919 = vmatpush1.msra.mxu0 0.0
      %3920 = vmatprep.subr.mxu0 0.0
      %3921 = vmatpush1.msra.mxu0 0.0
      %3922 = vmatprep.subr.mxu0 0.0
      %3923 = vmatpush1.msra.mxu0 0.0
      %3924 = vmatprep.subr.mxu0 0.0
      %3925 = vmatpush1.msra.mxu0 0.0
      %3926 = vmatprep.subr.mxu0 0.0
      %3927 = vmatpush1.msra.mxu0 0.0
      %3928 = vmatprep.subr.mxu0 0.0
      %3929 = vmatpush1.msra.mxu0 0.0
      %3930 = vmatprep.subr.mxu0 0.0
      %3931 = vmatpush1.msra.mxu0 0.0
      %3932 = vmatprep.subr.mxu0 0.0
      %3933 = vmatpush1.msra.mxu0 0.0
      %3934 = vmatprep.subr.mxu0 0.0
      %3935 = vmatpush1.msra.mxu0 0.0
      %3936 = vmatprep.subr.mxu0 0.0
      %3937 = vmatpush1.msra.mxu0 0.0
      %3938 = vmatprep.subr.mxu0 0.0
      %3939 = vmatpush1.msra.mxu0 0.0
      %3940 = vmatprep.subr.mxu0 0.0
      %3941 = vmatpush1.msra.mxu0 0.0
      %3942 = vmatprep.subr.mxu0 0.0
      %3943 = vmatpush1.msra.mxu0 0.0
      %3944 = vmatprep.subr.mxu0 0.0
      %3945 = vmatpush1.msra.mxu0 0.0
      %3946 = vmatprep.mubr.f32.mxu0 0.0
      %3947 = vmatmul.mubr.f32.gmra.mrb[0].mxu0 %v3858
      %v3948 = vpop.f32.mrb[0].mxu0
      %v3949 = vadd.f32 %v3880, %v3948
      %v3950 = vpop.f32.mrb[0].mxu0
      %3951 = vdwg.mxu0
      %3952 = vst [vmem:[%s10] sm:$0xff] %v3949
    $region65: #{gru_motion_classifier_forward.1} parent=1 // pred_fallthru
      _
    // Predicated region
    $region66: #{gru_motion_classifier_forward.1} parent=1 // pred_check
      _
    $region67: #{gru_motion_classifier_forward.1} parent=1 // pred_check_branch
      %3954 = sbr.rel (0) target = $region69
    $region68: #{gru_motion_classifier_forward.1} parent=1 // pred_region
      _
    $region69: #{gru_motion_classifier_forward.1} parent=1 // pred_fallthru
      _
    // Predicated region
    $region70: #{gru_motion_classifier_forward.1} parent=1 // pred_check
      _
    $region71: #{gru_motion_classifier_forward.1} parent=1 // pred_check_branch
      %3956 = sbr.rel (0) target = $region73
    $region72: #{gru_motion_classifier_forward.1} parent=1 // pred_region
      _
    $region73: #{gru_motion_classifier_forward.1} parent=1 // pred_fallthru
      _
    %3957 = vsyncpa [#allocation6], 1
    %3958 = vsyncpa [#allocation8], 1
    %3959 = vsyncpa [#allocation11], 1

</llo_original>
